<compile_context>
chip_gen: v7x
topology: tpu7x:2x2x1
jax: 0.10.0
libtpu: 0.0.40
codegen_flags: <defaults>
</compile_context>

<pallas_src>
import math

import jax
import jax.numpy as jnp
from jax.experimental import pallas as pl
from jax.experimental.pallas import tpu as pltpu

# ---- small synthetic "bert-base-cased"-shaped config (scaled down) ----------
VOCAB = 128
TYPE_VOCAB = 2
MAX_POS = 16
HIDDEN = 32
N_LAYERS = 2
N_HEADS = 2
HEAD_DIM = HIDDEN // N_HEADS
INTERMEDIATE = 64
N_CLASSES = 3
LN_EPS = 1e-12
OUT_PAD = 128          # lane-dense classifier output width (sliced back to N_CLASSES)


# ------------------------------ kernel helpers --------------------------------
def _layer_norm(x, g, b):
    mean = jnp.mean(x, axis=-1, keepdims=True)
    var = jnp.mean(jnp.square(x - mean), axis=-1, keepdims=True)
    return (x - mean) * jax.lax.rsqrt(var + LN_EPS) * g + b


def _gelu(y):
    # tanh-approx GELU. TODO(synk): HF BERT uses erf-GELU; tiny numeric difference.
    c = jnp.float32(0.7978845608028654)  # sqrt(2/pi)
    return 0.5 * y * (1.0 + jnp.tanh(c * (y + 0.044715 * y * y * y)))


# ------------------------------- fused kernel ---------------------------------
def _bert_fused_kernel(
    ids_ref, mask_ref,
    word_emb_ref, pos_emb_ref, type_emb_ref, emb_ln_g_ref, emb_ln_b_ref,
    wqkv_ref, bqkv_ref, wo_ref, bo_ref, aln_g_ref, aln_b_ref,
    w1_ref, b1_ref, w2_ref, b2_ref, fln_g_ref, fln_b_ref,
    pool_w_ref, pool_b_ref, out_w_ref, out_b_ref,
    logits_ref,
):
    """Entire SentimentClassifier forward for one batch element (grid over B)."""
    S = ids_ref.shape[1]
    V, H = word_emb_ref.shape

    # ---- embeddings: token lookup as one-hot matmul (MXU), + pos + type, LN ----
    ids = ids_ref[0]                                               # (S, 1) int32
    onehot = jnp.where(
        jax.lax.broadcasted_iota(jnp.int32, (S, V), 1) == ids, 1.0, 0.0
    ).astype(jnp.float32)                                          # (S, V)
    tok = jnp.dot(onehot, word_emb_ref[...], preferred_element_type=jnp.float32)
    pos = pos_emb_ref[0:S, :]                                      # (S, H)
    typ = type_emb_ref[0:1, :]                                     # token_type_ids == 0
    x = _layer_norm(tok + pos + typ, emb_ln_g_ref[...], emb_ln_b_ref[...])   # (S, H)

    # additive attention mask: 0 where attended, -10000 where padded
    add_mask = (1.0 - mask_ref[0]) * jnp.float32(-10000.0)         # (1, S)

    # ---- transformer encoder layers (unrolled; weights resident in VMEM) ----
    for l in range(N_LAYERS):
        qkv = jnp.dot(x, wqkv_ref[l], preferred_element_type=jnp.float32) + bqkv_ref[l]
        wo_l = wo_ref[l]                                           # (H, H)
        attn_out = jnp.zeros((S, H), jnp.float32)
        for h in range(N_HEADS):
            lo = h * HEAD_DIM
            hi = lo + HEAD_DIM
            q = qkv[:, lo:hi]                                      # (S, DH); 1/sqrt(dh) pre-folded
            k = qkv[:, H + lo:H + hi]
            v = qkv[:, 2 * H + lo:2 * H + hi]
            s = jax.lax.dot_general(q, k, (((1,), (1,)), ((), ())),
                                    preferred_element_type=jnp.float32)       # (S, S)
            s = s + add_mask
            s = s - jnp.max(s, axis=-1, keepdims=True)
            p = jnp.exp(s)
            p = p * pl.reciprocal(jnp.sum(p, axis=-1, keepdims=True), approx=True)
            ctx_h = jnp.dot(p, v, preferred_element_type=jnp.float32)         # (S, DH)
            # head-concat + output projection fused: ctx @ Wo == sum_h ctx_h @ Wo[rows_h]
            attn_out = attn_out + jnp.dot(ctx_h, wo_l[lo:hi, :],
                                          preferred_element_type=jnp.float32)
        attn_out = attn_out + bo_ref[l]
        x = _layer_norm(attn_out + x, aln_g_ref[l], aln_b_ref[l])

        hmid = _gelu(jnp.dot(x, w1_ref[l], preferred_element_type=jnp.float32) + b1_ref[l])
        ffn = jnp.dot(hmid, w2_ref[l], preferred_element_type=jnp.float32) + b2_ref[l]
        x = _layer_norm(ffn + x, fln_g_ref[l], fln_b_ref[l])

    # ---- BERT pooler on CLS + dropout(eval)=identity + classifier head ----
    cls = x[0:1, :]                                                # (1, H)
    pooled = jnp.tanh(jnp.dot(cls, pool_w_ref[...], preferred_element_type=jnp.float32)
                      + pool_b_ref[...])
    # self.drop = nn.Dropout(p=0.3): identity in eval mode
    # TODO(synk): training-mode stochastic dropout not reproduced (eval semantics used)
    logits = (jnp.dot(pooled, out_w_ref[...], preferred_element_type=jnp.float32)
              + out_b_ref[...])                                    # (1, OUT_PAD)
    logits_ref[0] = logits                                         # lane-dense (128-wide) store


# --------------------------- parameter construction ---------------------------
def init_params(key):
    def w(key, shape, scale=0.02):
        return scale * jax.random.normal(key, shape, dtype=jnp.float32)

    keys = iter(jax.random.split(key, 64))
    p = {
        "word_emb": w(next(keys), (VOCAB, HIDDEN)),
        "pos_emb": w(next(keys), (MAX_POS, HIDDEN)),
        "type_emb": w(next(keys), (TYPE_VOCAB, HIDDEN)),
        "emb_ln_g": jnp.ones((HIDDEN,), jnp.float32),
        "emb_ln_b": jnp.zeros((HIDDEN,), jnp.float32),
        "layers": [],
        "pool_w": w(next(keys), (HIDDEN, HIDDEN)),
        "pool_b": jnp.zeros((HIDDEN,), jnp.float32),
        "out_w": w(next(keys), (HIDDEN, N_CLASSES)),
        "out_b": jnp.zeros((N_CLASSES,), jnp.float32),
    }
    for _ in range(N_LAYERS):
        p["layers"].append({
            "wq": w(next(keys), (HIDDEN, HIDDEN)), "bq": jnp.zeros((HIDDEN,), jnp.float32),
            "wk": w(next(keys), (HIDDEN, HIDDEN)), "bk": jnp.zeros((HIDDEN,), jnp.float32),
            "wv": w(next(keys), (HIDDEN, HIDDEN)), "bv": jnp.zeros((HIDDEN,), jnp.float32),
            "wo": w(next(keys), (HIDDEN, HIDDEN)), "bo": jnp.zeros((HIDDEN,), jnp.float32),
            "attn_ln_g": jnp.ones((HIDDEN,), jnp.float32),
            "attn_ln_b": jnp.zeros((HIDDEN,), jnp.float32),
            "w1": w(next(keys), (HIDDEN, INTERMEDIATE)), "b1": jnp.zeros((INTERMEDIATE,), jnp.float32),
            "w2": w(next(keys), (INTERMEDIATE, HIDDEN)), "b2": jnp.zeros((HIDDEN,), jnp.float32),
            "ffn_ln_g": jnp.ones((HIDDEN,), jnp.float32),
            "ffn_ln_b": jnp.zeros((HIDDEN,), jnp.float32),
        })
    return p


def pack_params(p):
    """Stack per-layer weights, fuse QKV (scale folded into Q), pad the head to 128 lanes."""
    scale = jnp.float32(1.0 / math.sqrt(HEAD_DIM))
    L = p["layers"]

    def row(v):                                # (N,) -> (1, N)
        return v[None, :]

    return {
        "word_emb": p["word_emb"],
        "pos_emb": p["pos_emb"],
        "type_emb": p["type_emb"],
        "emb_ln_g": row(p["emb_ln_g"]),
        "emb_ln_b": row(p["emb_ln_b"]),
        "wqkv": jnp.stack([jnp.concatenate([lp["wq"] * scale, lp["wk"], lp["wv"]], axis=1)
                           for lp in L]),                                   # (L, H, 3H)
        "bqkv": jnp.stack([row(jnp.concatenate([lp["bq"] * scale, lp["bk"], lp["bv"]]))
                           for lp in L]),                                   # (L, 1, 3H)
        "wo": jnp.stack([lp["wo"] for lp in L]),
        "bo": jnp.stack([row(lp["bo"]) for lp in L]),
        "aln_g": jnp.stack([row(lp["attn_ln_g"]) for lp in L]),
        "aln_b": jnp.stack([row(lp["attn_ln_b"]) for lp in L]),
        "w1": jnp.stack([lp["w1"] for lp in L]),
        "b1": jnp.stack([row(lp["b1"]) for lp in L]),
        "w2": jnp.stack([lp["w2"] for lp in L]),
        "b2": jnp.stack([row(lp["b2"]) for lp in L]),
        "fln_g": jnp.stack([row(lp["ffn_ln_g"]) for lp in L]),
        "fln_b": jnp.stack([row(lp["ffn_ln_b"]) for lp in L]),
        "pool_w": p["pool_w"],
        "pool_b": row(p["pool_b"]),
        "out_w": jnp.zeros((HIDDEN, OUT_PAD), jnp.float32).at[:, :N_CLASSES].set(p["out_w"]),
        "out_b": jnp.zeros((1, OUT_PAD), jnp.float32).at[0, :N_CLASSES].set(p["out_b"]),
    }


PACKED_ORDER = ("word_emb", "pos_emb", "type_emb", "emb_ln_g", "emb_ln_b",
                "wqkv", "bqkv", "wo", "bo", "aln_g", "aln_b",
                "w1", "b1", "w2", "b2", "fln_g", "fln_b",
                "pool_w", "pool_b", "out_w", "out_b")


def _resident_spec(arr):
    """Full-array VMEM block, same block for every grid step (stays resident)."""
    nd = arr.ndim
    return pl.BlockSpec(arr.shape, lambda b, _nd=nd: (0,) * _nd)


# ------------------------------- forward pass ----------------------------------
@jax.jit
def sentiment_classifier_forward(packed, input_ids, attention_mask):
    B, S = input_ids.shape
    ids = input_ids.astype(jnp.int32).reshape(B, S, 1)
    mask = attention_mask.astype(jnp.float32).reshape(B, 1, S)
    weights = [packed[k] for k in PACKED_ORDER]

    in_specs = [
        pl.BlockSpec((1, S, 1), lambda b: (b, 0, 0)),   # input_ids, per-batch block
        pl.BlockSpec((1, 1, S), lambda b: (b, 0, 0)),   # attention_mask, per-batch block
    ] + [_resident_spec(w) for w in weights]

    logits_pad = pl.pallas_call(
        _bert_fused_kernel,
        out_shape=jax.ShapeDtypeStruct((B, 1, OUT_PAD), jnp.float32),
        grid=(B,),
        in_specs=in_specs,
        out_specs=pl.BlockSpec((1, 1, OUT_PAD), lambda b: (b, 0, 0)),
        compiler_params=pltpu.CompilerParams(
            dimension_semantics=("parallel",)),   # batch axis shards across TCs on v7x
    )(ids, mask, *weights)

    return logits_pad[:, 0, :N_CLASSES]


# ----------------------------------- main ---------------------------------------
if __name__ == "__main__":
    key = jax.random.PRNGKey(0)
    pkey, ikey = jax.random.split(key)
    params = init_params(pkey)
    packed = pack_params(params)

    B, S = 2, 8
    input_ids = jax.random.randint(ikey, (B, S), 0, VOCAB, dtype=jnp.int32)
    attention_mask = jnp.array(
        [[1, 1, 1, 1, 1, 1, 1, 1],
         [1, 1, 1, 1, 1, 1, 0, 0]], dtype=jnp.int32)

    logits = sentiment_classifier_forward(packed, input_ids, attention_mask)
    jax.block_until_ready(logits)
    assert logits.shape == (B, N_CLASSES)
    assert bool(jnp.all(jnp.isfinite(logits)))
    print("KERNEL_OK")
</pallas_src>

<mosaic_0001>
module attributes {stable_mosaic.version = 11 : i64} {
  func.func @_bert_fused_kernel(%arg0: i32, %arg1: memref<1x8x1xi32, #tpu.memory_space<vmem>>, %arg2: memref<1x1x8xf32, #tpu.memory_space<vmem>>, %arg3: memref<128x32xf32, #tpu.memory_space<vmem>>, %arg4: memref<16x32xf32, #tpu.memory_space<vmem>>, %arg5: memref<2x32xf32, #tpu.memory_space<vmem>>, %arg6: memref<1x32xf32, #tpu.memory_space<vmem>>, %arg7: memref<1x32xf32, #tpu.memory_space<vmem>>, %arg8: memref<2x32x96xf32, #tpu.memory_space<vmem>>, %arg9: memref<2x1x96xf32, #tpu.memory_space<vmem>>, %arg10: memref<2x32x32xf32, #tpu.memory_space<vmem>>, %arg11: memref<2x1x32xf32, #tpu.memory_space<vmem>>, %arg12: memref<2x1x32xf32, #tpu.memory_space<vmem>>, %arg13: memref<2x1x32xf32, #tpu.memory_space<vmem>>, %arg14: memref<2x32x64xf32, #tpu.memory_space<vmem>>, %arg15: memref<2x1x64xf32, #tpu.memory_space<vmem>>, %arg16: memref<2x64x32xf32, #tpu.memory_space<vmem>>, %arg17: memref<2x1x32xf32, #tpu.memory_space<vmem>>, %arg18: memref<2x1x32xf32, #tpu.memory_space<vmem>>, %arg19: memref<2x1x32xf32, #tpu.memory_space<vmem>>, %arg20: memref<32x32xf32, #tpu.memory_space<vmem>>, %arg21: memref<1x32xf32, #tpu.memory_space<vmem>>, %arg22: memref<32x128xf32, #tpu.memory_space<vmem>>, %arg23: memref<1x128xf32, #tpu.memory_space<vmem>>, %arg24: memref<1x1x128xf32, #tpu.memory_space<vmem>>) attributes {dimension_semantics = [#tpu.dimension_semantics<parallel>], iteration_bounds = array<i64: 2>, scalar_prefetch = 0 : i64, scratch_operands = 0 : i64, tpu.core_type = #tpu.core_type<tc>, window_params = [{transform_indices = @transform_0, window_bounds = array<i64: 1, 8, 1>}, {transform_indices = @transform_1, window_bounds = array<i64: 1, 1, 8>}, {pipeline_mode = #tpu.pipeline_mode<synchronous>, transform_indices = @transform_2, window_bounds = array<i64: 128, 32>}, {pipeline_mode = #tpu.pipeline_mode<synchronous>, transform_indices = @transform_3, window_bounds = array<i64: 16, 32>}, {pipeline_mode = #tpu.pipeline_mode<synchronous>, transform_indices = @transform_4, window_bounds = array<i64: 2, 32>}, {pipeline_mode = #tpu.pipeline_mode<synchronous>, transform_indices = @transform_5, window_bounds = array<i64: 1, 32>}, {pipeline_mode = #tpu.pipeline_mode<synchronous>, transform_indices = @transform_6, window_bounds = array<i64: 1, 32>}, {pipeline_mode = #tpu.pipeline_mode<synchronous>, transform_indices = @transform_7, window_bounds = array<i64: 2, 32, 96>}, {pipeline_mode = #tpu.pipeline_mode<synchronous>, transform_indices = @transform_8, window_bounds = array<i64: 2, 1, 96>}, {pipeline_mode = #tpu.pipeline_mode<synchronous>, transform_indices = @transform_9, window_bounds = array<i64: 2, 32, 32>}, {pipeline_mode = #tpu.pipeline_mode<synchronous>, transform_indices = @transform_10, window_bounds = array<i64: 2, 1, 32>}, {pipeline_mode = #tpu.pipeline_mode<synchronous>, transform_indices = @transform_11, window_bounds = array<i64: 2, 1, 32>}, {pipeline_mode = #tpu.pipeline_mode<synchronous>, transform_indices = @transform_12, window_bounds = array<i64: 2, 1, 32>}, {pipeline_mode = #tpu.pipeline_mode<synchronous>, transform_indices = @transform_13, window_bounds = array<i64: 2, 32, 64>}, {pipeline_mode = #tpu.pipeline_mode<synchronous>, transform_indices = @transform_14, window_bounds = array<i64: 2, 1, 64>}, {pipeline_mode = #tpu.pipeline_mode<synchronous>, transform_indices = @transform_15, window_bounds = array<i64: 2, 64, 32>}, {pipeline_mode = #tpu.pipeline_mode<synchronous>, transform_indices = @transform_16, window_bounds = array<i64: 2, 1, 32>}, {pipeline_mode = #tpu.pipeline_mode<synchronous>, transform_indices = @transform_17, window_bounds = array<i64: 2, 1, 32>}, {pipeline_mode = #tpu.pipeline_mode<synchronous>, transform_indices = @transform_18, window_bounds = array<i64: 2, 1, 32>}, {pipeline_mode = #tpu.pipeline_mode<synchronous>, transform_indices = @transform_19, window_bounds = array<i64: 32, 32>}, {pipeline_mode = #tpu.pipeline_mode<synchronous>, transform_indices = @transform_20, window_bounds = array<i64: 1, 32>}, {pipeline_mode = #tpu.pipeline_mode<synchronous>, transform_indices = @transform_21, window_bounds = array<i64: 32, 128>}, {pipeline_mode = #tpu.pipeline_mode<synchronous>, transform_indices = @transform_22, window_bounds = array<i64: 1, 128>}, {transform_indices = @transform_23, window_bounds = array<i64: 1, 1, 128>}]} {
    %c0 = arith.constant 0 : index
    %c0_0 = arith.constant 0 : index
    %c0_1 = arith.constant 0 : index
    %0 = vector.load %arg1[%c0, %c0_0, %c0_1] : memref<1x8x1xi32, #tpu.memory_space<vmem>>, vector<1x8x1xi32>
    %1 = vector.shape_cast %0 : vector<1x8x1xi32> to vector<8x1xi32>
    %2 = tpu.iota {dimensions = array<i32: 1>} : vector<8x128xi32>
    %3 = vector.broadcast %1 : vector<8x1xi32> to vector<8x128xi32>
    %4 = arith.cmpi eq, %2, %3 : vector<8x128xi32>
    %cst = arith.constant 1.000000e+00 : f32
    %cst_2 = arith.constant 0.000000e+00 : f32
    %5 = vector.broadcast %cst : f32 to vector<8x128xf32>
    %6 = vector.broadcast %cst_2 : f32 to vector<8x128xf32>
    %7 = arith.select %4, %5, %6 : vector<8x128xi1>, vector<8x128xf32>
    %c0_3 = arith.constant 0 : index
    %c0_4 = arith.constant 0 : index
    %8 = vector.load %arg3[%c0_3, %c0_4] : memref<128x32xf32, #tpu.memory_space<vmem>>, vector<128x32xf32>
    %cst_5 = arith.constant dense<0.000000e+00> : vector<8x32xf32>
    %9 = tpu.matmul %7, %8, %cst_5 {dimension_numbers = #tpu.dot_dimension_numbers<[1], [0], [0], [1], [0, 0, 1, 1], [], []>} : vector<8x128xf32>, vector<128x32xf32>, vector<8x32xf32> -> vector<8x32xf32>
    %c0_6 = arith.constant 0 : index
    %c0_7 = arith.constant 0 : index
    %10 = vector.load %arg4[%c0_6, %c0_7] : memref<16x32xf32, #tpu.memory_space<vmem>>, vector<8x32xf32>
    %c0_8 = arith.constant 0 : index
    %c0_9 = arith.constant 0 : index
    %11 = vector.load %arg5[%c0_8, %c0_9] : memref<2x32xf32, #tpu.memory_space<vmem>>, vector<1x32xf32>
    %12 = arith.addf %9, %10 : vector<8x32xf32>
    %13 = vector.broadcast %11 : vector<1x32xf32> to vector<8x32xf32>
    %14 = arith.addf %12, %13 : vector<8x32xf32>
    %c0_10 = arith.constant 0 : index
    %c0_11 = arith.constant 0 : index
    %15 = vector.load %arg6[%c0_10, %c0_11] : memref<1x32xf32, #tpu.memory_space<vmem>>, vector<1x32xf32>
    %c0_12 = arith.constant 0 : index
    %c0_13 = arith.constant 0 : index
    %16 = vector.load %arg7[%c0_12, %c0_13] : memref<1x32xf32, #tpu.memory_space<vmem>>, vector<1x32xf32>
    %cst_14 = arith.constant dense<0.000000e+00> : vector<8xf32>
    %17 = vector.multi_reduction <add>, %14, %cst_14 [1] : vector<8x32xf32> to vector<8xf32>
    %18 = vector.shape_cast %17 : vector<8xf32> to vector<8x1xf32>
    %cst_15 = arith.constant 3.200000e+01 : f32
    %19 = vector.broadcast %cst_15 : f32 to vector<8x1xf32>
    %20 = arith.divf %18, %19 : vector<8x1xf32>
    %21 = vector.broadcast %20 : vector<8x1xf32> to vector<8x32xf32>
    %22 = arith.subf %14, %21 : vector<8x32xf32>
    %23 = arith.mulf %22, %22 : vector<8x32xf32>
    %cst_16 = arith.constant dense<0.000000e+00> : vector<8xf32>
    %24 = vector.multi_reduction <add>, %23, %cst_16 [1] : vector<8x32xf32> to vector<8xf32>
    %25 = vector.shape_cast %24 : vector<8xf32> to vector<8x1xf32>
    %cst_17 = arith.constant 3.200000e+01 : f32
    %26 = vector.broadcast %cst_17 : f32 to vector<8x1xf32>
    %27 = arith.divf %25, %26 : vector<8x1xf32>
    %28 = vector.broadcast %20 : vector<8x1xf32> to vector<8x32xf32>
    %29 = arith.subf %14, %28 : vector<8x32xf32>
    %cst_18 = arith.constant 9.99999996E-13 : f32
    %30 = vector.broadcast %cst_18 : f32 to vector<8x1xf32>
    %31 = arith.addf %27, %30 : vector<8x1xf32>
    %32 = math.rsqrt %31 : vector<8x1xf32>
    %33 = vector.broadcast %32 : vector<8x1xf32> to vector<8x32xf32>
    %34 = arith.mulf %29, %33 : vector<8x32xf32>
    %35 = vector.broadcast %15 : vector<1x32xf32> to vector<8x32xf32>
    %36 = arith.mulf %34, %35 : vector<8x32xf32>
    %37 = vector.broadcast %16 : vector<1x32xf32> to vector<8x32xf32>
    %38 = arith.addf %36, %37 : vector<8x32xf32>
    %c0_19 = arith.constant 0 : index
    %c0_20 = arith.constant 0 : index
    %c0_21 = arith.constant 0 : index
    %39 = vector.load %arg2[%c0_19, %c0_20, %c0_21] : memref<1x1x8xf32, #tpu.memory_space<vmem>>, vector<1x1x8xf32>
    %40 = vector.shape_cast %39 : vector<1x1x8xf32> to vector<1x8xf32>
    %cst_22 = arith.constant 1.000000e+00 : f32
    %41 = vector.broadcast %cst_22 : f32 to vector<1x8xf32>
    %42 = arith.subf %41, %40 : vector<1x8xf32>
    %cst_23 = arith.constant -1.000000e+04 : f32
    %43 = vector.broadcast %cst_23 : f32 to vector<1x8xf32>
    %44 = arith.mulf %42, %43 : vector<1x8xf32>
    %c0_24 = arith.constant 0 : index
    %c0_25 = arith.constant 0 : index
    %c0_26 = arith.constant 0 : index
    %45 = vector.load %arg8[%c0_24, %c0_25, %c0_26] : memref<2x32x96xf32, #tpu.memory_space<vmem>>, vector<1x32x96xf32>
    %46 = vector.shape_cast %45 : vector<1x32x96xf32> to vector<32x96xf32>
    %cst_27 = arith.constant dense<0.000000e+00> : vector<8x96xf32>
    %47 = tpu.matmul %38, %46, %cst_27 {dimension_numbers = #tpu.dot_dimension_numbers<[1], [0], [0], [1], [0, 0, 1, 1], [], []>} : vector<8x32xf32>, vector<32x96xf32>, vector<8x96xf32> -> vector<8x96xf32>
    %c0_28 = arith.constant 0 : index
    %c0_29 = arith.constant 0 : index
    %c0_30 = arith.constant 0 : index
    %48 = vector.load %arg9[%c0_28, %c0_29, %c0_30] : memref<2x1x96xf32, #tpu.memory_space<vmem>>, vector<1x1x96xf32>
    %49 = vector.shape_cast %48 : vector<1x1x96xf32> to vector<1x96xf32>
    %50 = vector.broadcast %49 : vector<1x96xf32> to vector<8x96xf32>
    %51 = arith.addf %47, %50 : vector<8x96xf32>
    %c0_31 = arith.constant 0 : index
    %c0_32 = arith.constant 0 : index
    %c0_33 = arith.constant 0 : index
    %52 = vector.load %arg10[%c0_31, %c0_32, %c0_33] : memref<2x32x32xf32, #tpu.memory_space<vmem>>, vector<1x32x32xf32>
    %53 = vector.shape_cast %52 : vector<1x32x32xf32> to vector<32x32xf32>
    %cst_34 = arith.constant 0.000000e+00 : f32
    %54 = vector.broadcast %cst_34 : f32 to vector<8x32xf32>
    %55 = vector.extract_strided_slice %51 {offsets = [0, 0], sizes = [8, 16], strides = [1, 1]} : vector<8x96xf32> to vector<8x16xf32>
    %56 = vector.extract_strided_slice %51 {offsets = [0, 32], sizes = [8, 16], strides = [1, 1]} : vector<8x96xf32> to vector<8x16xf32>
    %57 = vector.extract_strided_slice %51 {offsets = [0, 64], sizes = [8, 16], strides = [1, 1]} : vector<8x96xf32> to vector<8x16xf32>
    %cst_35 = arith.constant dense<0.000000e+00> : vector<8x8xf32>
    %58 = tpu.matmul %55, %56, %cst_35 {dimension_numbers = #tpu.dot_dimension_numbers<[1], [1], [0], [0], [0, 0, 1, 0], [], []>} : vector<8x16xf32>, vector<8x16xf32>, vector<8x8xf32> -> vector<8x8xf32>
    %59 = vector.broadcast %44 : vector<1x8xf32> to vector<8x8xf32>
    %60 = arith.addf %58, %59 : vector<8x8xf32>
    %cst_36 = arith.constant dense<0xFF800000> : vector<8xf32>
    %61 = vector.multi_reduction <maximumf>, %60, %cst_36 [1] : vector<8x8xf32> to vector<8xf32>
    %62 = vector.shape_cast %61 : vector<8xf32> to vector<8x1xf32>
    %63 = vector.broadcast %62 : vector<8x1xf32> to vector<8x8xf32>
    %64 = arith.subf %60, %63 : vector<8x8xf32>
    %65 = math.exp %64 : vector<8x8xf32>
    %cst_37 = arith.constant dense<0.000000e+00> : vector<8xf32>
    %66 = vector.multi_reduction <add>, %65, %cst_37 [1] : vector<8x8xf32> to vector<8xf32>
    %67 = vector.shape_cast %66 : vector<8xf32> to vector<8x1xf32>
    %68 = tpu.reciprocal %67 {approx = true} : vector<8x1xf32> -> vector<8x1xf32>
    %69 = vector.broadcast %68 : vector<8x1xf32> to vector<8x8xf32>
    %70 = arith.mulf %65, %69 : vector<8x8xf32>
    %cst_38 = arith.constant dense<0.000000e+00> : vector<8x16xf32>
    %71 = tpu.matmul %70, %57, %cst_38 {dimension_numbers = #tpu.dot_dimension_numbers<[1], [0], [0], [1], [0, 0, 1, 1], [], []>} : vector<8x8xf32>, vector<8x16xf32>, vector<8x16xf32> -> vector<8x16xf32>
    %72 = vector.extract_strided_slice %53 {offsets = [0, 0], sizes = [16, 32], strides = [1, 1]} : vector<32x32xf32> to vector<16x32xf32>
    %cst_39 = arith.constant dense<0.000000e+00> : vector<8x32xf32>
    %73 = tpu.matmul %71, %72, %cst_39 {dimension_numbers = #tpu.dot_dimension_numbers<[1], [0], [0], [1], [0, 0, 1, 1], [], []>} : vector<8x16xf32>, vector<16x32xf32>, vector<8x32xf32> -> vector<8x32xf32>
    %74 = arith.addf %54, %73 : vector<8x32xf32>
    %75 = vector.extract_strided_slice %51 {offsets = [0, 16], sizes = [8, 16], strides = [1, 1]} : vector<8x96xf32> to vector<8x16xf32>
    %76 = vector.extract_strided_slice %51 {offsets = [0, 48], sizes = [8, 16], strides = [1, 1]} : vector<8x96xf32> to vector<8x16xf32>
    %77 = vector.extract_strided_slice %51 {offsets = [0, 80], sizes = [8, 16], strides = [1, 1]} : vector<8x96xf32> to vector<8x16xf32>
    %cst_40 = arith.constant dense<0.000000e+00> : vector<8x8xf32>
    %78 = tpu.matmul %75, %76, %cst_40 {dimension_numbers = #tpu.dot_dimension_numbers<[1], [1], [0], [0], [0, 0, 1, 0], [], []>} : vector<8x16xf32>, vector<8x16xf32>, vector<8x8xf32> -> vector<8x8xf32>
    %79 = vector.broadcast %44 : vector<1x8xf32> to vector<8x8xf32>
    %80 = arith.addf %78, %79 : vector<8x8xf32>
    %cst_41 = arith.constant dense<0xFF800000> : vector<8xf32>
    %81 = vector.multi_reduction <maximumf>, %80, %cst_41 [1] : vector<8x8xf32> to vector<8xf32>
    %82 = vector.shape_cast %81 : vector<8xf32> to vector<8x1xf32>
    %83 = vector.broadcast %82 : vector<8x1xf32> to vector<8x8xf32>
    %84 = arith.subf %80, %83 : vector<8x8xf32>
    %85 = math.exp %84 : vector<8x8xf32>
    %cst_42 = arith.constant dense<0.000000e+00> : vector<8xf32>
    %86 = vector.multi_reduction <add>, %85, %cst_42 [1] : vector<8x8xf32> to vector<8xf32>
    %87 = vector.shape_cast %86 : vector<8xf32> to vector<8x1xf32>
    %88 = tpu.reciprocal %87 {approx = true} : vector<8x1xf32> -> vector<8x1xf32>
    %89 = vector.broadcast %88 : vector<8x1xf32> to vector<8x8xf32>
    %90 = arith.mulf %85, %89 : vector<8x8xf32>
    %cst_43 = arith.constant dense<0.000000e+00> : vector<8x16xf32>
    %91 = tpu.matmul %90, %77, %cst_43 {dimension_numbers = #tpu.dot_dimension_numbers<[1], [0], [0], [1], [0, 0, 1, 1], [], []>} : vector<8x8xf32>, vector<8x16xf32>, vector<8x16xf32> -> vector<8x16xf32>
    %92 = vector.extract_strided_slice %53 {offsets = [16, 0], sizes = [16, 32], strides = [1, 1]} : vector<32x32xf32> to vector<16x32xf32>
    %cst_44 = arith.constant dense<0.000000e+00> : vector<8x32xf32>
    %93 = tpu.matmul %91, %92, %cst_44 {dimension_numbers = #tpu.dot_dimension_numbers<[1], [0], [0], [1], [0, 0, 1, 1], [], []>} : vector<8x16xf32>, vector<16x32xf32>, vector<8x32xf32> -> vector<8x32xf32>
    %94 = arith.addf %74, %93 : vector<8x32xf32>
    %c0_45 = arith.constant 0 : index
    %c0_46 = arith.constant 0 : index
    %c0_47 = arith.constant 0 : index
    %95 = vector.load %arg11[%c0_45, %c0_46, %c0_47] : memref<2x1x32xf32, #tpu.memory_space<vmem>>, vector<1x1x32xf32>
    %96 = vector.shape_cast %95 : vector<1x1x32xf32> to vector<1x32xf32>
    %97 = vector.broadcast %96 : vector<1x32xf32> to vector<8x32xf32>
    %98 = arith.addf %94, %97 : vector<8x32xf32>
    %99 = arith.addf %98, %38 : vector<8x32xf32>
    %c0_48 = arith.constant 0 : index
    %c0_49 = arith.constant 0 : index
    %c0_50 = arith.constant 0 : index
    %100 = vector.load %arg12[%c0_48, %c0_49, %c0_50] : memref<2x1x32xf32, #tpu.memory_space<vmem>>, vector<1x1x32xf32>
    %101 = vector.shape_cast %100 : vector<1x1x32xf32> to vector<1x32xf32>
    %c0_51 = arith.constant 0 : index
    %c0_52 = arith.constant 0 : index
    %c0_53 = arith.constant 0 : index
    %102 = vector.load %arg13[%c0_51, %c0_52, %c0_53] : memref<2x1x32xf32, #tpu.memory_space<vmem>>, vector<1x1x32xf32>
    %103 = vector.shape_cast %102 : vector<1x1x32xf32> to vector<1x32xf32>
    %cst_54 = arith.constant dense<0.000000e+00> : vector<8xf32>
    %104 = vector.multi_reduction <add>, %99, %cst_54 [1] : vector<8x32xf32> to vector<8xf32>
    %105 = vector.shape_cast %104 : vector<8xf32> to vector<8x1xf32>
    %cst_55 = arith.constant 3.200000e+01 : f32
    %106 = vector.broadcast %cst_55 : f32 to vector<8x1xf32>
    %107 = arith.divf %105, %106 : vector<8x1xf32>
    %108 = vector.broadcast %107 : vector<8x1xf32> to vector<8x32xf32>
    %109 = arith.subf %99, %108 : vector<8x32xf32>
    %110 = arith.mulf %109, %109 : vector<8x32xf32>
    %cst_56 = arith.constant dense<0.000000e+00> : vector<8xf32>
    %111 = vector.multi_reduction <add>, %110, %cst_56 [1] : vector<8x32xf32> to vector<8xf32>
    %112 = vector.shape_cast %111 : vector<8xf32> to vector<8x1xf32>
    %cst_57 = arith.constant 3.200000e+01 : f32
    %113 = vector.broadcast %cst_57 : f32 to vector<8x1xf32>
    %114 = arith.divf %112, %113 : vector<8x1xf32>
    %115 = vector.broadcast %107 : vector<8x1xf32> to vector<8x32xf32>
    %116 = arith.subf %99, %115 : vector<8x32xf32>
    %cst_58 = arith.constant 9.99999996E-13 : f32
    %117 = vector.broadcast %cst_58 : f32 to vector<8x1xf32>
    %118 = arith.addf %114, %117 : vector<8x1xf32>
    %119 = math.rsqrt %118 : vector<8x1xf32>
    %120 = vector.broadcast %119 : vector<8x1xf32> to vector<8x32xf32>
    %121 = arith.mulf %116, %120 : vector<8x32xf32>
    %122 = vector.broadcast %101 : vector<1x32xf32> to vector<8x32xf32>
    %123 = arith.mulf %121, %122 : vector<8x32xf32>
    %124 = vector.broadcast %103 : vector<1x32xf32> to vector<8x32xf32>
    %125 = arith.addf %123, %124 : vector<8x32xf32>
    %c0_59 = arith.constant 0 : index
    %c0_60 = arith.constant 0 : index
    %c0_61 = arith.constant 0 : index
    %126 = vector.load %arg14[%c0_59, %c0_60, %c0_61] : memref<2x32x64xf32, #tpu.memory_space<vmem>>, vector<1x32x64xf32>
    %127 = vector.shape_cast %126 : vector<1x32x64xf32> to vector<32x64xf32>
    %cst_62 = arith.constant dense<0.000000e+00> : vector<8x64xf32>
    %128 = tpu.matmul %125, %127, %cst_62 {dimension_numbers = #tpu.dot_dimension_numbers<[1], [0], [0], [1], [0, 0, 1, 1], [], []>} : vector<8x32xf32>, vector<32x64xf32>, vector<8x64xf32> -> vector<8x64xf32>
    %c0_63 = arith.constant 0 : index
    %c0_64 = arith.constant 0 : index
    %c0_65 = arith.constant 0 : index
    %129 = vector.load %arg15[%c0_63, %c0_64, %c0_65] : memref<2x1x64xf32, #tpu.memory_space<vmem>>, vector<1x1x64xf32>
    %130 = vector.shape_cast %129 : vector<1x1x64xf32> to vector<1x64xf32>
    %131 = vector.broadcast %130 : vector<1x64xf32> to vector<8x64xf32>
    %132 = arith.addf %128, %131 : vector<8x64xf32>
    %cst_66 = arith.constant 5.000000e-01 : f32
    %133 = vector.broadcast %cst_66 : f32 to vector<8x64xf32>
    %134 = arith.mulf %133, %132 : vector<8x64xf32>
    %cst_67 = arith.constant 4.471500e-02 : f32
    %135 = vector.broadcast %cst_67 : f32 to vector<8x64xf32>
    %136 = arith.mulf %135, %132 : vector<8x64xf32>
    %137 = arith.mulf %136, %132 : vector<8x64xf32>
    %138 = arith.mulf %137, %132 : vector<8x64xf32>
    %139 = arith.addf %132, %138 : vector<8x64xf32>
    %cst_68 = arith.constant 0.797884583 : f32
    %140 = vector.broadcast %cst_68 : f32 to vector<8x64xf32>
    %141 = arith.mulf %140, %139 : vector<8x64xf32>
    %142 = math.tanh %141 : vector<8x64xf32>
    %cst_69 = arith.constant 1.000000e+00 : f32
    %143 = vector.broadcast %cst_69 : f32 to vector<8x64xf32>
    %144 = arith.addf %143, %142 : vector<8x64xf32>
    %145 = arith.mulf %134, %144 : vector<8x64xf32>
    %c0_70 = arith.constant 0 : index
    %c0_71 = arith.constant 0 : index
    %c0_72 = arith.constant 0 : index
    %146 = vector.load %arg16[%c0_70, %c0_71, %c0_72] : memref<2x64x32xf32, #tpu.memory_space<vmem>>, vector<1x64x32xf32>
    %147 = vector.shape_cast %146 : vector<1x64x32xf32> to vector<64x32xf32>
    %cst_73 = arith.constant dense<0.000000e+00> : vector<8x32xf32>
    %148 = tpu.matmul %145, %147, %cst_73 {dimension_numbers = #tpu.dot_dimension_numbers<[1], [0], [0], [1], [0, 0, 1, 1], [], []>} : vector<8x64xf32>, vector<64x32xf32>, vector<8x32xf32> -> vector<8x32xf32>
    %c0_74 = arith.constant 0 : index
    %c0_75 = arith.constant 0 : index
    %c0_76 = arith.constant 0 : index
    %149 = vector.load %arg17[%c0_74, %c0_75, %c0_76] : memref<2x1x32xf32, #tpu.memory_space<vmem>>, vector<1x1x32xf32>
    %150 = vector.shape_cast %149 : vector<1x1x32xf32> to vector<1x32xf32>
    %151 = vector.broadcast %150 : vector<1x32xf32> to vector<8x32xf32>
    %152 = arith.addf %148, %151 : vector<8x32xf32>
    %153 = arith.addf %152, %125 : vector<8x32xf32>
    %c0_77 = arith.constant 0 : index
    %c0_78 = arith.constant 0 : index
    %c0_79 = arith.constant 0 : index
    %154 = vector.load %arg18[%c0_77, %c0_78, %c0_79] : memref<2x1x32xf32, #tpu.memory_space<vmem>>, vector<1x1x32xf32>
    %155 = vector.shape_cast %154 : vector<1x1x32xf32> to vector<1x32xf32>
    %c0_80 = arith.constant 0 : index
    %c0_81 = arith.constant 0 : index
    %c0_82 = arith.constant 0 : index
    %156 = vector.load %arg19[%c0_80, %c0_81, %c0_82] : memref<2x1x32xf32, #tpu.memory_space<vmem>>, vector<1x1x32xf32>
    %157 = vector.shape_cast %156 : vector<1x1x32xf32> to vector<1x32xf32>
    %cst_83 = arith.constant dense<0.000000e+00> : vector<8xf32>
    %158 = vector.multi_reduction <add>, %153, %cst_83 [1] : vector<8x32xf32> to vector<8xf32>
    %159 = vector.shape_cast %158 : vector<8xf32> to vector<8x1xf32>
    %cst_84 = arith.constant 3.200000e+01 : f32
    %160 = vector.broadcast %cst_84 : f32 to vector<8x1xf32>
    %161 = arith.divf %159, %160 : vector<8x1xf32>
    %162 = vector.broadcast %161 : vector<8x1xf32> to vector<8x32xf32>
    %163 = arith.subf %153, %162 : vector<8x32xf32>
    %164 = arith.mulf %163, %163 : vector<8x32xf32>
    %cst_85 = arith.constant dense<0.000000e+00> : vector<8xf32>
    %165 = vector.multi_reduction <add>, %164, %cst_85 [1] : vector<8x32xf32> to vector<8xf32>
    %166 = vector.shape_cast %165 : vector<8xf32> to vector<8x1xf32>
    %cst_86 = arith.constant 3.200000e+01 : f32
    %167 = vector.broadcast %cst_86 : f32 to vector<8x1xf32>
    %168 = arith.divf %166, %167 : vector<8x1xf32>
    %169 = vector.broadcast %161 : vector<8x1xf32> to vector<8x32xf32>
    %170 = arith.subf %153, %169 : vector<8x32xf32>
    %cst_87 = arith.constant 9.99999996E-13 : f32
    %171 = vector.broadcast %cst_87 : f32 to vector<8x1xf32>
    %172 = arith.addf %168, %171 : vector<8x1xf32>
    %173 = math.rsqrt %172 : vector<8x1xf32>
    %174 = vector.broadcast %173 : vector<8x1xf32> to vector<8x32xf32>
    %175 = arith.mulf %170, %174 : vector<8x32xf32>
    %176 = vector.broadcast %155 : vector<1x32xf32> to vector<8x32xf32>
    %177 = arith.mulf %175, %176 : vector<8x32xf32>
    %178 = vector.broadcast %157 : vector<1x32xf32> to vector<8x32xf32>
    %179 = arith.addf %177, %178 : vector<8x32xf32>
    %c1 = arith.constant 1 : index
    %c0_88 = arith.constant 0 : index
    %c0_89 = arith.constant 0 : index
    %180 = vector.load %arg8[%c1, %c0_88, %c0_89] : memref<2x32x96xf32, #tpu.memory_space<vmem>>, vector<1x32x96xf32>
    %181 = vector.shape_cast %180 : vector<1x32x96xf32> to vector<32x96xf32>
    %cst_90 = arith.constant dense<0.000000e+00> : vector<8x96xf32>
    %182 = tpu.matmul %179, %181, %cst_90 {dimension_numbers = #tpu.dot_dimension_numbers<[1], [0], [0], [1], [0, 0, 1, 1], [], []>} : vector<8x32xf32>, vector<32x96xf32>, vector<8x96xf32> -> vector<8x96xf32>
    %c1_91 = arith.constant 1 : index
    %c0_92 = arith.constant 0 : index
    %c0_93 = arith.constant 0 : index
    %183 = vector.load %arg9[%c1_91, %c0_92, %c0_93] : memref<2x1x96xf32, #tpu.memory_space<vmem>>, vector<1x1x96xf32>
    %184 = vector.shape_cast %183 : vector<1x1x96xf32> to vector<1x96xf32>
    %185 = vector.broadcast %184 : vector<1x96xf32> to vector<8x96xf32>
    %186 = arith.addf %182, %185 : vector<8x96xf32>
    %c1_94 = arith.constant 1 : index
    %c0_95 = arith.constant 0 : index
    %c0_96 = arith.constant 0 : index
    %187 = vector.load %arg10[%c1_94, %c0_95, %c0_96] : memref<2x32x32xf32, #tpu.memory_space<vmem>>, vector<1x32x32xf32>
    %188 = vector.shape_cast %187 : vector<1x32x32xf32> to vector<32x32xf32>
    %cst_97 = arith.constant 0.000000e+00 : f32
    %189 = vector.broadcast %cst_97 : f32 to vector<8x32xf32>
    %190 = vector.extract_strided_slice %186 {offsets = [0, 0], sizes = [8, 16], strides = [1, 1]} : vector<8x96xf32> to vector<8x16xf32>
    %191 = vector.extract_strided_slice %186 {offsets = [0, 32], sizes = [8, 16], strides = [1, 1]} : vector<8x96xf32> to vector<8x16xf32>
    %192 = vector.extract_strided_slice %186 {offsets = [0, 64], sizes = [8, 16], strides = [1, 1]} : vector<8x96xf32> to vector<8x16xf32>
    %cst_98 = arith.constant dense<0.000000e+00> : vector<8x8xf32>
    %193 = tpu.matmul %190, %191, %cst_98 {dimension_numbers = #tpu.dot_dimension_numbers<[1], [1], [0], [0], [0, 0, 1, 0], [], []>} : vector<8x16xf32>, vector<8x16xf32>, vector<8x8xf32> -> vector<8x8xf32>
    %194 = vector.broadcast %44 : vector<1x8xf32> to vector<8x8xf32>
    %195 = arith.addf %193, %194 : vector<8x8xf32>
    %cst_99 = arith.constant dense<0xFF800000> : vector<8xf32>
    %196 = vector.multi_reduction <maximumf>, %195, %cst_99 [1] : vector<8x8xf32> to vector<8xf32>
    %197 = vector.shape_cast %196 : vector<8xf32> to vector<8x1xf32>
    %198 = vector.broadcast %197 : vector<8x1xf32> to vector<8x8xf32>
    %199 = arith.subf %195, %198 : vector<8x8xf32>
    %200 = math.exp %199 : vector<8x8xf32>
    %cst_100 = arith.constant dense<0.000000e+00> : vector<8xf32>
    %201 = vector.multi_reduction <add>, %200, %cst_100 [1] : vector<8x8xf32> to vector<8xf32>
    %202 = vector.shape_cast %201 : vector<8xf32> to vector<8x1xf32>
    %203 = tpu.reciprocal %202 {approx = true} : vector<8x1xf32> -> vector<8x1xf32>
    %204 = vector.broadcast %203 : vector<8x1xf32> to vector<8x8xf32>
    %205 = arith.mulf %200, %204 : vector<8x8xf32>
    %cst_101 = arith.constant dense<0.000000e+00> : vector<8x16xf32>
    %206 = tpu.matmul %205, %192, %cst_101 {dimension_numbers = #tpu.dot_dimension_numbers<[1], [0], [0], [1], [0, 0, 1, 1], [], []>} : vector<8x8xf32>, vector<8x16xf32>, vector<8x16xf32> -> vector<8x16xf32>
    %207 = vector.extract_strided_slice %188 {offsets = [0, 0], sizes = [16, 32], strides = [1, 1]} : vector<32x32xf32> to vector<16x32xf32>
    %cst_102 = arith.constant dense<0.000000e+00> : vector<8x32xf32>
    %208 = tpu.matmul %206, %207, %cst_102 {dimension_numbers = #tpu.dot_dimension_numbers<[1], [0], [0], [1], [0, 0, 1, 1], [], []>} : vector<8x16xf32>, vector<16x32xf32>, vector<8x32xf32> -> vector<8x32xf32>
    %209 = arith.addf %189, %208 : vector<8x32xf32>
    %210 = vector.extract_strided_slice %186 {offsets = [0, 16], sizes = [8, 16], strides = [1, 1]} : vector<8x96xf32> to vector<8x16xf32>
    %211 = vector.extract_strided_slice %186 {offsets = [0, 48], sizes = [8, 16], strides = [1, 1]} : vector<8x96xf32> to vector<8x16xf32>
    %212 = vector.extract_strided_slice %186 {offsets = [0, 80], sizes = [8, 16], strides = [1, 1]} : vector<8x96xf32> to vector<8x16xf32>
    %cst_103 = arith.constant dense<0.000000e+00> : vector<8x8xf32>
    %213 = tpu.matmul %210, %211, %cst_103 {dimension_numbers = #tpu.dot_dimension_numbers<[1], [1], [0], [0], [0, 0, 1, 0], [], []>} : vector<8x16xf32>, vector<8x16xf32>, vector<8x8xf32> -> vector<8x8xf32>
    %214 = vector.broadcast %44 : vector<1x8xf32> to vector<8x8xf32>
    %215 = arith.addf %213, %214 : vector<8x8xf32>
    %cst_104 = arith.constant dense<0xFF800000> : vector<8xf32>
    %216 = vector.multi_reduction <maximumf>, %215, %cst_104 [1] : vector<8x8xf32> to vector<8xf32>
    %217 = vector.shape_cast %216 : vector<8xf32> to vector<8x1xf32>
    %218 = vector.broadcast %217 : vector<8x1xf32> to vector<8x8xf32>
    %219 = arith.subf %215, %218 : vector<8x8xf32>
    %220 = math.exp %219 : vector<8x8xf32>
    %cst_105 = arith.constant dense<0.000000e+00> : vector<8xf32>
    %221 = vector.multi_reduction <add>, %220, %cst_105 [1] : vector<8x8xf32> to vector<8xf32>
    %222 = vector.shape_cast %221 : vector<8xf32> to vector<8x1xf32>
    %223 = tpu.reciprocal %222 {approx = true} : vector<8x1xf32> -> vector<8x1xf32>
    %224 = vector.broadcast %223 : vector<8x1xf32> to vector<8x8xf32>
    %225 = arith.mulf %220, %224 : vector<8x8xf32>
    %cst_106 = arith.constant dense<0.000000e+00> : vector<8x16xf32>
    %226 = tpu.matmul %225, %212, %cst_106 {dimension_numbers = #tpu.dot_dimension_numbers<[1], [0], [0], [1], [0, 0, 1, 1], [], []>} : vector<8x8xf32>, vector<8x16xf32>, vector<8x16xf32> -> vector<8x16xf32>
    %227 = vector.extract_strided_slice %188 {offsets = [16, 0], sizes = [16, 32], strides = [1, 1]} : vector<32x32xf32> to vector<16x32xf32>
    %cst_107 = arith.constant dense<0.000000e+00> : vector<8x32xf32>
    %228 = tpu.matmul %226, %227, %cst_107 {dimension_numbers = #tpu.dot_dimension_numbers<[1], [0], [0], [1], [0, 0, 1, 1], [], []>} : vector<8x16xf32>, vector<16x32xf32>, vector<8x32xf32> -> vector<8x32xf32>
    %229 = arith.addf %209, %228 : vector<8x32xf32>
    %c1_108 = arith.constant 1 : index
    %c0_109 = arith.constant 0 : index
    %c0_110 = arith.constant 0 : index
    %230 = vector.load %arg11[%c1_108, %c0_109, %c0_110] : memref<2x1x32xf32, #tpu.memory_space<vmem>>, vector<1x1x32xf32>
    %231 = vector.shape_cast %230 : vector<1x1x32xf32> to vector<1x32xf32>
    %232 = vector.broadcast %231 : vector<1x32xf32> to vector<8x32xf32>
    %233 = arith.addf %229, %232 : vector<8x32xf32>
    %234 = arith.addf %233, %179 : vector<8x32xf32>
    %c1_111 = arith.constant 1 : index
    %c0_112 = arith.constant 0 : index
    %c0_113 = arith.constant 0 : index
    %235 = vector.load %arg12[%c1_111, %c0_112, %c0_113] : memref<2x1x32xf32, #tpu.memory_space<vmem>>, vector<1x1x32xf32>
    %236 = vector.shape_cast %235 : vector<1x1x32xf32> to vector<1x32xf32>
    %c1_114 = arith.constant 1 : index
    %c0_115 = arith.constant 0 : index
    %c0_116 = arith.constant 0 : index
    %237 = vector.load %arg13[%c1_114, %c0_115, %c0_116] : memref<2x1x32xf32, #tpu.memory_space<vmem>>, vector<1x1x32xf32>
    %238 = vector.shape_cast %237 : vector<1x1x32xf32> to vector<1x32xf32>
    %cst_117 = arith.constant dense<0.000000e+00> : vector<8xf32>
    %239 = vector.multi_reduction <add>, %234, %cst_117 [1] : vector<8x32xf32> to vector<8xf32>
    %240 = vector.shape_cast %239 : vector<8xf32> to vector<8x1xf32>
    %cst_118 = arith.constant 3.200000e+01 : f32
    %241 = vector.broadcast %cst_118 : f32 to vector<8x1xf32>
    %242 = arith.divf %240, %241 : vector<8x1xf32>
    %243 = vector.broadcast %242 : vector<8x1xf32> to vector<8x32xf32>
    %244 = arith.subf %234, %243 : vector<8x32xf32>
    %245 = arith.mulf %244, %244 : vector<8x32xf32>
    %cst_119 = arith.constant dense<0.000000e+00> : vector<8xf32>
    %246 = vector.multi_reduction <add>, %245, %cst_119 [1] : vector<8x32xf32> to vector<8xf32>
    %247 = vector.shape_cast %246 : vector<8xf32> to vector<8x1xf32>
    %cst_120 = arith.constant 3.200000e+01 : f32
    %248 = vector.broadcast %cst_120 : f32 to vector<8x1xf32>
    %249 = arith.divf %247, %248 : vector<8x1xf32>
    %250 = vector.broadcast %242 : vector<8x1xf32> to vector<8x32xf32>
    %251 = arith.subf %234, %250 : vector<8x32xf32>
    %cst_121 = arith.constant 9.99999996E-13 : f32
    %252 = vector.broadcast %cst_121 : f32 to vector<8x1xf32>
    %253 = arith.addf %249, %252 : vector<8x1xf32>
    %254 = math.rsqrt %253 : vector<8x1xf32>
    %255 = vector.broadcast %254 : vector<8x1xf32> to vector<8x32xf32>
    %256 = arith.mulf %251, %255 : vector<8x32xf32>
    %257 = vector.broadcast %236 : vector<1x32xf32> to vector<8x32xf32>
    %258 = arith.mulf %256, %257 : vector<8x32xf32>
    %259 = vector.broadcast %238 : vector<1x32xf32> to vector<8x32xf32>
    %260 = arith.addf %258, %259 : vector<8x32xf32>
    %c1_122 = arith.constant 1 : index
    %c0_123 = arith.constant 0 : index
    %c0_124 = arith.constant 0 : index
    %261 = vector.load %arg14[%c1_122, %c0_123, %c0_124] : memref<2x32x64xf32, #tpu.memory_space<vmem>>, vector<1x32x64xf32>
    %262 = vector.shape_cast %261 : vector<1x32x64xf32> to vector<32x64xf32>
    %cst_125 = arith.constant dense<0.000000e+00> : vector<8x64xf32>
    %263 = tpu.matmul %260, %262, %cst_125 {dimension_numbers = #tpu.dot_dimension_numbers<[1], [0], [0], [1], [0, 0, 1, 1], [], []>} : vector<8x32xf32>, vector<32x64xf32>, vector<8x64xf32> -> vector<8x64xf32>
    %c1_126 = arith.constant 1 : index
    %c0_127 = arith.constant 0 : index
    %c0_128 = arith.constant 0 : index
    %264 = vector.load %arg15[%c1_126, %c0_127, %c0_128] : memref<2x1x64xf32, #tpu.memory_space<vmem>>, vector<1x1x64xf32>
    %265 = vector.shape_cast %264 : vector<1x1x64xf32> to vector<1x64xf32>
    %266 = vector.broadcast %265 : vector<1x64xf32> to vector<8x64xf32>
    %267 = arith.addf %263, %266 : vector<8x64xf32>
    %cst_129 = arith.constant 5.000000e-01 : f32
    %268 = vector.broadcast %cst_129 : f32 to vector<8x64xf32>
    %269 = arith.mulf %268, %267 : vector<8x64xf32>
    %cst_130 = arith.constant 4.471500e-02 : f32
    %270 = vector.broadcast %cst_130 : f32 to vector<8x64xf32>
    %271 = arith.mulf %270, %267 : vector<8x64xf32>
    %272 = arith.mulf %271, %267 : vector<8x64xf32>
    %273 = arith.mulf %272, %267 : vector<8x64xf32>
    %274 = arith.addf %267, %273 : vector<8x64xf32>
    %cst_131 = arith.constant 0.797884583 : f32
    %275 = vector.broadcast %cst_131 : f32 to vector<8x64xf32>
    %276 = arith.mulf %275, %274 : vector<8x64xf32>
    %277 = math.tanh %276 : vector<8x64xf32>
    %cst_132 = arith.constant 1.000000e+00 : f32
    %278 = vector.broadcast %cst_132 : f32 to vector<8x64xf32>
    %279 = arith.addf %278, %277 : vector<8x64xf32>
    %280 = arith.mulf %269, %279 : vector<8x64xf32>
    %c1_133 = arith.constant 1 : index
    %c0_134 = arith.constant 0 : index
    %c0_135 = arith.constant 0 : index
    %281 = vector.load %arg16[%c1_133, %c0_134, %c0_135] : memref<2x64x32xf32, #tpu.memory_space<vmem>>, vector<1x64x32xf32>
    %282 = vector.shape_cast %281 : vector<1x64x32xf32> to vector<64x32xf32>
    %cst_136 = arith.constant dense<0.000000e+00> : vector<8x32xf32>
    %283 = tpu.matmul %280, %282, %cst_136 {dimension_numbers = #tpu.dot_dimension_numbers<[1], [0], [0], [1], [0, 0, 1, 1], [], []>} : vector<8x64xf32>, vector<64x32xf32>, vector<8x32xf32> -> vector<8x32xf32>
    %c1_137 = arith.constant 1 : index
    %c0_138 = arith.constant 0 : index
    %c0_139 = arith.constant 0 : index
    %284 = vector.load %arg17[%c1_137, %c0_138, %c0_139] : memref<2x1x32xf32, #tpu.memory_space<vmem>>, vector<1x1x32xf32>
    %285 = vector.shape_cast %284 : vector<1x1x32xf32> to vector<1x32xf32>
    %286 = vector.broadcast %285 : vector<1x32xf32> to vector<8x32xf32>
    %287 = arith.addf %283, %286 : vector<8x32xf32>
    %288 = arith.addf %287, %260 : vector<8x32xf32>
    %c1_140 = arith.constant 1 : index
    %c0_141 = arith.constant 0 : index
    %c0_142 = arith.constant 0 : index
    %289 = vector.load %arg18[%c1_140, %c0_141, %c0_142] : memref<2x1x32xf32, #tpu.memory_space<vmem>>, vector<1x1x32xf32>
    %290 = vector.shape_cast %289 : vector<1x1x32xf32> to vector<1x32xf32>
    %c1_143 = arith.constant 1 : index
    %c0_144 = arith.constant 0 : index
    %c0_145 = arith.constant 0 : index
    %291 = vector.load %arg19[%c1_143, %c0_144, %c0_145] : memref<2x1x32xf32, #tpu.memory_space<vmem>>, vector<1x1x32xf32>
    %292 = vector.shape_cast %291 : vector<1x1x32xf32> to vector<1x32xf32>
    %cst_146 = arith.constant dense<0.000000e+00> : vector<8xf32>
    %293 = vector.multi_reduction <add>, %288, %cst_146 [1] : vector<8x32xf32> to vector<8xf32>
    %294 = vector.shape_cast %293 : vector<8xf32> to vector<8x1xf32>
    %cst_147 = arith.constant 3.200000e+01 : f32
    %295 = vector.broadcast %cst_147 : f32 to vector<8x1xf32>
    %296 = arith.divf %294, %295 : vector<8x1xf32>
    %297 = vector.broadcast %296 : vector<8x1xf32> to vector<8x32xf32>
    %298 = arith.subf %288, %297 : vector<8x32xf32>
    %299 = arith.mulf %298, %298 : vector<8x32xf32>
    %cst_148 = arith.constant dense<0.000000e+00> : vector<8xf32>
    %300 = vector.multi_reduction <add>, %299, %cst_148 [1] : vector<8x32xf32> to vector<8xf32>
    %301 = vector.shape_cast %300 : vector<8xf32> to vector<8x1xf32>
    %cst_149 = arith.constant 3.200000e+01 : f32
    %302 = vector.broadcast %cst_149 : f32 to vector<8x1xf32>
    %303 = arith.divf %301, %302 : vector<8x1xf32>
    %304 = vector.broadcast %296 : vector<8x1xf32> to vector<8x32xf32>
    %305 = arith.subf %288, %304 : vector<8x32xf32>
    %cst_150 = arith.constant 9.99999996E-13 : f32
    %306 = vector.broadcast %cst_150 : f32 to vector<8x1xf32>
    %307 = arith.addf %303, %306 : vector<8x1xf32>
    %308 = math.rsqrt %307 : vector<8x1xf32>
    %309 = vector.broadcast %308 : vector<8x1xf32> to vector<8x32xf32>
    %310 = arith.mulf %305, %309 : vector<8x32xf32>
    %311 = vector.broadcast %290 : vector<1x32xf32> to vector<8x32xf32>
    %312 = arith.mulf %310, %311 : vector<8x32xf32>
    %313 = vector.broadcast %292 : vector<1x32xf32> to vector<8x32xf32>
    %314 = arith.addf %312, %313 : vector<8x32xf32>
    %315 = vector.extract_strided_slice %314 {offsets = [0, 0], sizes = [1, 32], strides = [1, 1]} : vector<8x32xf32> to vector<1x32xf32>
    %c0_151 = arith.constant 0 : index
    %c0_152 = arith.constant 0 : index
    %316 = vector.load %arg20[%c0_151, %c0_152] : memref<32x32xf32, #tpu.memory_space<vmem>>, vector<32x32xf32>
    %cst_153 = arith.constant dense<0.000000e+00> : vector<1x32xf32>
    %317 = tpu.matmul %315, %316, %cst_153 {dimension_numbers = #tpu.dot_dimension_numbers<[1], [0], [0], [1], [0, 0, 1, 1], [], []>} : vector<1x32xf32>, vector<32x32xf32>, vector<1x32xf32> -> vector<1x32xf32>
    %c0_154 = arith.constant 0 : index
    %c0_155 = arith.constant 0 : index
    %318 = vector.load %arg21[%c0_154, %c0_155] : memref<1x32xf32, #tpu.memory_space<vmem>>, vector<1x32xf32>
    %319 = arith.addf %317, %318 : vector<1x32xf32>
    %320 = math.tanh %319 : vector<1x32xf32>
    %c0_156 = arith.constant 0 : index
    %c0_157 = arith.constant 0 : index
    %321 = vector.load %arg22[%c0_156, %c0_157] : memref<32x128xf32, #tpu.memory_space<vmem>>, vector<32x128xf32>
    %cst_158 = arith.constant dense<0.000000e+00> : vector<1x128xf32>
    %322 = tpu.matmul %320, %321, %cst_158 {dimension_numbers = #tpu.dot_dimension_numbers<[1], [0], [0], [1], [0, 0, 1, 1], [], []>} : vector<1x32xf32>, vector<32x128xf32>, vector<1x128xf32> -> vector<1x128xf32>
    %c0_159 = arith.constant 0 : index
    %c0_160 = arith.constant 0 : index
    %323 = vector.load %arg23[%c0_159, %c0_160] : memref<1x128xf32, #tpu.memory_space<vmem>>, vector<1x128xf32>
    %324 = arith.addf %322, %323 : vector<1x128xf32>
    %c0_161 = arith.constant 0 : index
    %c0_162 = arith.constant 0 : index
    %c0_163 = arith.constant 0 : index
    %325 = vector.load %arg24[%c0_161, %c0_162, %c0_163] : memref<1x1x128xf32, #tpu.memory_space<vmem>>, vector<1x1x128xf32>
    %326 = vector.shape_cast %325 : vector<1x1x128xf32> to vector<1x128xf32>
    %327 = vector.shape_cast %324 : vector<1x128xf32> to vector<1x1x128xf32>
    tpu.vector_store %arg24[%c0_161, %c0_162, %c0_163], %327 {strides = array<i32>} : memref<1x1x128xf32, #tpu.memory_space<vmem>>, vector<1x1x128xf32>,
    return
  }
  func.func @transform_0(%arg0: i32) -> (i32, i32, i32) {
    %c0_i32 = arith.constant 0 : i32
    %c0_i32_0 = arith.constant 0 : i32
    %c0_i32_1 = arith.constant 0 : i32
    return %arg0, %c0_i32, %c0_i32_0 : i32, i32, i32
  }
  func.func @transform_1(%arg0: i32) -> (i32, i32, i32) {
    %c0_i32 = arith.constant 0 : i32
    %c0_i32_0 = arith.constant 0 : i32
    %c0_i32_1 = arith.constant 0 : i32
    return %arg0, %c0_i32, %c0_i32_0 : i32, i32, i32
  }
  func.func @transform_2(%arg0: i32) -> (i32, i32) {
    %c0_i32 = arith.constant 0 : i32
    %c0_i32_0 = arith.constant 0 : i32
    %c0_i32_1 = arith.constant 0 : i32
    return %c0_i32, %c0_i32_0 : i32, i32
  }
  func.func @transform_3(%arg0: i32) -> (i32, i32) {
    %c0_i32 = arith.constant 0 : i32
    %c0_i32_0 = arith.constant 0 : i32
    %c0_i32_1 = arith.constant 0 : i32
    return %c0_i32, %c0_i32_0 : i32, i32
  }
  func.func @transform_4(%arg0: i32) -> (i32, i32) {
    %c0_i32 = arith.constant 0 : i32
    %c0_i32_0 = arith.constant 0 : i32
    %c0_i32_1 = arith.constant 0 : i32
    return %c0_i32, %c0_i32_0 : i32, i32
  }
  func.func @transform_5(%arg0: i32) -> (i32, i32) {
    %c0_i32 = arith.constant 0 : i32
    %c0_i32_0 = arith.constant 0 : i32
    %c0_i32_1 = arith.constant 0 : i32
    return %c0_i32, %c0_i32_0 : i32, i32
  }
  func.func @transform_6(%arg0: i32) -> (i32, i32) {
    %c0_i32 = arith.constant 0 : i32
    %c0_i32_0 = arith.constant 0 : i32
    %c0_i32_1 = arith.constant 0 : i32
    return %c0_i32, %c0_i32_0 : i32, i32
  }
  func.func @transform_7(%arg0: i32) -> (i32, i32, i32) {
    %c0_i32 = arith.constant 0 : i32
    %c0_i32_0 = arith.constant 0 : i32
    %c0_i32_1 = arith.constant 0 : i32
    %c0_i32_2 = arith.constant 0 : i32
    return %c0_i32, %c0_i32_0, %c0_i32_1 : i32, i32, i32
  }
  func.func @transform_8(%arg0: i32) -> (i32, i32, i32) {
    %c0_i32 = arith.constant 0 : i32
    %c0_i32_0 = arith.constant 0 : i32
    %c0_i32_1 = arith.constant 0 : i32
    %c0_i32_2 = arith.constant 0 : i32
    return %c0_i32, %c0_i32_0, %c0_i32_1 : i32, i32, i32
  }
  func.func @transform_9(%arg0: i32) -> (i32, i32, i32) {
    %c0_i32 = arith.constant 0 : i32
    %c0_i32_0 = arith.constant 0 : i32
    %c0_i32_1 = arith.constant 0 : i32
    %c0_i32_2 = arith.constant 0 : i32
    return %c0_i32, %c0_i32_0, %c0_i32_1 : i32, i32, i32
  }
  func.func @transform_10(%arg0: i32) -> (i32, i32, i32) {
    %c0_i32 = arith.constant 0 : i32
    %c0_i32_0 = arith.constant 0 : i32
    %c0_i32_1 = arith.constant 0 : i32
    %c0_i32_2 = arith.constant 0 : i32
    return %c0_i32, %c0_i32_0, %c0_i32_1 : i32, i32, i32
  }
  func.func @transform_11(%arg0: i32) -> (i32, i32, i32) {
    %c0_i32 = arith.constant 0 : i32
    %c0_i32_0 = arith.constant 0 : i32
    %c0_i32_1 = arith.constant 0 : i32
    %c0_i32_2 = arith.constant 0 : i32
    return %c0_i32, %c0_i32_0, %c0_i32_1 : i32, i32, i32
  }
  func.func @transform_12(%arg0: i32) -> (i32, i32, i32) {
    %c0_i32 = arith.constant 0 : i32
    %c0_i32_0 = arith.constant 0 : i32
    %c0_i32_1 = arith.constant 0 : i32
    %c0_i32_2 = arith.constant 0 : i32
    return %c0_i32, %c0_i32_0, %c0_i32_1 : i32, i32, i32
  }
  func.func @transform_13(%arg0: i32) -> (i32, i32, i32) {
    %c0_i32 = arith.constant 0 : i32
    %c0_i32_0 = arith.constant 0 : i32
    %c0_i32_1 = arith.constant 0 : i32
    %c0_i32_2 = arith.constant 0 : i32
    return %c0_i32, %c0_i32_0, %c0_i32_1 : i32, i32, i32
  }
  func.func @transform_14(%arg0: i32) -> (i32, i32, i32) {
    %c0_i32 = arith.constant 0 : i32
    %c0_i32_0 = arith.constant 0 : i32
    %c0_i32_1 = arith.constant 0 : i32
    %c0_i32_2 = arith.constant 0 : i32
    return %c0_i32, %c0_i32_0, %c0_i32_1 : i32, i32, i32
  }
  func.func @transform_15(%arg0: i32) -> (i32, i32, i32) {
    %c0_i32 = arith.constant 0 : i32
    %c0_i32_0 = arith.constant 0 : i32
    %c0_i32_1 = arith.constant 0 : i32
    %c0_i32_2 = arith.constant 0 : i32
    return %c0_i32, %c0_i32_0, %c0_i32_1 : i32, i32, i32
  }
  func.func @transform_16(%arg0: i32) -> (i32, i32, i32) {
    %c0_i32 = arith.constant 0 : i32
    %c0_i32_0 = arith.constant 0 : i32
    %c0_i32_1 = arith.constant 0 : i32
    %c0_i32_2 = arith.constant 0 : i32
    return %c0_i32, %c0_i32_0, %c0_i32_1 : i32, i32, i32
  }
  func.func @transform_17(%arg0: i32) -> (i32, i32, i32) {
    %c0_i32 = arith.constant 0 : i32
    %c0_i32_0 = arith.constant 0 : i32
    %c0_i32_1 = arith.constant 0 : i32
    %c0_i32_2 = arith.constant 0 : i32
    return %c0_i32, %c0_i32_0, %c0_i32_1 : i32, i32, i32
  }
  func.func @transform_18(%arg0: i32) -> (i32, i32, i32) {
    %c0_i32 = arith.constant 0 : i32
    %c0_i32_0 = arith.constant 0 : i32
    %c0_i32_1 = arith.constant 0 : i32
    %c0_i32_2 = arith.constant 0 : i32
    return %c0_i32, %c0_i32_0, %c0_i32_1 : i32, i32, i32
  }
  func.func @transform_19(%arg0: i32) -> (i32, i32) {
    %c0_i32 = arith.constant 0 : i32
    %c0_i32_0 = arith.constant 0 : i32
    %c0_i32_1 = arith.constant 0 : i32
    return %c0_i32, %c0_i32_0 : i32, i32
  }
  func.func @transform_20(%arg0: i32) -> (i32, i32) {
    %c0_i32 = arith.constant 0 : i32
    %c0_i32_0 = arith.constant 0 : i32
    %c0_i32_1 = arith.constant 0 : i32
    return %c0_i32, %c0_i32_0 : i32, i32
  }
  func.func @transform_21(%arg0: i32) -> (i32, i32) {
    %c0_i32 = arith.constant 0 : i32
    %c0_i32_0 = arith.constant 0 : i32
    %c0_i32_1 = arith.constant 0 : i32
    return %c0_i32, %c0_i32_0 : i32, i32
  }
  func.func @transform_22(%arg0: i32) -> (i32, i32) {
    %c0_i32 = arith.constant 0 : i32
    %c0_i32_0 = arith.constant 0 : i32
    %c0_i32_1 = arith.constant 0 : i32
    return %c0_i32, %c0_i32_0 : i32, i32
  }
  func.func @transform_23(%arg0: i32) -> (i32, i32, i32) {
    %c0_i32 = arith.constant 0 : i32
    %c0_i32_0 = arith.constant 0 : i32
    %c0_i32_1 = arith.constant 0 : i32
    return %arg0, %c0_i32, %c0_i32_0 : i32, i32, i32
  }
}

</mosaic_0001>

<llo_original>
// kernel: sentiment_classifier_forward.1
$region0: #{sentiment_classifier_forward.1}
  #allocation0 [shape = 'u32[]', space=smem, size = 0x4, offset = 0x4, fixed_abs, tag = 'smem constant byte address 0x4 - core index']
  #allocation1 [shape = 'u32[144,128]{1,0:T(1,128)}', space=vmem, size = 0x12000, scoped, tag = 'internal scratch']
  %s0 = inlined_call_operand.vmem [shape: s32[2,8,1], index: 0, kind: input, shape index: {}]
  %s1 = inlined_call_operand.vmem [shape: f32[2,1,8], index: 1, kind: input, shape index: {}]
  %s2 = inlined_call_operand.vmem [shape: f32[128,32], index: 2, kind: input, shape index: {}]
  %s3 = inlined_call_operand.vmem [shape: f32[16,32], index: 3, kind: input, shape index: {}]
  %s4 = inlined_call_operand.vmem [shape: f32[2,32], index: 4, kind: input, shape index: {}]
  %s5 = inlined_call_operand.vmem [shape: f32[1,32], index: 5, kind: input, shape index: {}]
  %s6 = inlined_call_operand.vmem [shape: f32[1,32], index: 6, kind: input, shape index: {}]
  %s7 = inlined_call_operand.vmem [shape: f32[2,32,96], index: 7, kind: input, shape index: {}]
  %s8 = inlined_call_operand.vmem [shape: f32[2,1,96], index: 8, kind: input, shape index: {}]
  %s9 = inlined_call_operand.vmem [shape: f32[2,32,32], index: 9, kind: input, shape index: {}]
  %s10 = inlined_call_operand.vmem [shape: f32[2,1,32], index: 10, kind: input, shape index: {}]
  %s11 = inlined_call_operand.vmem [shape: f32[2,1,32], index: 11, kind: input, shape index: {}]
  %s12 = inlined_call_operand.vmem [shape: f32[2,1,32], index: 12, kind: input, shape index: {}]
  %s13 = inlined_call_operand.vmem [shape: f32[2,32,64], index: 13, kind: input, shape index: {}]
  %s14 = inlined_call_operand.vmem [shape: f32[2,1,64], index: 14, kind: input, shape index: {}]
  %s15 = inlined_call_operand.vmem [shape: f32[2,64,32], index: 15, kind: input, shape index: {}]
  %s16 = inlined_call_operand.vmem [shape: f32[2,1,32], index: 16, kind: input, shape index: {}]
  %s17 = inlined_call_operand.vmem [shape: f32[2,1,32], index: 17, kind: input, shape index: {}]
  %s18 = inlined_call_operand.vmem [shape: f32[2,1,32], index: 18, kind: input, shape index: {}]
  %s19 = inlined_call_operand.vmem [shape: f32[32,32], index: 19, kind: input, shape index: {}]
  %s20 = inlined_call_operand.vmem [shape: f32[1,32], index: 20, kind: input, shape index: {}]
  %s21 = inlined_call_operand.vmem [shape: f32[32,128], index: 21, kind: input, shape index: {}]
  %s22 = inlined_call_operand.vmem [shape: f32[1,128], index: 22, kind: input, shape index: {}]
  %s23 = inlined_call_operand.hbm [shape: f32[2,1,128], index: 23, kind: output, shape index: {}]
  %s24 = sld [smem:[#allocation0]]
  $region125: #{sentiment_classifier_forward.1} parent=0
    _
  %s26 = ssub.s32 1, %s24
  %s27 = scalar_select 0, %s26, %s24
  $region1: #{sentiment_classifier_forward.1} parent=0
    #allocation2 [shape = 'u8[1024]{0}', space=vmem, size = 0x400, scoped, tag = 'output window, operand 0']
    #allocation3 [shape = 's32[2]{0}', space=sflag, size = 0x8, scoped, tag = 'scoped memory for sentiment_classifier_forward.1']
    %28 = vsyncpa [#allocation3], 0
    %s29 = scalar_lea.sflag [#allocation3], 1
    %30 = vsyncpa %s29, 0
    loop: start=0, step=1, limit=4
    $region2: #{sentiment_classifier_forward.1} parent=1 // loop_pre_header
      _
    $region3: #{sentiment_classifier_forward.1} parent=1 // loop_header
      %s32 = sphi 0, %s36
      %p33 = scmp.ge.s32.totalorder %s32, 4
      %s42 = sphi 0, %s44
      %s45 = sphi 0, %s42
      %s46 = sphi 0, %s45
      %s62 = sphi 0, %s46
      %s68 = sphi 0, %s70
      %s71 = sphi 0, %s68
      %s72 = sphi 0, %s71
      %s88 = sphi 0, %s72
      %s92 = sphi 0, %s92
      %s94 = sphi 0, %s92
      %s95 = sphi 0, %s94
      %s109 = sphi 0, %s95
      %s113 = sphi 0, %s113
      %s115 = sphi 0, %s113
      %s116 = sphi 0, %s115
      %s130 = sphi 0, %s116
      %s134 = sphi 0, %s134
      %s136 = sphi 0, %s134
      %s137 = sphi 0, %s136
      %s151 = sphi 0, %s137
      %s155 = sphi 0, %s155
      %s157 = sphi 0, %s155
      %s158 = sphi 0, %s157
      %s172 = sphi 0, %s158
      %s176 = sphi 0, %s176
      %s178 = sphi 0, %s176
      %s179 = sphi 0, %s178
      %s193 = sphi 0, %s179
      %s197 = sphi 0, %s197
      %s199 = sphi 0, %s197
      %s200 = sphi 0, %s199
      %s214 = sphi 0, %s200
      %s218 = sphi 0, %s218
      %s220 = sphi 0, %s218
      %s221 = sphi 0, %s220
      %s235 = sphi 0, %s221
      %s239 = sphi 0, %s239
      %s241 = sphi 0, %s239
      %s242 = sphi 0, %s241
      %s256 = sphi 0, %s242
      %s260 = sphi 0, %s260
      %s262 = sphi 0, %s260
      %s263 = sphi 0, %s262
      %s277 = sphi 0, %s263
      %s281 = sphi 0, %s281
      %s283 = sphi 0, %s281
      %s284 = sphi 0, %s283
      %s298 = sphi 0, %s284
      %s302 = sphi 0, %s302
      %s304 = sphi 0, %s302
      %s305 = sphi 0, %s304
      %s319 = sphi 0, %s305
      %s323 = sphi 0, %s323
      %s325 = sphi 0, %s323
      %s326 = sphi 0, %s325
      %s340 = sphi 0, %s326
      %s344 = sphi 0, %s344
      %s346 = sphi 0, %s344
      %s347 = sphi 0, %s346
      %s361 = sphi 0, %s347
      %s365 = sphi 0, %s365
      %s367 = sphi 0, %s365
      %s368 = sphi 0, %s367
      %s382 = sphi 0, %s368
      %s386 = sphi 0, %s386
      %s388 = sphi 0, %s386
      %s389 = sphi 0, %s388
      %s403 = sphi 0, %s389
      %s407 = sphi 0, %s407
      %s409 = sphi 0, %s407
      %s410 = sphi 0, %s409
      %s424 = sphi 0, %s410
      %s428 = sphi 0, %s428
      %s430 = sphi 0, %s428
      %s431 = sphi 0, %s430
      %s445 = sphi 0, %s431
      %s449 = sphi 0, %s449
      %s451 = sphi 0, %s449
      %s452 = sphi 0, %s451
      %s466 = sphi 0, %s452
      %s470 = sphi 0, %s470
      %s472 = sphi 0, %s470
      %s473 = sphi 0, %s472
      %s487 = sphi 0, %s473
      %s491 = sphi 0, %s491
      %s493 = sphi 0, %s491
      %s494 = sphi 0, %s493
      %s508 = sphi 0, %s494
      %s512 = sphi 0, %s512
      %s514 = sphi 0, %s512
      %s515 = sphi 0, %s514
      %s529 = sphi 0, %s515
      %s535 = sphi 0, %s537
      %s538 = sphi 0, %s535
      %s539 = sphi 0, %s538
      %s555 = sphi 0, %s539
    $region4: #{sentiment_classifier_forward.1} parent=1 // loop_header_branch
      %35 = sbr.rel (%p33) target = $region8
    $region5: #{sentiment_classifier_forward.1} parent=1 // loop_body
      %s37 = ssub.s32 %s32, 1
      %s38 = ssub.s32 %s32, 2
      %s39 = sadd.s32 %s32, 1
      %s40 = ssub.s32 %s32, %s39
      %p41 = scmp.eq.s32.totalorder %s40, 0
      %s43 = sadd.s32 %s42, 1
      %s44 = scalar_select %p41, %s42, %s43
      %p47 = pneg %p41
      %p48 = scmp.eq.s32.totalorder %s32, 1
      %p49 = por %p47, %p48
      %p50 = scmp.ne.s32.totalorder %s42, %s45
      %p51 = scmp.eq.s32.totalorder %s32, 0
      %p52 = por %p50, %p51
      %p53 = scmp.ne.s32.totalorder %s42, %s45
      %p54 = scmp.eq.s32.totalorder %s37, 1
      %p55 = por %p53, %p54
      %p56 = scmp.ne.s32.totalorder %s45, %s46
      %p57 = scmp.eq.s32.totalorder %s37, 0
      %p58 = por %p56, %p57
      %p59 = scmp.ne.s32.totalorder %s45, %s46
      %p60 = scmp.eq.s32.totalorder %s38, 1
      %p61 = por %p59, %p60
      %p63 = scmp.ne.s32.totalorder %s46, %s62
      %p64 = scmp.eq.s32.totalorder %s38, 0
      %p65 = por %p63, %p64
      %s66 = ssub.s32 %s32, %s39
      %p67 = scmp.eq.s32.totalorder %s66, 0
      %s69 = sadd.s32 %s68, 1
      %s70 = scalar_select %p67, %s68, %s69
      %p73 = pneg %p67
      %p74 = scmp.eq.s32.totalorder %s32, 1
      %p75 = por %p73, %p74
      %p76 = scmp.ne.s32.totalorder %s68, %s71
      %p77 = scmp.eq.s32.totalorder %s32, 0
      %p78 = por %p76, %p77
      %p79 = scmp.ne.s32.totalorder %s68, %s71
      %p80 = scmp.eq.s32.totalorder %s37, 1
      %p81 = por %p79, %p80
      %p82 = scmp.ne.s32.totalorder %s71, %s72
      %p83 = scmp.eq.s32.totalorder %s37, 0
      %p84 = por %p82, %p83
      %p85 = scmp.ne.s32.totalorder %s71, %s72
      %p86 = scmp.eq.s32.totalorder %s38, 1
      %p87 = por %p85, %p86
      %p89 = scmp.ne.s32.totalorder %s72, %s88
      %p90 = scmp.eq.s32.totalorder %s38, 0
      %p91 = por %p89, %p90
      %s93 = sadd.s32 %s92, 1
      %p96 = scmp.eq.s32.totalorder %s32, 1
      %p97 = scmp.ne.s32.totalorder %s92, %s94
      %p98 = scmp.eq.s32.totalorder %s32, 0
      %p99 = por %p97, %p98
      %p100 = scmp.ne.s32.totalorder %s92, %s94
      %p101 = scmp.eq.s32.totalorder %s37, 1
      %p102 = por %p100, %p101
      %p103 = scmp.ne.s32.totalorder %s94, %s95
      %p104 = scmp.eq.s32.totalorder %s37, 0
      %p105 = por %p103, %p104
      %p106 = scmp.ne.s32.totalorder %s94, %s95
      %p107 = scmp.eq.s32.totalorder %s38, 1
      %p108 = por %p106, %p107
      %p110 = scmp.ne.s32.totalorder %s95, %s109
      %p111 = scmp.eq.s32.totalorder %s38, 0
      %p112 = por %p110, %p111
      %s114 = sadd.s32 %s113, 1
      %p117 = scmp.eq.s32.totalorder %s32, 1
      %p118 = scmp.ne.s32.totalorder %s113, %s115
      %p119 = scmp.eq.s32.totalorder %s32, 0
      %p120 = por %p118, %p119
      %p121 = scmp.ne.s32.totalorder %s113, %s115
      %p122 = scmp.eq.s32.totalorder %s37, 1
      %p123 = por %p121, %p122
      %p124 = scmp.ne.s32.totalorder %s115, %s116
      %p125 = scmp.eq.s32.totalorder %s37, 0
      %p126 = por %p124, %p125
      %p127 = scmp.ne.s32.totalorder %s115, %s116
      %p128 = scmp.eq.s32.totalorder %s38, 1
      %p129 = por %p127, %p128
      %p131 = scmp.ne.s32.totalorder %s116, %s130
      %p132 = scmp.eq.s32.totalorder %s38, 0
      %p133 = por %p131, %p132
      %s135 = sadd.s32 %s134, 1
      %p138 = scmp.eq.s32.totalorder %s32, 1
      %p139 = scmp.ne.s32.totalorder %s134, %s136
      %p140 = scmp.eq.s32.totalorder %s32, 0
      %p141 = por %p139, %p140
      %p142 = scmp.ne.s32.totalorder %s134, %s136
      %p143 = scmp.eq.s32.totalorder %s37, 1
      %p144 = por %p142, %p143
      %p145 = scmp.ne.s32.totalorder %s136, %s137
      %p146 = scmp.eq.s32.totalorder %s37, 0
      %p147 = por %p145, %p146
      %p148 = scmp.ne.s32.totalorder %s136, %s137
      %p149 = scmp.eq.s32.totalorder %s38, 1
      %p150 = por %p148, %p149
      %p152 = scmp.ne.s32.totalorder %s137, %s151
      %p153 = scmp.eq.s32.totalorder %s38, 0
      %p154 = por %p152, %p153
      %s156 = sadd.s32 %s155, 1
      %p159 = scmp.eq.s32.totalorder %s32, 1
      %p160 = scmp.ne.s32.totalorder %s155, %s157
      %p161 = scmp.eq.s32.totalorder %s32, 0
      %p162 = por %p160, %p161
      %p163 = scmp.ne.s32.totalorder %s155, %s157
      %p164 = scmp.eq.s32.totalorder %s37, 1
      %p165 = por %p163, %p164
      %p166 = scmp.ne.s32.totalorder %s157, %s158
      %p167 = scmp.eq.s32.totalorder %s37, 0
      %p168 = por %p166, %p167
      %p169 = scmp.ne.s32.totalorder %s157, %s158
      %p170 = scmp.eq.s32.totalorder %s38, 1
      %p171 = por %p169, %p170
      %p173 = scmp.ne.s32.totalorder %s158, %s172
      %p174 = scmp.eq.s32.totalorder %s38, 0
      %p175 = por %p173, %p174
      %s177 = sadd.s32 %s176, 1
      %p180 = scmp.eq.s32.totalorder %s32, 1
      %p181 = scmp.ne.s32.totalorder %s176, %s178
      %p182 = scmp.eq.s32.totalorder %s32, 0
      %p183 = por %p181, %p182
      %p184 = scmp.ne.s32.totalorder %s176, %s178
      %p185 = scmp.eq.s32.totalorder %s37, 1
      %p186 = por %p184, %p185
      %p187 = scmp.ne.s32.totalorder %s178, %s179
      %p188 = scmp.eq.s32.totalorder %s37, 0
      %p189 = por %p187, %p188
      %p190 = scmp.ne.s32.totalorder %s178, %s179
      %p191 = scmp.eq.s32.totalorder %s38, 1
      %p192 = por %p190, %p191
      %p194 = scmp.ne.s32.totalorder %s179, %s193
      %p195 = scmp.eq.s32.totalorder %s38, 0
      %p196 = por %p194, %p195
      %s198 = sadd.s32 %s197, 1
      %p201 = scmp.eq.s32.totalorder %s32, 1
      %p202 = scmp.ne.s32.totalorder %s197, %s199
      %p203 = scmp.eq.s32.totalorder %s32, 0
      %p204 = por %p202, %p203
      %p205 = scmp.ne.s32.totalorder %s197, %s199
      %p206 = scmp.eq.s32.totalorder %s37, 1
      %p207 = por %p205, %p206
      %p208 = scmp.ne.s32.totalorder %s199, %s200
      %p209 = scmp.eq.s32.totalorder %s37, 0
      %p210 = por %p208, %p209
      %p211 = scmp.ne.s32.totalorder %s199, %s200
      %p212 = scmp.eq.s32.totalorder %s38, 1
      %p213 = por %p211, %p212
      %p215 = scmp.ne.s32.totalorder %s200, %s214
      %p216 = scmp.eq.s32.totalorder %s38, 0
      %p217 = por %p215, %p216
      %s219 = sadd.s32 %s218, 1
      %p222 = scmp.eq.s32.totalorder %s32, 1
      %p223 = scmp.ne.s32.totalorder %s218, %s220
      %p224 = scmp.eq.s32.totalorder %s32, 0
      %p225 = por %p223, %p224
      %p226 = scmp.ne.s32.totalorder %s218, %s220
      %p227 = scmp.eq.s32.totalorder %s37, 1
      %p228 = por %p226, %p227
      %p229 = scmp.ne.s32.totalorder %s220, %s221
      %p230 = scmp.eq.s32.totalorder %s37, 0
      %p231 = por %p229, %p230
      %p232 = scmp.ne.s32.totalorder %s220, %s221
      %p233 = scmp.eq.s32.totalorder %s38, 1
      %p234 = por %p232, %p233
      %p236 = scmp.ne.s32.totalorder %s221, %s235
      %p237 = scmp.eq.s32.totalorder %s38, 0
      %p238 = por %p236, %p237
      %s240 = sadd.s32 %s239, 1
      %p243 = scmp.eq.s32.totalorder %s32, 1
      %p244 = scmp.ne.s32.totalorder %s239, %s241
      %p245 = scmp.eq.s32.totalorder %s32, 0
      %p246 = por %p244, %p245
      %p247 = scmp.ne.s32.totalorder %s239, %s241
      %p248 = scmp.eq.s32.totalorder %s37, 1
      %p249 = por %p247, %p248
      %p250 = scmp.ne.s32.totalorder %s241, %s242
      %p251 = scmp.eq.s32.totalorder %s37, 0
      %p252 = por %p250, %p251
      %p253 = scmp.ne.s32.totalorder %s241, %s242
      %p254 = scmp.eq.s32.totalorder %s38, 1
      %p255 = por %p253, %p254
      %p257 = scmp.ne.s32.totalorder %s242, %s256
      %p258 = scmp.eq.s32.totalorder %s38, 0
      %p259 = por %p257, %p258
      %s261 = sadd.s32 %s260, 1
      %p264 = scmp.eq.s32.totalorder %s32, 1
      %p265 = scmp.ne.s32.totalorder %s260, %s262
      %p266 = scmp.eq.s32.totalorder %s32, 0
      %p267 = por %p265, %p266
      %p268 = scmp.ne.s32.totalorder %s260, %s262
      %p269 = scmp.eq.s32.totalorder %s37, 1
      %p270 = por %p268, %p269
      %p271 = scmp.ne.s32.totalorder %s262, %s263
      %p272 = scmp.eq.s32.totalorder %s37, 0
      %p273 = por %p271, %p272
      %p274 = scmp.ne.s32.totalorder %s262, %s263
      %p275 = scmp.eq.s32.totalorder %s38, 1
      %p276 = por %p274, %p275
      %p278 = scmp.ne.s32.totalorder %s263, %s277
      %p279 = scmp.eq.s32.totalorder %s38, 0
      %p280 = por %p278, %p279
      %s282 = sadd.s32 %s281, 1
      %p285 = scmp.eq.s32.totalorder %s32, 1
      %p286 = scmp.ne.s32.totalorder %s281, %s283
      %p287 = scmp.eq.s32.totalorder %s32, 0
      %p288 = por %p286, %p287
      %p289 = scmp.ne.s32.totalorder %s281, %s283
      %p290 = scmp.eq.s32.totalorder %s37, 1
      %p291 = por %p289, %p290
      %p292 = scmp.ne.s32.totalorder %s283, %s284
      %p293 = scmp.eq.s32.totalorder %s37, 0
      %p294 = por %p292, %p293
      %p295 = scmp.ne.s32.totalorder %s283, %s284
      %p296 = scmp.eq.s32.totalorder %s38, 1
      %p297 = por %p295, %p296
      %p299 = scmp.ne.s32.totalorder %s284, %s298
      %p300 = scmp.eq.s32.totalorder %s38, 0
      %p301 = por %p299, %p300
      %s303 = sadd.s32 %s302, 1
      %p306 = scmp.eq.s32.totalorder %s32, 1
      %p307 = scmp.ne.s32.totalorder %s302, %s304
      %p308 = scmp.eq.s32.totalorder %s32, 0
      %p309 = por %p307, %p308
      %p310 = scmp.ne.s32.totalorder %s302, %s304
      %p311 = scmp.eq.s32.totalorder %s37, 1
      %p312 = por %p310, %p311
      %p313 = scmp.ne.s32.totalorder %s304, %s305
      %p314 = scmp.eq.s32.totalorder %s37, 0
      %p315 = por %p313, %p314
      %p316 = scmp.ne.s32.totalorder %s304, %s305
      %p317 = scmp.eq.s32.totalorder %s38, 1
      %p318 = por %p316, %p317
      %p320 = scmp.ne.s32.totalorder %s305, %s319
      %p321 = scmp.eq.s32.totalorder %s38, 0
      %p322 = por %p320, %p321
      %s324 = sadd.s32 %s323, 1
      %p327 = scmp.eq.s32.totalorder %s32, 1
      %p328 = scmp.ne.s32.totalorder %s323, %s325
      %p329 = scmp.eq.s32.totalorder %s32, 0
      %p330 = por %p328, %p329
      %p331 = scmp.ne.s32.totalorder %s323, %s325
      %p332 = scmp.eq.s32.totalorder %s37, 1
      %p333 = por %p331, %p332
      %p334 = scmp.ne.s32.totalorder %s325, %s326
      %p335 = scmp.eq.s32.totalorder %s37, 0
      %p336 = por %p334, %p335
      %p337 = scmp.ne.s32.totalorder %s325, %s326
      %p338 = scmp.eq.s32.totalorder %s38, 1
      %p339 = por %p337, %p338
      %p341 = scmp.ne.s32.totalorder %s326, %s340
      %p342 = scmp.eq.s32.totalorder %s38, 0
      %p343 = por %p341, %p342
      %s345 = sadd.s32 %s344, 1
      %p348 = scmp.eq.s32.totalorder %s32, 1
      %p349 = scmp.ne.s32.totalorder %s344, %s346
      %p350 = scmp.eq.s32.totalorder %s32, 0
      %p351 = por %p349, %p350
      %p352 = scmp.ne.s32.totalorder %s344, %s346
      %p353 = scmp.eq.s32.totalorder %s37, 1
      %p354 = por %p352, %p353
      %p355 = scmp.ne.s32.totalorder %s346, %s347
      %p356 = scmp.eq.s32.totalorder %s37, 0
      %p357 = por %p355, %p356
      %p358 = scmp.ne.s32.totalorder %s346, %s347
      %p359 = scmp.eq.s32.totalorder %s38, 1
      %p360 = por %p358, %p359
      %p362 = scmp.ne.s32.totalorder %s347, %s361
      %p363 = scmp.eq.s32.totalorder %s38, 0
      %p364 = por %p362, %p363
      %s366 = sadd.s32 %s365, 1
      %p369 = scmp.eq.s32.totalorder %s32, 1
      %p370 = scmp.ne.s32.totalorder %s365, %s367
      %p371 = scmp.eq.s32.totalorder %s32, 0
      %p372 = por %p370, %p371
      %p373 = scmp.ne.s32.totalorder %s365, %s367
      %p374 = scmp.eq.s32.totalorder %s37, 1
      %p375 = por %p373, %p374
      %p376 = scmp.ne.s32.totalorder %s367, %s368
      %p377 = scmp.eq.s32.totalorder %s37, 0
      %p378 = por %p376, %p377
      %p379 = scmp.ne.s32.totalorder %s367, %s368
      %p380 = scmp.eq.s32.totalorder %s38, 1
      %p381 = por %p379, %p380
      %p383 = scmp.ne.s32.totalorder %s368, %s382
      %p384 = scmp.eq.s32.totalorder %s38, 0
      %p385 = por %p383, %p384
      %s387 = sadd.s32 %s386, 1
      %p390 = scmp.eq.s32.totalorder %s32, 1
      %p391 = scmp.ne.s32.totalorder %s386, %s388
      %p392 = scmp.eq.s32.totalorder %s32, 0
      %p393 = por %p391, %p392
      %p394 = scmp.ne.s32.totalorder %s386, %s388
      %p395 = scmp.eq.s32.totalorder %s37, 1
      %p396 = por %p394, %p395
      %p397 = scmp.ne.s32.totalorder %s388, %s389
      %p398 = scmp.eq.s32.totalorder %s37, 0
      %p399 = por %p397, %p398
      %p400 = scmp.ne.s32.totalorder %s388, %s389
      %p401 = scmp.eq.s32.totalorder %s38, 1
      %p402 = por %p400, %p401
      %p404 = scmp.ne.s32.totalorder %s389, %s403
      %p405 = scmp.eq.s32.totalorder %s38, 0
      %p406 = por %p404, %p405
      %s408 = sadd.s32 %s407, 1
      %p411 = scmp.eq.s32.totalorder %s32, 1
      %p412 = scmp.ne.s32.totalorder %s407, %s409
      %p413 = scmp.eq.s32.totalorder %s32, 0
      %p414 = por %p412, %p413
      %p415 = scmp.ne.s32.totalorder %s407, %s409
      %p416 = scmp.eq.s32.totalorder %s37, 1
      %p417 = por %p415, %p416
      %p418 = scmp.ne.s32.totalorder %s409, %s410
      %p419 = scmp.eq.s32.totalorder %s37, 0
      %p420 = por %p418, %p419
      %p421 = scmp.ne.s32.totalorder %s409, %s410
      %p422 = scmp.eq.s32.totalorder %s38, 1
      %p423 = por %p421, %p422
      %p425 = scmp.ne.s32.totalorder %s410, %s424
      %p426 = scmp.eq.s32.totalorder %s38, 0
      %p427 = por %p425, %p426
      %s429 = sadd.s32 %s428, 1
      %p432 = scmp.eq.s32.totalorder %s32, 1
      %p433 = scmp.ne.s32.totalorder %s428, %s430
      %p434 = scmp.eq.s32.totalorder %s32, 0
      %p435 = por %p433, %p434
      %p436 = scmp.ne.s32.totalorder %s428, %s430
      %p437 = scmp.eq.s32.totalorder %s37, 1
      %p438 = por %p436, %p437
      %p439 = scmp.ne.s32.totalorder %s430, %s431
      %p440 = scmp.eq.s32.totalorder %s37, 0
      %p441 = por %p439, %p440
      %p442 = scmp.ne.s32.totalorder %s430, %s431
      %p443 = scmp.eq.s32.totalorder %s38, 1
      %p444 = por %p442, %p443
      %p446 = scmp.ne.s32.totalorder %s431, %s445
      %p447 = scmp.eq.s32.totalorder %s38, 0
      %p448 = por %p446, %p447
      %s450 = sadd.s32 %s449, 1
      %p453 = scmp.eq.s32.totalorder %s32, 1
      %p454 = scmp.ne.s32.totalorder %s449, %s451
      %p455 = scmp.eq.s32.totalorder %s32, 0
      %p456 = por %p454, %p455
      %p457 = scmp.ne.s32.totalorder %s449, %s451
      %p458 = scmp.eq.s32.totalorder %s37, 1
      %p459 = por %p457, %p458
      %p460 = scmp.ne.s32.totalorder %s451, %s452
      %p461 = scmp.eq.s32.totalorder %s37, 0
      %p462 = por %p460, %p461
      %p463 = scmp.ne.s32.totalorder %s451, %s452
      %p464 = scmp.eq.s32.totalorder %s38, 1
      %p465 = por %p463, %p464
      %p467 = scmp.ne.s32.totalorder %s452, %s466
      %p468 = scmp.eq.s32.totalorder %s38, 0
      %p469 = por %p467, %p468
      %s471 = sadd.s32 %s470, 1
      %p474 = scmp.eq.s32.totalorder %s32, 1
      %p475 = scmp.ne.s32.totalorder %s470, %s472
      %p476 = scmp.eq.s32.totalorder %s32, 0
      %p477 = por %p475, %p476
      %p478 = scmp.ne.s32.totalorder %s470, %s472
      %p479 = scmp.eq.s32.totalorder %s37, 1
      %p480 = por %p478, %p479
      %p481 = scmp.ne.s32.totalorder %s472, %s473
      %p482 = scmp.eq.s32.totalorder %s37, 0
      %p483 = por %p481, %p482
      %p484 = scmp.ne.s32.totalorder %s472, %s473
      %p485 = scmp.eq.s32.totalorder %s38, 1
      %p486 = por %p484, %p485
      %p488 = scmp.ne.s32.totalorder %s473, %s487
      %p489 = scmp.eq.s32.totalorder %s38, 0
      %p490 = por %p488, %p489
      %s492 = sadd.s32 %s491, 1
      %p495 = scmp.eq.s32.totalorder %s32, 1
      %p496 = scmp.ne.s32.totalorder %s491, %s493
      %p497 = scmp.eq.s32.totalorder %s32, 0
      %p498 = por %p496, %p497
      %p499 = scmp.ne.s32.totalorder %s491, %s493
      %p500 = scmp.eq.s32.totalorder %s37, 1
      %p501 = por %p499, %p500
      %p502 = scmp.ne.s32.totalorder %s493, %s494
      %p503 = scmp.eq.s32.totalorder %s37, 0
      %p504 = por %p502, %p503
      %p505 = scmp.ne.s32.totalorder %s493, %s494
      %p506 = scmp.eq.s32.totalorder %s38, 1
      %p507 = por %p505, %p506
      %p509 = scmp.ne.s32.totalorder %s494, %s508
      %p510 = scmp.eq.s32.totalorder %s38, 0
      %p511 = por %p509, %p510
      %s513 = sadd.s32 %s512, 1
      %p516 = scmp.eq.s32.totalorder %s32, 1
      %p517 = scmp.ne.s32.totalorder %s512, %s514
      %p518 = scmp.eq.s32.totalorder %s32, 0
      %p519 = por %p517, %p518
      %p520 = scmp.ne.s32.totalorder %s512, %s514
      %p521 = scmp.eq.s32.totalorder %s37, 1
      %p522 = por %p520, %p521
      %p523 = scmp.ne.s32.totalorder %s514, %s515
      %p524 = scmp.eq.s32.totalorder %s37, 0
      %p525 = por %p523, %p524
      %p526 = scmp.ne.s32.totalorder %s514, %s515
      %p527 = scmp.eq.s32.totalorder %s38, 1
      %p528 = por %p526, %p527
      %p530 = scmp.ne.s32.totalorder %s515, %s529
      %p531 = scmp.eq.s32.totalorder %s38, 0
      %p532 = por %p530, %p531
      %s533 = ssub.s32 %s32, %s39
      %p534 = scmp.eq.s32.totalorder %s533, 0
      %s536 = sadd.s32 %s535, 1
      %s537 = scalar_select %p534, %s535, %s536
      %p540 = pneg %p534
      %p541 = scmp.eq.s32.totalorder %s32, 1
      %p542 = por %p540, %p541
      %p543 = scmp.ne.s32.totalorder %s535, %s538
      %p544 = scmp.eq.s32.totalorder %s32, 0
      %p545 = por %p543, %p544
      %p546 = scmp.ne.s32.totalorder %s535, %s538
      %p547 = scmp.eq.s32.totalorder %s37, 1
      %p548 = por %p546, %p547
      %p549 = scmp.ne.s32.totalorder %s538, %s539
      %p550 = scmp.eq.s32.totalorder %s37, 0
      %p551 = por %p549, %p550
      %p552 = scmp.ne.s32.totalorder %s538, %s539
      %p553 = scmp.eq.s32.totalorder %s38, 1
      %p554 = por %p552, %p553
      %p556 = scmp.ne.s32.totalorder %s539, %s555
      %p557 = scmp.eq.s32.totalorder %s38, 0
      %p558 = por %p556, %p557
      %p559 = scmp.le.s32.totalorder 1, %s32
      %p560 = scmp.lt.s32.totalorder %s32, 3
      %p561 = pnand %p559, %p560
      %p562 = pneg %p561
      // Predicated region
      $region9: #{sentiment_classifier_forward.1} parent=5 // pred_check
        _
      $region10: #{sentiment_classifier_forward.1} parent=5 // pred_check_branch
        %564 = sbr.rel (%p561) target = $region12
      $region11: #{sentiment_classifier_forward.1} parent=5 // pred_region
        %s565 = ssub.s32 %s32, 1
        // Predicated region
        $region13: #{sentiment_classifier_forward.1} parent=11 // pred_check
          %p566 = pneg %p105
        $region14: #{sentiment_classifier_forward.1} parent=11 // pred_check_branch
          %568 = sbr.rel (%p566) target = $region16
        $region15: #{sentiment_classifier_forward.1} parent=11 // pred_region
          _
        $region16: #{sentiment_classifier_forward.1} parent=11 // pred_fallthru
          _
        // Predicated region
        $region17: #{sentiment_classifier_forward.1} parent=11 // pred_check
          %p569 = pneg %p126
        $region18: #{sentiment_classifier_forward.1} parent=11 // pred_check_branch
          %571 = sbr.rel (%p569) target = $region20
        $region19: #{sentiment_classifier_forward.1} parent=11 // pred_region
          _
        $region20: #{sentiment_classifier_forward.1} parent=11 // pred_fallthru
          _
        // Predicated region
        $region21: #{sentiment_classifier_forward.1} parent=11 // pred_check
          %p572 = pneg %p147
        $region22: #{sentiment_classifier_forward.1} parent=11 // pred_check_branch
          %574 = sbr.rel (%p572) target = $region24
        $region23: #{sentiment_classifier_forward.1} parent=11 // pred_region
          _
        $region24: #{sentiment_classifier_forward.1} parent=11 // pred_fallthru
          _
        // Predicated region
        $region25: #{sentiment_classifier_forward.1} parent=11 // pred_check
          %p575 = pneg %p168
        $region26: #{sentiment_classifier_forward.1} parent=11 // pred_check_branch
          %577 = sbr.rel (%p575) target = $region28
        $region27: #{sentiment_classifier_forward.1} parent=11 // pred_region
          _
        $region28: #{sentiment_classifier_forward.1} parent=11 // pred_fallthru
          _
        // Predicated region
        $region29: #{sentiment_classifier_forward.1} parent=11 // pred_check
          %p578 = pneg %p189
        $region30: #{sentiment_classifier_forward.1} parent=11 // pred_check_branch
          %580 = sbr.rel (%p578) target = $region32
        $region31: #{sentiment_classifier_forward.1} parent=11 // pred_region
          _
        $region32: #{sentiment_classifier_forward.1} parent=11 // pred_fallthru
          _
        // Predicated region
        $region33: #{sentiment_classifier_forward.1} parent=11 // pred_check
          %p581 = pneg %p210
        $region34: #{sentiment_classifier_forward.1} parent=11 // pred_check_branch
          %583 = sbr.rel (%p581) target = $region36
        $region35: #{sentiment_classifier_forward.1} parent=11 // pred_region
          _
        $region36: #{sentiment_classifier_forward.1} parent=11 // pred_fallthru
          _
        // Predicated region
        $region37: #{sentiment_classifier_forward.1} parent=11 // pred_check
          %p584 = pneg %p231
        $region38: #{sentiment_classifier_forward.1} parent=11 // pred_check_branch
          %586 = sbr.rel (%p584) target = $region40
        $region39: #{sentiment_classifier_forward.1} parent=11 // pred_region
          _
        $region40: #{sentiment_classifier_forward.1} parent=11 // pred_fallthru
          _
        // Predicated region
        $region41: #{sentiment_classifier_forward.1} parent=11 // pred_check
          %p587 = pneg %p252
        $region42: #{sentiment_classifier_forward.1} parent=11 // pred_check_branch
          %589 = sbr.rel (%p587) target = $region44
        $region43: #{sentiment_classifier_forward.1} parent=11 // pred_region
          _
        $region44: #{sentiment_classifier_forward.1} parent=11 // pred_fallthru
          _
        // Predicated region
        $region45: #{sentiment_classifier_forward.1} parent=11 // pred_check
          %p590 = pneg %p273
        $region46: #{sentiment_classifier_forward.1} parent=11 // pred_check_branch
          %592 = sbr.rel (%p590) target = $region48
        $region47: #{sentiment_classifier_forward.1} parent=11 // pred_region
          _
        $region48: #{sentiment_classifier_forward.1} parent=11 // pred_fallthru
          _
        // Predicated region
        $region49: #{sentiment_classifier_forward.1} parent=11 // pred_check
          %p593 = pneg %p294
        $region50: #{sentiment_classifier_forward.1} parent=11 // pred_check_branch
          %595 = sbr.rel (%p593) target = $region52
        $region51: #{sentiment_classifier_forward.1} parent=11 // pred_region
          _
        $region52: #{sentiment_classifier_forward.1} parent=11 // pred_fallthru
          _
        // Predicated region
        $region53: #{sentiment_classifier_forward.1} parent=11 // pred_check
          %p596 = pneg %p315
        $region54: #{sentiment_classifier_forward.1} parent=11 // pred_check_branch
          %598 = sbr.rel (%p596) target = $region56
        $region55: #{sentiment_classifier_forward.1} parent=11 // pred_region
          _
        $region56: #{sentiment_classifier_forward.1} parent=11 // pred_fallthru
          _
        // Predicated region
        $region57: #{sentiment_classifier_forward.1} parent=11 // pred_check
          %p599 = pneg %p336
        $region58: #{sentiment_classifier_forward.1} parent=11 // pred_check_branch
          %601 = sbr.rel (%p599) target = $region60
        $region59: #{sentiment_classifier_forward.1} parent=11 // pred_region
          _
        $region60: #{sentiment_classifier_forward.1} parent=11 // pred_fallthru
          _
        // Predicated region
        $region61: #{sentiment_classifier_forward.1} parent=11 // pred_check
          %p602 = pneg %p357
        $region62: #{sentiment_classifier_forward.1} parent=11 // pred_check_branch
          %604 = sbr.rel (%p602) target = $region64
        $region63: #{sentiment_classifier_forward.1} parent=11 // pred_region
          _
        $region64: #{sentiment_classifier_forward.1} parent=11 // pred_fallthru
          _
        // Predicated region
        $region65: #{sentiment_classifier_forward.1} parent=11 // pred_check
          %p605 = pneg %p378
        $region66: #{sentiment_classifier_forward.1} parent=11 // pred_check_branch
          %607 = sbr.rel (%p605) target = $region68
        $region67: #{sentiment_classifier_forward.1} parent=11 // pred_region
          _
        $region68: #{sentiment_classifier_forward.1} parent=11 // pred_fallthru
          _
        // Predicated region
        $region69: #{sentiment_classifier_forward.1} parent=11 // pred_check
          %p608 = pneg %p399
        $region70: #{sentiment_classifier_forward.1} parent=11 // pred_check_branch
          %610 = sbr.rel (%p608) target = $region72
        $region71: #{sentiment_classifier_forward.1} parent=11 // pred_region
          _
        $region72: #{sentiment_classifier_forward.1} parent=11 // pred_fallthru
          _
        // Predicated region
        $region73: #{sentiment_classifier_forward.1} parent=11 // pred_check
          %p611 = pneg %p420
        $region74: #{sentiment_classifier_forward.1} parent=11 // pred_check_branch
          %613 = sbr.rel (%p611) target = $region76
        $region75: #{sentiment_classifier_forward.1} parent=11 // pred_region
          _
        $region76: #{sentiment_classifier_forward.1} parent=11 // pred_fallthru
          _
        // Predicated region
        $region77: #{sentiment_classifier_forward.1} parent=11 // pred_check
          %p614 = pneg %p441
        $region78: #{sentiment_classifier_forward.1} parent=11 // pred_check_branch
          %616 = sbr.rel (%p614) target = $region80
        $region79: #{sentiment_classifier_forward.1} parent=11 // pred_region
          _
        $region80: #{sentiment_classifier_forward.1} parent=11 // pred_fallthru
          _
        // Predicated region
        $region81: #{sentiment_classifier_forward.1} parent=11 // pred_check
          %p617 = pneg %p462
        $region82: #{sentiment_classifier_forward.1} parent=11 // pred_check_branch
          %619 = sbr.rel (%p617) target = $region84
        $region83: #{sentiment_classifier_forward.1} parent=11 // pred_region
          _
        $region84: #{sentiment_classifier_forward.1} parent=11 // pred_fallthru
          _
        // Predicated region
        $region85: #{sentiment_classifier_forward.1} parent=11 // pred_check
          %p620 = pneg %p483
        $region86: #{sentiment_classifier_forward.1} parent=11 // pred_check_branch
          %622 = sbr.rel (%p620) target = $region88
        $region87: #{sentiment_classifier_forward.1} parent=11 // pred_region
          _
        $region88: #{sentiment_classifier_forward.1} parent=11 // pred_fallthru
          _
        // Predicated region
        $region89: #{sentiment_classifier_forward.1} parent=11 // pred_check
          %p623 = pneg %p504
        $region90: #{sentiment_classifier_forward.1} parent=11 // pred_check_branch
          %625 = sbr.rel (%p623) target = $region92
        $region91: #{sentiment_classifier_forward.1} parent=11 // pred_region
          _
        $region92: #{sentiment_classifier_forward.1} parent=11 // pred_fallthru
          _
        // Predicated region
        $region93: #{sentiment_classifier_forward.1} parent=11 // pred_check
          %p626 = pneg %p525
        $region94: #{sentiment_classifier_forward.1} parent=11 // pred_check_branch
          %628 = sbr.rel (%p626) target = $region96
        $region95: #{sentiment_classifier_forward.1} parent=11 // pred_region
          _
        $region96: #{sentiment_classifier_forward.1} parent=11 // pred_fallthru
          _
      $region12: #{sentiment_classifier_forward.1} parent=5 // pred_fallthru
        _
      %p629 = scmp.lt.s32.totalorder %s32, 2
      // Predicated region
      $region97: #{sentiment_classifier_forward.1} parent=5 // pred_check
        %p630 = pneg %p629
      $region98: #{sentiment_classifier_forward.1} parent=5 // pred_check_branch
        %632 = sbr.rel (%p630) target = $region100
      $region99: #{sentiment_classifier_forward.1} parent=5 // pred_region
        // Predicated region
        $region101: #{sentiment_classifier_forward.1} parent=99 // pred_check
          %p633 = pneg %p52
        $region102: #{sentiment_classifier_forward.1} parent=99 // pred_check_branch
          %635 = sbr.rel (%p633) target = $region104
        $region103: #{sentiment_classifier_forward.1} parent=99 // pred_region
          %p636 = scmp.lt.s32.totalorder %s32, 1
          %s637 = scalar_select %p636, %s32, 1
          %s638 = smul.addr %s637, 8
          %s639 = scalar_lea.vmem %s0, %s638
        $region104: #{sentiment_classifier_forward.1} parent=99 // pred_fallthru
          _
        // Predicated region
        $region105: #{sentiment_classifier_forward.1} parent=99 // pred_check
          %p640 = pneg %p78
        $region106: #{sentiment_classifier_forward.1} parent=99 // pred_check_branch
          %642 = sbr.rel (%p640) target = $region108
        $region107: #{sentiment_classifier_forward.1} parent=99 // pred_region
          %p643 = scmp.lt.s32.totalorder %s32, 1
          %s644 = scalar_select %p643, %s32, 1
          %s645 = scalar_lea.vmem %s1, %s644
        $region108: #{sentiment_classifier_forward.1} parent=99 // pred_fallthru
          _
      $region100: #{sentiment_classifier_forward.1} parent=5 // pred_fallthru
        _
      %p646 = scmp.le.s32.totalorder 1, %s32
      %p647 = scmp.lt.s32.totalorder %s32, 3
      %p648 = pnand %p646, %p647
      %p649 = pneg %p648
      // Predicated region
      $region109: #{sentiment_classifier_forward.1} parent=5 // pred_check
        _
      $region110: #{sentiment_classifier_forward.1} parent=5 // pred_check_branch
        %651 = sbr.rel (%p648) target = $region112
      $region111: #{sentiment_classifier_forward.1} parent=5 // pred_region
        %s652 = ssub.s32 %s32, 1
        %p653 = scmp.lt.s32.totalorder %s37, 1
        %s654 = scalar_select %p653, %s37, 1
        %s655 = smul.addr %s654, 8
        %s656 = scalar_lea.vmem %s0, %s655
        %p657 = pneg %p58
        %p658 = pneg %p55
        %p659 = scmp.lt.s32.totalorder %s37, 1
        %s660 = scalar_select %p659, %s37, 1
        %s661 = scalar_lea.vmem %s1, %s660
        %p662 = pneg %p84
        %p663 = pneg %p81
        %p664 = pneg %p105
        %p665 = pneg %p102
        %p666 = pneg %p126
        %p667 = pneg %p123
        %p668 = pneg %p147
        %p669 = pneg %p144
        %p670 = pneg %p168
        %p671 = pneg %p165
        %p672 = pneg %p189
        %p673 = pneg %p186
        %p674 = pneg %p210
        %p675 = pneg %p207
        %p676 = pneg %p231
        %p677 = pneg %p228
        %p678 = pneg %p252
        %p679 = pneg %p249
        %p680 = pneg %p273
        %p681 = pneg %p270
        %p682 = pneg %p294
        %p683 = pneg %p291
        %p684 = pneg %p315
        %p685 = pneg %p312
        %p686 = pneg %p336
        %p687 = pneg %p333
        %p688 = pneg %p357
        %p689 = pneg %p354
        %p690 = pneg %p378
        %p691 = pneg %p375
        %p692 = pneg %p399
        %p693 = pneg %p396
        %p694 = pneg %p420
        %p695 = pneg %p417
        %p696 = pneg %p441
        %p697 = pneg %p438
        %p698 = pneg %p462
        %p699 = pneg %p459
        %p700 = pneg %p483
        %p701 = pneg %p480
        %p702 = pneg %p504
        %p703 = pneg %p501
        %p704 = pneg %p525
        %p705 = pneg %p522
        %p706 = pneg %p551
        %p707 = pneg %p548
        %s708 = sand.u32 %s538, 1
        %s709 = scalar_lea.sflag [#allocation3], %s708
        %s710 = sand.u32 %s538, 1
        %s711 = scalar_lea.vmem [#allocation2], %s710
        %p712 = scmp.lt.s32.totalorder %s37, 1
        %s713 = scalar_select %p712, %s37, 1
        %s714 = smul.addr %s713, 8
        %s715 = scalar_lea.vmem %s0, %s714
        %p716 = scmp.lt.s32.totalorder %s37, 1
        %s717 = scalar_select %p716, %s37, 1
        %s718 = scalar_lea.vmem %s1, %s717
        %v719 = vld [vmem:[%s715] sm:$0xff]
        %v720 = vlaneseq
        %v721 = vand.u32 %v720, 127
        %722 = vset.pattern.permute.xlu0 0
        %723 = vperm.xlu0 %722, %v719
        %v724 = vpop.permute.xlu0 %723
        %vm725 = vcmp.eq.s32.totalorder %v721, %v724
        %v726 = vsel %vm725, 1.0, 0.0
        %v727 = vld [vmem:[%s2] sm:$0xff]
        %v728 = vld [vmem:[%s2 + $0x8] sm:$0xff]
        %v729 = vld [vmem:[%s2 + $0x10] sm:$0xff]
        %v730 = vld [vmem:[%s2 + $0x18] sm:$0xff]
        %v731 = vld [vmem:[%s2 + $0x20] sm:$0xff]
        %v732 = vld [vmem:[%s2 + $0x28] sm:$0xff]
        %v733 = vld [vmem:[%s2 + $0x30] sm:$0xff]
        %v734 = vld [vmem:[%s2 + $0x38] sm:$0xff]
        %v735 = vld [vmem:[%s2 + $0x40] sm:$0xff]
        %v736 = vld [vmem:[%s2 + $0x48] sm:$0xff]
        %v737 = vld [vmem:[%s2 + $0x50] sm:$0xff]
        %v738 = vld [vmem:[%s2 + $0x58] sm:$0xff]
        %v739 = vld [vmem:[%s2 + $0x60] sm:$0xff]
        %v740 = vld [vmem:[%s2 + $0x68] sm:$0xff]
        %v741 = vld [vmem:[%s2 + $0x70] sm:$0xff]
        %v742 = vld [vmem:[%s2 + $0x78] sm:$0xff]
        %v743 = vld [vmem:[%s3] sm:$0xff]
        %v744 = vld [vmem:[%s4] sm:$0x1]
        %745 = vmatprep.subr.mxu0 0.0
        %746 = vmatpush1.msra.mxu0 %v727
        %747 = vmatprep.subr.mxu0 0.0
        %748 = vmatpush1.msra.mxu0 %v728
        %749 = vmatprep.subr.mxu0 0.0
        %750 = vmatpush1.msra.mxu0 %v729
        %751 = vmatprep.subr.mxu0 0.0
        %752 = vmatpush1.msra.mxu0 %v730
        %753 = vmatprep.subr.mxu0 0.0
        %754 = vmatpush1.msra.mxu0 %v731
        %755 = vmatprep.subr.mxu0 0.0
        %756 = vmatpush1.msra.mxu0 %v732
        %757 = vmatprep.subr.mxu0 0.0
        %758 = vmatpush1.msra.mxu0 %v733
        %759 = vmatprep.subr.mxu0 0.0
        %760 = vmatpush1.msra.mxu0 %v734
        %761 = vmatprep.subr.mxu0 0.0
        %762 = vmatpush1.msra.mxu0 %v735
        %763 = vmatprep.subr.mxu0 0.0
        %764 = vmatpush1.msra.mxu0 %v736
        %765 = vmatprep.subr.mxu0 0.0
        %766 = vmatpush1.msra.mxu0 %v737
        %767 = vmatprep.subr.mxu0 0.0
        %768 = vmatpush1.msra.mxu0 %v738
        %769 = vmatprep.subr.mxu0 0.0
        %770 = vmatpush1.msra.mxu0 %v739
        %771 = vmatprep.subr.mxu0 0.0
        %772 = vmatpush1.msra.mxu0 %v740
        %773 = vmatprep.subr.mxu0 0.0
        %774 = vmatpush1.msra.mxu0 %v741
        %775 = vmatprep.subr.mxu0 0.0
        %776 = vmatpush1.msra.mxu0 %v742
        %777 = vmatprep.subr.mxu0 0.0
        %778 = vmatpush1.msra.mxu0 0.0
        %779 = vmatprep.subr.mxu0 0.0
        %780 = vmatpush1.msra.mxu0 0.0
        %781 = vmatprep.subr.mxu0 0.0
        %782 = vmatpush1.msra.mxu0 0.0
        %783 = vmatprep.subr.mxu0 0.0
        %784 = vmatpush1.msra.mxu0 0.0
        %785 = vmatprep.subr.mxu0 0.0
        %786 = vmatpush1.msra.mxu0 0.0
        %787 = vmatprep.subr.mxu0 0.0
        %788 = vmatpush1.msra.mxu0 0.0
        %789 = vmatprep.subr.mxu0 0.0
        %790 = vmatpush1.msra.mxu0 0.0
        %791 = vmatprep.subr.mxu0 0.0
        %792 = vmatpush1.msra.mxu0 0.0
        %793 = vmatprep.subr.mxu0 0.0
        %794 = vmatpush1.msra.mxu0 0.0
        %795 = vmatprep.subr.mxu0 0.0
        %796 = vmatpush1.msra.mxu0 0.0
        %797 = vmatprep.subr.mxu0 0.0
        %798 = vmatpush1.msra.mxu0 0.0
        %799 = vmatprep.subr.mxu0 0.0
        %800 = vmatpush1.msra.mxu0 0.0
        %801 = vmatprep.subr.mxu0 0.0
        %802 = vmatpush1.msra.mxu0 0.0
        %803 = vmatprep.subr.mxu0 0.0
        %804 = vmatpush1.msra.mxu0 0.0
        %805 = vmatprep.subr.mxu0 0.0
        %806 = vmatpush1.msra.mxu0 0.0
        %807 = vmatprep.subr.mxu0 0.0
        %808 = vmatpush1.msra.mxu0 0.0
        %809 = vmatprep.mubr.f32.mxu0 0.0
        %810 = vmatmul.mubr.f32.gmra.mrb[0].mxu0 %v726
        %v811 = vpop.f32.mrb[0].mxu0
        %v812 = vadd.f32 %v743, %v811
        %v813 = vpop.f32.mrb[0].mxu0
        %814 = vdwg.mxu0
        %v815 = vlaneseq
        %v816 = vshrl.u32 %v815, 7
        %v817 = vsub.s32 0, %v816
        %v818 = vrot.slane %v744, %v817
        %v819 = vadd.f32 %v812, %v818
        %v820 = vld [vmem:[%s5] sm:$0x1]
        %v821 = vld [vmem:[%s6] sm:$0x1]
        %vm822 = vcmask 261120
        %v823 = vsel %vm822, %v819, 0.0
        %824 = vadd.xlane.f32.xlu0 %v823
        %v825 = vpop.xlane.xlu0 %824
        %v826 = vrcp.pop 32.0
        %v827 = vmul.f32 %v825, %v826
        %v828 = vsub.f32 %v819, %v827
        %v829 = vmul.f32 %v828, %v828
        %v830 = vsel %vm822, %v829, 0.0
        %831 = vadd.xlane.f32.xlu0 %v830
        %v832 = vpop.xlane.xlu0 %831
        %v833 = vmul.f32 %v832, %v826
        %v834 = vadd.f32 %v833, 1e-12
        %v835 = vrsqrt.pop %v834
        %v836 = vmul.f32 %v828, %v835
        %v838 = vlaneseq
        %v839 = vshrl.u32 %v838, 7
        %v840 = vsub.s32 0, %v839
        %v841 = vrot.slane %v820, %v840
        %v843 = vmul.f32 %v836, %v841
        %v845 = vlaneseq
        %v846 = vshrl.u32 %v845, 7
        %v847 = vsub.s32 0, %v846
        %v848 = vrot.slane %v821, %v847
        %v850 = vadd.f32 %v843, %v848
        %v851 = vld [vmem:[%s718] sm:$0x1]
        %v852 = vsub.f32 1.0, %v851
        %v853 = vmul.f32 %v852, -10000.0
        %v854 = vld [vmem:[%s7] sm:$0xff]
        %v855 = vld [vmem:[%s7 + $0x8] sm:$0xff]
        %v856 = vld [vmem:[%s7 + $0x10] sm:$0xff]
        %v857 = vld [vmem:[%s7 + $0x18] sm:$0xff]
        %v858 = vld [vmem:[%s8] sm:$0x1]
        %v860 = vlaneseq
        %v861 = vshrl.u32 %v860, 7
        %v862 = vsub.s32 0, %v861
        %v863 = vrot.slane %v858, %v862
        %v866 = vsel %vm822, %v850, 0
        %868 = vmatprep.subr.mxu0 0.0
        %869 = vmatpush1.msra.mxu0 %v854
        %870 = vmatprep.subr.mxu0 0.0
        %871 = vmatpush1.msra.mxu0 %v855
        %872 = vmatprep.subr.mxu0 0.0
        %873 = vmatpush1.msra.mxu0 %v856
        %874 = vmatprep.subr.mxu0 0.0
        %875 = vmatpush1.msra.mxu0 %v857
        %876 = vmatprep.subr.mxu0 0.0
        %877 = vmatpush1.msra.mxu0 0.0
        %878 = vmatprep.subr.mxu0 0.0
        %879 = vmatpush1.msra.mxu0 0.0
        %880 = vmatprep.subr.mxu0 0.0
        %881 = vmatpush1.msra.mxu0 0.0
        %882 = vmatprep.subr.mxu0 0.0
        %883 = vmatpush1.msra.mxu0 0.0
        %884 = vmatprep.subr.mxu0 0.0
        %885 = vmatpush1.msra.mxu0 0.0
        %886 = vmatprep.subr.mxu0 0.0
        %887 = vmatpush1.msra.mxu0 0.0
        %888 = vmatprep.subr.mxu0 0.0
        %889 = vmatpush1.msra.mxu0 0.0
        %890 = vmatprep.subr.mxu0 0.0
        %891 = vmatpush1.msra.mxu0 0.0
        %892 = vmatprep.subr.mxu0 0.0
        %893 = vmatpush1.msra.mxu0 0.0
        %894 = vmatprep.subr.mxu0 0.0
        %895 = vmatpush1.msra.mxu0 0.0
        %896 = vmatprep.subr.mxu0 0.0
        %897 = vmatpush1.msra.mxu0 0.0
        %898 = vmatprep.subr.mxu0 0.0
        %899 = vmatpush1.msra.mxu0 0.0
        %900 = vmatprep.subr.mxu0 0.0
        %901 = vmatpush1.msra.mxu0 0.0
        %902 = vmatprep.subr.mxu0 0.0
        %903 = vmatpush1.msra.mxu0 0.0
        %904 = vmatprep.subr.mxu0 0.0
        %905 = vmatpush1.msra.mxu0 0.0
        %906 = vmatprep.subr.mxu0 0.0
        %907 = vmatpush1.msra.mxu0 0.0
        %908 = vmatprep.subr.mxu0 0.0
        %909 = vmatpush1.msra.mxu0 0.0
        %910 = vmatprep.subr.mxu0 0.0
        %911 = vmatpush1.msra.mxu0 0.0
        %912 = vmatprep.subr.mxu0 0.0
        %913 = vmatpush1.msra.mxu0 0.0
        %914 = vmatprep.subr.mxu0 0.0
        %915 = vmatpush1.msra.mxu0 0.0
        %916 = vmatprep.subr.mxu0 0.0
        %917 = vmatpush1.msra.mxu0 0.0
        %918 = vmatprep.subr.mxu0 0.0
        %919 = vmatpush1.msra.mxu0 0.0
        %920 = vmatprep.subr.mxu0 0.0
        %921 = vmatpush1.msra.mxu0 0.0
        %922 = vmatprep.subr.mxu0 0.0
        %923 = vmatpush1.msra.mxu0 0.0
        %924 = vmatprep.subr.mxu0 0.0
        %925 = vmatpush1.msra.mxu0 0.0
        %926 = vmatprep.subr.mxu0 0.0
        %927 = vmatpush1.msra.mxu0 0.0
        %928 = vmatprep.subr.mxu0 0.0
        %929 = vmatpush1.msra.mxu0 0.0
        %930 = vmatprep.subr.mxu0 0.0
        %931 = vmatpush1.msra.mxu0 0.0
        %932 = vmatprep.mubr.f32.mxu0 0.0
        %933 = vmatmul.mubr.f32.gmra.mrb[0].mxu0 %v866
        %v934 = vpop.f32.mrb[0].mxu0
        %v935 = vadd.f32 %v863, %v934
        %v936 = vpop.f32.mrb[0].mxu0
        %937 = vdwg.mxu0
        %v938 = vld [vmem:[%s9] sm:$0xff]
        %v939 = vld [vmem:[%s9 + $0x8] sm:$0xff]
        %v940 = vld [vmem:[%s9 + $0x10] sm:$0xff]
        %v941 = vld [vmem:[%s9 + $0x18] sm:$0xff]
        %v943 = vlaneseq
        %v944 = vshrl.u32 %v943, 7
        %v945 = vsub.s32 0, %v944
        %v946 = vrot.slane %v853, %v945
        %949 = vrot.lane.b32.xlu0 %v935, 96
        %v950 = vpop.permute.xlu0 %949
        %vm951 = vcmask 130048
        %v952 = vsel %vm951, %v935, 0
        %v954 = vsel %vm951, %v950, 0
        %956 = vmatprep.subr.mxu0 0.0
        %957 = vmatpush1.xpose.msra.mxu0 %v954
        %958 = vmatprep.subr.mxu0 0.0
        %959 = vmatpush1.xpose.msra.mxu0 0.0
        %960 = vmatprep.subr.mxu0 0.0
        %961 = vmatpush1.xpose.msra.mxu0 0.0
        %962 = vmatprep.subr.mxu0 0.0
        %963 = vmatpush1.xpose.msra.mxu0 0.0
        %964 = vmatprep.subr.mxu0 0.0
        %965 = vmatpush1.xpose.msra.mxu0 0.0
        %966 = vmatprep.subr.mxu0 0.0
        %967 = vmatpush1.xpose.msra.mxu0 0.0
        %968 = vmatprep.subr.mxu0 0.0
        %969 = vmatpush1.xpose.msra.mxu0 0.0
        %970 = vmatprep.subr.mxu0 0.0
        %971 = vmatpush1.xpose.msra.mxu0 0.0
        %972 = vmatprep.subr.mxu0 0.0
        %973 = vmatpush1.xpose.msra.mxu0 0.0
        %974 = vmatprep.subr.mxu0 0.0
        %975 = vmatpush1.xpose.msra.mxu0 0.0
        %976 = vmatprep.subr.mxu0 0.0
        %977 = vmatpush1.xpose.msra.mxu0 0.0
        %978 = vmatprep.subr.mxu0 0.0
        %979 = vmatpush1.xpose.msra.mxu0 0.0
        %980 = vmatprep.subr.mxu0 0.0
        %981 = vmatpush1.xpose.msra.mxu0 0.0
        %982 = vmatprep.subr.mxu0 0.0
        %983 = vmatpush1.xpose.msra.mxu0 0.0
        %984 = vmatprep.subr.mxu0 0.0
        %985 = vmatpush1.xpose.msra.mxu0 0.0
        %986 = vmatprep.subr.mxu0 0.0
        %987 = vmatpush1.xpose.msra.mxu0 0.0
        %988 = vmatprep.subr.mxu0 0.0
        %989 = vmatpush1.xpose.msra.mxu0 0.0
        %990 = vmatprep.subr.mxu0 0.0
        %991 = vmatpush1.xpose.msra.mxu0 0.0
        %992 = vmatprep.subr.mxu0 0.0
        %993 = vmatpush1.xpose.msra.mxu0 0.0
        %994 = vmatprep.subr.mxu0 0.0
        %995 = vmatpush1.xpose.msra.mxu0 0.0
        %996 = vmatprep.subr.mxu0 0.0
        %997 = vmatpush1.xpose.msra.mxu0 0.0
        %998 = vmatprep.subr.mxu0 0.0
        %999 = vmatpush1.xpose.msra.mxu0 0.0
        %1000 = vmatprep.subr.mxu0 0.0
        %1001 = vmatpush1.xpose.msra.mxu0 0.0
        %1002 = vmatprep.subr.mxu0 0.0
        %1003 = vmatpush1.xpose.msra.mxu0 0.0
        %1004 = vmatprep.subr.mxu0 0.0
        %1005 = vmatpush1.xpose.msra.mxu0 0.0
        %1006 = vmatprep.subr.mxu0 0.0
        %1007 = vmatpush1.xpose.msra.mxu0 0.0
        %1008 = vmatprep.subr.mxu0 0.0
        %1009 = vmatpush1.xpose.msra.mxu0 0.0
        %1010 = vmatprep.subr.mxu0 0.0
        %1011 = vmatpush1.xpose.msra.mxu0 0.0
        %1012 = vmatprep.subr.mxu0 0.0
        %1013 = vmatpush1.xpose.msra.mxu0 0.0
        %1014 = vmatprep.subr.mxu0 0.0
        %1015 = vmatpush1.xpose.msra.mxu0 0.0
        %1016 = vmatprep.subr.mxu0 0.0
        %1017 = vmatpush1.xpose.msra.mxu0 0.0
        %1018 = vmatprep.subr.mxu0 0.0
        %1019 = vmatpush1.xpose.msra.mxu0 0.0
        %1020 = vmatprep.mubr.f32.mxu0 0.0
        %1021 = vmatmul.mubr.f32.gmra.mrb[0].mxu0 %v952
        %v1022 = vpop.f32.mrb[0].mxu0
        %v1023 = vadd.f32 %v946, %v1022
        %v1024 = vpop.f32.mrb[0].mxu0
        %1025 = vdwg.mxu0
        %vm1026 = vcmask 64512
        %v1027 = vsel %vm1026, %v1023, -inf
        %1028 = vmax.xlane.f32.xlu0 %v1027
        %v1029 = vpop.xlane.xlu0 %1028
        %v1030 = vsub.f32 %v1023, %v1029
        %v1031 = vmul.f32 %v1030, 1.442695
        %v1032 = vpow.pop %v1031
        %v1033 = vsel %vm1026, %v1032, 0.0
        %1034 = vadd.xlane.f32.xlu0 %v1033
        %v1035 = vpop.xlane.xlu0 %1034
        %v1036 = vrcp.pop %v1035
        %v1037 = vmul.f32 %v1032, %v1036
        %1038 = vrot.lane.b32.xlu0 %v935, 64
        %v1039 = vpop.permute.xlu0 %1038
        %v1042 = vsel %vm1026, %v1037, 0
        %1044 = vmatprep.subr.mxu0 0.0
        %1045 = vmatpush1.msra.mxu0 %v1039
        %1046 = vmatprep.subr.mxu0 0.0
        %1047 = vmatpush1.msra.mxu0 0.0
        %1048 = vmatprep.subr.mxu0 0.0
        %1049 = vmatpush1.msra.mxu0 0.0
        %1050 = vmatprep.subr.mxu0 0.0
        %1051 = vmatpush1.msra.mxu0 0.0
        %1052 = vmatprep.subr.mxu0 0.0
        %1053 = vmatpush1.msra.mxu0 0.0
        %1054 = vmatprep.subr.mxu0 0.0
        %1055 = vmatpush1.msra.mxu0 0.0
        %1056 = vmatprep.subr.mxu0 0.0
        %1057 = vmatpush1.msra.mxu0 0.0
        %1058 = vmatprep.subr.mxu0 0.0
        %1059 = vmatpush1.msra.mxu0 0.0
        %1060 = vmatprep.subr.mxu0 0.0
        %1061 = vmatpush1.msra.mxu0 0.0
        %1062 = vmatprep.subr.mxu0 0.0
        %1063 = vmatpush1.msra.mxu0 0.0
        %1064 = vmatprep.subr.mxu0 0.0
        %1065 = vmatpush1.msra.mxu0 0.0
        %1066 = vmatprep.subr.mxu0 0.0
        %1067 = vmatpush1.msra.mxu0 0.0
        %1068 = vmatprep.subr.mxu0 0.0
        %1069 = vmatpush1.msra.mxu0 0.0
        %1070 = vmatprep.subr.mxu0 0.0
        %1071 = vmatpush1.msra.mxu0 0.0
        %1072 = vmatprep.subr.mxu0 0.0
        %1073 = vmatpush1.msra.mxu0 0.0
        %1074 = vmatprep.subr.mxu0 0.0
        %1075 = vmatpush1.msra.mxu0 0.0
        %1076 = vmatprep.subr.mxu0 0.0
        %1077 = vmatpush1.msra.mxu0 0.0
        %1078 = vmatprep.subr.mxu0 0.0
        %1079 = vmatpush1.msra.mxu0 0.0
        %1080 = vmatprep.subr.mxu0 0.0
        %1081 = vmatpush1.msra.mxu0 0.0
        %1082 = vmatprep.subr.mxu0 0.0
        %1083 = vmatpush1.msra.mxu0 0.0
        %1084 = vmatprep.subr.mxu0 0.0
        %1085 = vmatpush1.msra.mxu0 0.0
        %1086 = vmatprep.subr.mxu0 0.0
        %1087 = vmatpush1.msra.mxu0 0.0
        %1088 = vmatprep.subr.mxu0 0.0
        %1089 = vmatpush1.msra.mxu0 0.0
        %1090 = vmatprep.subr.mxu0 0.0
        %1091 = vmatpush1.msra.mxu0 0.0
        %1092 = vmatprep.subr.mxu0 0.0
        %1093 = vmatpush1.msra.mxu0 0.0
        %1094 = vmatprep.subr.mxu0 0.0
        %1095 = vmatpush1.msra.mxu0 0.0
        %1096 = vmatprep.subr.mxu0 0.0
        %1097 = vmatpush1.msra.mxu0 0.0
        %1098 = vmatprep.subr.mxu0 0.0
        %1099 = vmatpush1.msra.mxu0 0.0
        %1100 = vmatprep.subr.mxu0 0.0
        %1101 = vmatpush1.msra.mxu0 0.0
        %1102 = vmatprep.subr.mxu0 0.0
        %1103 = vmatpush1.msra.mxu0 0.0
        %1104 = vmatprep.subr.mxu0 0.0
        %1105 = vmatpush1.msra.mxu0 0.0
        %1106 = vmatprep.subr.mxu0 0.0
        %1107 = vmatpush1.msra.mxu0 0.0
        %1108 = vmatprep.mubr.f32.mxu0 0.0
        %1109 = vmatmul.mubr.f32.gmra.mrb[0].mxu0 %v1042
        %v1110 = vpop.f32.mrb[0].mxu0
        %v1111 = vadd.f32 0.0, %v1110
        %v1112 = vpop.f32.mrb[0].mxu0
        %1113 = vdwg.mxu0
        %1114 = vrot.lane.b32.xlu0 %v935, 112
        %v1115 = vpop.permute.xlu0 %1114
        %1116 = vrot.lane.b32.xlu0 %v935, 80
        %v1117 = vpop.permute.xlu0 %1116
        %v1118 = vsel %vm951, %v1115, 0
        %v1120 = vsel %vm951, %v1117, 0
        %1122 = vmatprep.subr.mxu0 0.0
        %1123 = vmatpush1.xpose.msra.mxu0 %v1120
        %1124 = vmatprep.subr.mxu0 0.0
        %1125 = vmatpush1.xpose.msra.mxu0 0.0
        %1126 = vmatprep.subr.mxu0 0.0
        %1127 = vmatpush1.xpose.msra.mxu0 0.0
        %1128 = vmatprep.subr.mxu0 0.0
        %1129 = vmatpush1.xpose.msra.mxu0 0.0
        %1130 = vmatprep.subr.mxu0 0.0
        %1131 = vmatpush1.xpose.msra.mxu0 0.0
        %1132 = vmatprep.subr.mxu0 0.0
        %1133 = vmatpush1.xpose.msra.mxu0 0.0
        %1134 = vmatprep.subr.mxu0 0.0
        %1135 = vmatpush1.xpose.msra.mxu0 0.0
        %1136 = vmatprep.subr.mxu0 0.0
        %1137 = vmatpush1.xpose.msra.mxu0 0.0
        %1138 = vmatprep.subr.mxu0 0.0
        %1139 = vmatpush1.xpose.msra.mxu0 0.0
        %1140 = vmatprep.subr.mxu0 0.0
        %1141 = vmatpush1.xpose.msra.mxu0 0.0
        %1142 = vmatprep.subr.mxu0 0.0
        %1143 = vmatpush1.xpose.msra.mxu0 0.0
        %1144 = vmatprep.subr.mxu0 0.0
        %1145 = vmatpush1.xpose.msra.mxu0 0.0
        %1146 = vmatprep.subr.mxu0 0.0
        %1147 = vmatpush1.xpose.msra.mxu0 0.0
        %1148 = vmatprep.subr.mxu0 0.0
        %1149 = vmatpush1.xpose.msra.mxu0 0.0
        %1150 = vmatprep.subr.mxu0 0.0
        %1151 = vmatpush1.xpose.msra.mxu0 0.0
        %1152 = vmatprep.subr.mxu0 0.0
        %1153 = vmatpush1.xpose.msra.mxu0 0.0
        %1154 = vmatprep.subr.mxu0 0.0
        %1155 = vmatpush1.xpose.msra.mxu0 0.0
        %1156 = vmatprep.subr.mxu0 0.0
        %1157 = vmatpush1.xpose.msra.mxu0 0.0
        %1158 = vmatprep.subr.mxu0 0.0
        %1159 = vmatpush1.xpose.msra.mxu0 0.0
        %1160 = vmatprep.subr.mxu0 0.0
        %1161 = vmatpush1.xpose.msra.mxu0 0.0
        %1162 = vmatprep.subr.mxu0 0.0
        %1163 = vmatpush1.xpose.msra.mxu0 0.0
        %1164 = vmatprep.subr.mxu0 0.0
        %1165 = vmatpush1.xpose.msra.mxu0 0.0
        %1166 = vmatprep.subr.mxu0 0.0
        %1167 = vmatpush1.xpose.msra.mxu0 0.0
        %1168 = vmatprep.subr.mxu0 0.0
        %1169 = vmatpush1.xpose.msra.mxu0 0.0
        %1170 = vmatprep.subr.mxu0 0.0
        %1171 = vmatpush1.xpose.msra.mxu0 0.0
        %1172 = vmatprep.subr.mxu0 0.0
        %1173 = vmatpush1.xpose.msra.mxu0 0.0
        %1174 = vmatprep.subr.mxu0 0.0
        %1175 = vmatpush1.xpose.msra.mxu0 0.0
        %1176 = vmatprep.subr.mxu0 0.0
        %1177 = vmatpush1.xpose.msra.mxu0 0.0
        %1178 = vmatprep.subr.mxu0 0.0
        %1179 = vmatpush1.xpose.msra.mxu0 0.0
        %1180 = vmatprep.subr.mxu0 0.0
        %1181 = vmatpush1.xpose.msra.mxu0 0.0
        %1182 = vmatprep.subr.mxu0 0.0
        %1183 = vmatpush1.xpose.msra.mxu0 0.0
        %1184 = vmatprep.subr.mxu0 0.0
        %1185 = vmatpush1.xpose.msra.mxu0 0.0
        %1186 = vmatprep.mubr.f32.mxu0 0.0
        %1187 = vmatmul.mubr.f32.gmra.mrb[0].mxu0 %v1118
        %v1188 = vpop.f32.mrb[0].mxu0
        %v1189 = vadd.f32 %v946, %v1188
        %v1190 = vpop.f32.mrb[0].mxu0
        %1191 = vdwg.mxu0
        %v1192 = vsel %vm1026, %v1189, -inf
        %1193 = vmax.xlane.f32.xlu0 %v1192
        %v1194 = vpop.xlane.xlu0 %1193
        %v1195 = vsub.f32 %v1189, %v1194
        %v1196 = vmul.f32 %v1195, 1.442695
        %v1197 = vpow.pop %v1196
        %v1198 = vsel %vm1026, %v1197, 0.0
        %1199 = vadd.xlane.f32.xlu0 %v1198
        %v1200 = vpop.xlane.xlu0 %1199
        %v1201 = vrcp.pop %v1200
        %v1202 = vmul.f32 %v1197, %v1201
        %1203 = vrot.lane.b32.xlu0 %v935, 48
        %v1204 = vpop.permute.xlu0 %1203
        %v1207 = vsel %vm1026, %v1202, 0
        %1209 = vmatprep.subr.mxu0 0.0
        %1210 = vmatpush1.msra.mxu0 %v1204
        %1211 = vmatprep.subr.mxu0 0.0
        %1212 = vmatpush1.msra.mxu0 0.0
        %1213 = vmatprep.subr.mxu0 0.0
        %1214 = vmatpush1.msra.mxu0 0.0
        %1215 = vmatprep.subr.mxu0 0.0
        %1216 = vmatpush1.msra.mxu0 0.0
        %1217 = vmatprep.subr.mxu0 0.0
        %1218 = vmatpush1.msra.mxu0 0.0
        %1219 = vmatprep.subr.mxu0 0.0
        %1220 = vmatpush1.msra.mxu0 0.0
        %1221 = vmatprep.subr.mxu0 0.0
        %1222 = vmatpush1.msra.mxu0 0.0
        %1223 = vmatprep.subr.mxu0 0.0
        %1224 = vmatpush1.msra.mxu0 0.0
        %1225 = vmatprep.subr.mxu0 0.0
        %1226 = vmatpush1.msra.mxu0 0.0
        %1227 = vmatprep.subr.mxu0 0.0
        %1228 = vmatpush1.msra.mxu0 0.0
        %1229 = vmatprep.subr.mxu0 0.0
        %1230 = vmatpush1.msra.mxu0 0.0
        %1231 = vmatprep.subr.mxu0 0.0
        %1232 = vmatpush1.msra.mxu0 0.0
        %1233 = vmatprep.subr.mxu0 0.0
        %1234 = vmatpush1.msra.mxu0 0.0
        %1235 = vmatprep.subr.mxu0 0.0
        %1236 = vmatpush1.msra.mxu0 0.0
        %1237 = vmatprep.subr.mxu0 0.0
        %1238 = vmatpush1.msra.mxu0 0.0
        %1239 = vmatprep.subr.mxu0 0.0
        %1240 = vmatpush1.msra.mxu0 0.0
        %1241 = vmatprep.subr.mxu0 0.0
        %1242 = vmatpush1.msra.mxu0 0.0
        %1243 = vmatprep.subr.mxu0 0.0
        %1244 = vmatpush1.msra.mxu0 0.0
        %1245 = vmatprep.subr.mxu0 0.0
        %1246 = vmatpush1.msra.mxu0 0.0
        %1247 = vmatprep.subr.mxu0 0.0
        %1248 = vmatpush1.msra.mxu0 0.0
        %1249 = vmatprep.subr.mxu0 0.0
        %1250 = vmatpush1.msra.mxu0 0.0
        %1251 = vmatprep.subr.mxu0 0.0
        %1252 = vmatpush1.msra.mxu0 0.0
        %1253 = vmatprep.subr.mxu0 0.0
        %1254 = vmatpush1.msra.mxu0 0.0
        %1255 = vmatprep.subr.mxu0 0.0
        %1256 = vmatpush1.msra.mxu0 0.0
        %1257 = vmatprep.subr.mxu0 0.0
        %1258 = vmatpush1.msra.mxu0 0.0
        %1259 = vmatprep.subr.mxu0 0.0
        %1260 = vmatpush1.msra.mxu0 0.0
        %1261 = vmatprep.subr.mxu0 0.0
        %1262 = vmatpush1.msra.mxu0 0.0
        %1263 = vmatprep.subr.mxu0 0.0
        %1264 = vmatpush1.msra.mxu0 0.0
        %1265 = vmatprep.subr.mxu0 0.0
        %1266 = vmatpush1.msra.mxu0 0.0
        %1267 = vmatprep.subr.mxu0 0.0
        %1268 = vmatpush1.msra.mxu0 0.0
        %1269 = vmatprep.subr.mxu0 0.0
        %1270 = vmatpush1.msra.mxu0 0.0
        %1271 = vmatprep.subr.mxu0 0.0
        %1272 = vmatpush1.msra.mxu0 0.0
        %1273 = vmatprep.mubr.f32.mxu0 0.0
        %1274 = vmatmul.mubr.f32.gmra.mrb[0].mxu0 %v1207
        %v1275 = vpop.f32.mrb[0].mxu0
        %v1276 = vadd.f32 0.0, %v1275
        %v1277 = vpop.f32.mrb[0].mxu0
        %1278 = vdwg.mxu0
        %v1280 = vsel %vm951, %v1276, 0
        %1282 = vmatprep.subr.mxu0 0.0
        %1283 = vmatpush1.msra.mxu0 %v940
        %1284 = vmatprep.subr.mxu0 0.0
        %1285 = vmatpush1.msra.mxu0 %v941
        %1286 = vmatprep.subr.mxu0 0.0
        %1287 = vmatpush1.msra.mxu0 0.0
        %1288 = vmatprep.subr.mxu0 0.0
        %1289 = vmatpush1.msra.mxu0 0.0
        %1290 = vmatprep.subr.mxu0 0.0
        %1291 = vmatpush1.msra.mxu0 0.0
        %1292 = vmatprep.subr.mxu0 0.0
        %1293 = vmatpush1.msra.mxu0 0.0
        %1294 = vmatprep.subr.mxu0 0.0
        %1295 = vmatpush1.msra.mxu0 0.0
        %1296 = vmatprep.subr.mxu0 0.0
        %1297 = vmatpush1.msra.mxu0 0.0
        %1298 = vmatprep.subr.mxu0 0.0
        %1299 = vmatpush1.msra.mxu0 0.0
        %1300 = vmatprep.subr.mxu0 0.0
        %1301 = vmatpush1.msra.mxu0 0.0
        %1302 = vmatprep.subr.mxu0 0.0
        %1303 = vmatpush1.msra.mxu0 0.0
        %1304 = vmatprep.subr.mxu0 0.0
        %1305 = vmatpush1.msra.mxu0 0.0
        %1306 = vmatprep.subr.mxu0 0.0
        %1307 = vmatpush1.msra.mxu0 0.0
        %1308 = vmatprep.subr.mxu0 0.0
        %1309 = vmatpush1.msra.mxu0 0.0
        %1310 = vmatprep.subr.mxu0 0.0
        %1311 = vmatpush1.msra.mxu0 0.0
        %1312 = vmatprep.subr.mxu0 0.0
        %1313 = vmatpush1.msra.mxu0 0.0
        %1314 = vmatprep.subr.mxu0 0.0
        %1315 = vmatpush1.msra.mxu0 0.0
        %1316 = vmatprep.subr.mxu0 0.0
        %1317 = vmatpush1.msra.mxu0 0.0
        %1318 = vmatprep.subr.mxu0 0.0
        %1319 = vmatpush1.msra.mxu0 0.0
        %1320 = vmatprep.subr.mxu0 0.0
        %1321 = vmatpush1.msra.mxu0 0.0
        %1322 = vmatprep.subr.mxu0 0.0
        %1323 = vmatpush1.msra.mxu0 0.0
        %1324 = vmatprep.subr.mxu0 0.0
        %1325 = vmatpush1.msra.mxu0 0.0
        %1326 = vmatprep.subr.mxu0 0.0
        %1327 = vmatpush1.msra.mxu0 0.0
        %1328 = vmatprep.subr.mxu0 0.0
        %1329 = vmatpush1.msra.mxu0 0.0
        %1330 = vmatprep.subr.mxu0 0.0
        %1331 = vmatpush1.msra.mxu0 0.0
        %1332 = vmatprep.subr.mxu0 0.0
        %1333 = vmatpush1.msra.mxu0 0.0
        %1334 = vmatprep.subr.mxu0 0.0
        %1335 = vmatpush1.msra.mxu0 0.0
        %1336 = vmatprep.subr.mxu0 0.0
        %1337 = vmatpush1.msra.mxu0 0.0
        %1338 = vmatprep.subr.mxu0 0.0
        %1339 = vmatpush1.msra.mxu0 0.0
        %1340 = vmatprep.subr.mxu0 0.0
        %1341 = vmatpush1.msra.mxu0 0.0
        %1342 = vmatprep.subr.mxu0 0.0
        %1343 = vmatpush1.msra.mxu0 0.0
        %1344 = vmatprep.subr.mxu0 0.0
        %1345 = vmatpush1.msra.mxu0 0.0
        %1346 = vmatprep.mubr.f32.mxu0 0.0
        %1347 = vmatmul.mubr.f32.gmra.mrb[0].mxu0 %v1280
        %v1348 = vpop.f32.mrb[0].mxu0
        %v1349 = vadd.f32 0.0, %v1348
        %v1350 = vpop.f32.mrb[0].mxu0
        %1351 = vdwg.mxu0
        %v1353 = vsel %vm951, %v1111, 0
        %1355 = vmatprep.subr.mxu0 0.0
        %1356 = vmatpush1.msra.mxu0 %v938
        %1357 = vmatprep.subr.mxu0 0.0
        %1358 = vmatpush1.msra.mxu0 %v939
        %1359 = vmatprep.subr.mxu0 0.0
        %1360 = vmatpush1.msra.mxu0 0.0
        %1361 = vmatprep.subr.mxu0 0.0
        %1362 = vmatpush1.msra.mxu0 0.0
        %1363 = vmatprep.subr.mxu0 0.0
        %1364 = vmatpush1.msra.mxu0 0.0
        %1365 = vmatprep.subr.mxu0 0.0
        %1366 = vmatpush1.msra.mxu0 0.0
        %1367 = vmatprep.subr.mxu0 0.0
        %1368 = vmatpush1.msra.mxu0 0.0
        %1369 = vmatprep.subr.mxu0 0.0
        %1370 = vmatpush1.msra.mxu0 0.0
        %1371 = vmatprep.subr.mxu0 0.0
        %1372 = vmatpush1.msra.mxu0 0.0
        %1373 = vmatprep.subr.mxu0 0.0
        %1374 = vmatpush1.msra.mxu0 0.0
        %1375 = vmatprep.subr.mxu0 0.0
        %1376 = vmatpush1.msra.mxu0 0.0
        %1377 = vmatprep.subr.mxu0 0.0
        %1378 = vmatpush1.msra.mxu0 0.0
        %1379 = vmatprep.subr.mxu0 0.0
        %1380 = vmatpush1.msra.mxu0 0.0
        %1381 = vmatprep.subr.mxu0 0.0
        %1382 = vmatpush1.msra.mxu0 0.0
        %1383 = vmatprep.subr.mxu0 0.0
        %1384 = vmatpush1.msra.mxu0 0.0
        %1385 = vmatprep.subr.mxu0 0.0
        %1386 = vmatpush1.msra.mxu0 0.0
        %1387 = vmatprep.subr.mxu0 0.0
        %1388 = vmatpush1.msra.mxu0 0.0
        %1389 = vmatprep.subr.mxu0 0.0
        %1390 = vmatpush1.msra.mxu0 0.0
        %1391 = vmatprep.subr.mxu0 0.0
        %1392 = vmatpush1.msra.mxu0 0.0
        %1393 = vmatprep.subr.mxu0 0.0
        %1394 = vmatpush1.msra.mxu0 0.0
        %1395 = vmatprep.subr.mxu0 0.0
        %1396 = vmatpush1.msra.mxu0 0.0
        %1397 = vmatprep.subr.mxu0 0.0
        %1398 = vmatpush1.msra.mxu0 0.0
        %1399 = vmatprep.subr.mxu0 0.0
        %1400 = vmatpush1.msra.mxu0 0.0
        %1401 = vmatprep.subr.mxu0 0.0
        %1402 = vmatpush1.msra.mxu0 0.0
        %1403 = vmatprep.subr.mxu0 0.0
        %1404 = vmatpush1.msra.mxu0 0.0
        %1405 = vmatprep.subr.mxu0 0.0
        %1406 = vmatpush1.msra.mxu0 0.0
        %1407 = vmatprep.subr.mxu0 0.0
        %1408 = vmatpush1.msra.mxu0 0.0
        %1409 = vmatprep.subr.mxu0 0.0
        %1410 = vmatpush1.msra.mxu0 0.0
        %1411 = vmatprep.subr.mxu0 0.0
        %1412 = vmatpush1.msra.mxu0 0.0
        %1413 = vmatprep.subr.mxu0 0.0
        %1414 = vmatpush1.msra.mxu0 0.0
        %1415 = vmatprep.subr.mxu0 0.0
        %1416 = vmatpush1.msra.mxu0 0.0
        %1417 = vmatprep.subr.mxu0 0.0
        %1418 = vmatpush1.msra.mxu0 0.0
        %1419 = vmatprep.mubr.f32.mxu0 0.0
        %1420 = vmatmul.mubr.f32.gmra.mrb[0].mxu0 %v1353
        %v1421 = vpop.f32.mrb[0].mxu0
        %v1422 = vadd.f32 %v1349, %v1421
        %v1423 = vpop.f32.mrb[0].mxu0
        %1424 = vdwg.mxu0
        %v1425 = vld [vmem:[%s10] sm:$0x1]
        %v1427 = vlaneseq
        %v1428 = vshrl.u32 %v1427, 7
        %v1429 = vsub.s32 0, %v1428
        %v1430 = vrot.slane %v1425, %v1429
        %v1432 = vadd.f32 %v1422, %v1430
        %v1433 = vadd.f32 %v1432, %v850
        %v1434 = vld [vmem:[%s11] sm:$0x1]
        %v1435 = vld [vmem:[%s12] sm:$0x1]
        %v1436 = vsel %vm822, %v1433, 0.0
        %1437 = vadd.xlane.f32.xlu0 %v1436
        %v1438 = vpop.xlane.xlu0 %1437
        %v1439 = vmul.f32 %v1438, %v826
        %v1440 = vsub.f32 %v1433, %v1439
        %v1441 = vmul.f32 %v1440, %v1440
        %v1442 = vsel %vm822, %v1441, 0.0
        %1443 = vadd.xlane.f32.xlu0 %v1442
        %v1444 = vpop.xlane.xlu0 %1443
        %v1445 = vmul.f32 %v1444, %v826
        %v1446 = vadd.f32 %v1445, 1e-12
        %v1447 = vrsqrt.pop %v1446
        %v1448 = vmul.f32 %v1440, %v1447
        %v1450 = vlaneseq
        %v1451 = vshrl.u32 %v1450, 7
        %v1452 = vsub.s32 0, %v1451
        %v1453 = vrot.slane %v1434, %v1452
        %v1455 = vmul.f32 %v1448, %v1453
        %v1457 = vlaneseq
        %v1458 = vshrl.u32 %v1457, 7
        %v1459 = vsub.s32 0, %v1458
        %v1460 = vrot.slane %v1435, %v1459
        %v1462 = vadd.f32 %v1455, %v1460
        %v1463 = vld [vmem:[%s13] sm:$0xff]
        %v1464 = vld [vmem:[%s13 + $0x8] sm:$0xff]
        %v1465 = vld [vmem:[%s13 + $0x10] sm:$0xff]
        %v1466 = vld [vmem:[%s13 + $0x18] sm:$0xff]
        %v1467 = vld [vmem:[%s14] sm:$0x1]
        %v1469 = vlaneseq
        %v1470 = vshrl.u32 %v1469, 7
        %v1471 = vsub.s32 0, %v1470
        %v1472 = vrot.slane %v1467, %v1471
        %v1475 = vsel %vm822, %v1462, 0
        %1477 = vmatprep.subr.mxu0 0.0
        %1478 = vmatpush1.msra.mxu0 %v1463
        %1479 = vmatprep.subr.mxu0 0.0
        %1480 = vmatpush1.msra.mxu0 %v1464
        %1481 = vmatprep.subr.mxu0 0.0
        %1482 = vmatpush1.msra.mxu0 %v1465
        %1483 = vmatprep.subr.mxu0 0.0
        %1484 = vmatpush1.msra.mxu0 %v1466
        %1485 = vmatprep.subr.mxu0 0.0
        %1486 = vmatpush1.msra.mxu0 0.0
        %1487 = vmatprep.subr.mxu0 0.0
        %1488 = vmatpush1.msra.mxu0 0.0
        %1489 = vmatprep.subr.mxu0 0.0
        %1490 = vmatpush1.msra.mxu0 0.0
        %1491 = vmatprep.subr.mxu0 0.0
        %1492 = vmatpush1.msra.mxu0 0.0
        %1493 = vmatprep.subr.mxu0 0.0
        %1494 = vmatpush1.msra.mxu0 0.0
        %1495 = vmatprep.subr.mxu0 0.0
        %1496 = vmatpush1.msra.mxu0 0.0
        %1497 = vmatprep.subr.mxu0 0.0
        %1498 = vmatpush1.msra.mxu0 0.0
        %1499 = vmatprep.subr.mxu0 0.0
        %1500 = vmatpush1.msra.mxu0 0.0
        %1501 = vmatprep.subr.mxu0 0.0
        %1502 = vmatpush1.msra.mxu0 0.0
        %1503 = vmatprep.subr.mxu0 0.0
        %1504 = vmatpush1.msra.mxu0 0.0
        %1505 = vmatprep.subr.mxu0 0.0
        %1506 = vmatpush1.msra.mxu0 0.0
        %1507 = vmatprep.subr.mxu0 0.0
        %1508 = vmatpush1.msra.mxu0 0.0
        %1509 = vmatprep.subr.mxu0 0.0
        %1510 = vmatpush1.msra.mxu0 0.0
        %1511 = vmatprep.subr.mxu0 0.0
        %1512 = vmatpush1.msra.mxu0 0.0
        %1513 = vmatprep.subr.mxu0 0.0
        %1514 = vmatpush1.msra.mxu0 0.0
        %1515 = vmatprep.subr.mxu0 0.0
        %1516 = vmatpush1.msra.mxu0 0.0
        %1517 = vmatprep.subr.mxu0 0.0
        %1518 = vmatpush1.msra.mxu0 0.0
        %1519 = vmatprep.subr.mxu0 0.0
        %1520 = vmatpush1.msra.mxu0 0.0
        %1521 = vmatprep.subr.mxu0 0.0
        %1522 = vmatpush1.msra.mxu0 0.0
        %1523 = vmatprep.subr.mxu0 0.0
        %1524 = vmatpush1.msra.mxu0 0.0
        %1525 = vmatprep.subr.mxu0 0.0
        %1526 = vmatpush1.msra.mxu0 0.0
        %1527 = vmatprep.subr.mxu0 0.0
        %1528 = vmatpush1.msra.mxu0 0.0
        %1529 = vmatprep.subr.mxu0 0.0
        %1530 = vmatpush1.msra.mxu0 0.0
        %1531 = vmatprep.subr.mxu0 0.0
        %1532 = vmatpush1.msra.mxu0 0.0
        %1533 = vmatprep.subr.mxu0 0.0
        %1534 = vmatpush1.msra.mxu0 0.0
        %1535 = vmatprep.subr.mxu0 0.0
        %1536 = vmatpush1.msra.mxu0 0.0
        %1537 = vmatprep.subr.mxu0 0.0
        %1538 = vmatpush1.msra.mxu0 0.0
        %1539 = vmatprep.subr.mxu0 0.0
        %1540 = vmatpush1.msra.mxu0 0.0
        %1541 = vmatprep.mubr.f32.mxu0 0.0
        %1542 = vmatmul.mubr.f32.gmra.mrb[0].mxu0 %v1475
        %v1543 = vpop.f32.mrb[0].mxu0
        %v1544 = vadd.f32 %v1472, %v1543
        %v1545 = vpop.f32.mrb[0].mxu0
        %1546 = vdwg.mxu0
        %v1547 = vmul.f32 %v1544, 0.5
        %v1548 = vmul.f32 %v1544, 0.044715
        %v1549 = vmul.f32 %v1548, %v1544
        %v1550 = vmul.f32 %v1549, %v1544
        %v1551 = vadd.f32 %v1544, %v1550
        %v1552 = vmul.f32 %v1551, 0.7978846
        %v1553 = vtanh.pop %v1552
        %v1554 = vadd.f32 %v1553, 1.0
        %v1555 = vmul.f32 %v1547, %v1554
        %v1556 = vld [vmem:[%s15] sm:$0xff]
        %v1557 = vld [vmem:[%s15 + $0x8] sm:$0xff]
        %v1558 = vld [vmem:[%s15 + $0x10] sm:$0xff]
        %v1559 = vld [vmem:[%s15 + $0x18] sm:$0xff]
        %v1560 = vld [vmem:[%s15 + $0x20] sm:$0xff]
        %v1561 = vld [vmem:[%s15 + $0x28] sm:$0xff]
        %v1562 = vld [vmem:[%s15 + $0x30] sm:$0xff]
        %v1563 = vld [vmem:[%s15 + $0x38] sm:$0xff]
        %v1564 = vld [vmem:[%s16] sm:$0x1]
        %v1566 = vlaneseq
        %v1567 = vshrl.u32 %v1566, 7
        %v1568 = vsub.s32 0, %v1567
        %v1569 = vrot.slane %v1564, %v1568
        %vm1571 = vcmask 523264
        %v1573 = vsel %vm1571, %v1555, 0
        %1575 = vmatprep.subr.mxu0 0.0
        %1576 = vmatpush1.msra.mxu0 %v1556
        %1577 = vmatprep.subr.mxu0 0.0
        %1578 = vmatpush1.msra.mxu0 %v1557
        %1579 = vmatprep.subr.mxu0 0.0
        %1580 = vmatpush1.msra.mxu0 %v1558
        %1581 = vmatprep.subr.mxu0 0.0
        %1582 = vmatpush1.msra.mxu0 %v1559
        %1583 = vmatprep.subr.mxu0 0.0
        %1584 = vmatpush1.msra.mxu0 %v1560
        %1585 = vmatprep.subr.mxu0 0.0
        %1586 = vmatpush1.msra.mxu0 %v1561
        %1587 = vmatprep.subr.mxu0 0.0
        %1588 = vmatpush1.msra.mxu0 %v1562
        %1589 = vmatprep.subr.mxu0 0.0
        %1590 = vmatpush1.msra.mxu0 %v1563
        %1591 = vmatprep.subr.mxu0 0.0
        %1592 = vmatpush1.msra.mxu0 0.0
        %1593 = vmatprep.subr.mxu0 0.0
        %1594 = vmatpush1.msra.mxu0 0.0
        %1595 = vmatprep.subr.mxu0 0.0
        %1596 = vmatpush1.msra.mxu0 0.0
        %1597 = vmatprep.subr.mxu0 0.0
        %1598 = vmatpush1.msra.mxu0 0.0
        %1599 = vmatprep.subr.mxu0 0.0
        %1600 = vmatpush1.msra.mxu0 0.0
        %1601 = vmatprep.subr.mxu0 0.0
        %1602 = vmatpush1.msra.mxu0 0.0
        %1603 = vmatprep.subr.mxu0 0.0
        %1604 = vmatpush1.msra.mxu0 0.0
        %1605 = vmatprep.subr.mxu0 0.0
        %1606 = vmatpush1.msra.mxu0 0.0
        %1607 = vmatprep.subr.mxu0 0.0
        %1608 = vmatpush1.msra.mxu0 0.0
        %1609 = vmatprep.subr.mxu0 0.0
        %1610 = vmatpush1.msra.mxu0 0.0
        %1611 = vmatprep.subr.mxu0 0.0
        %1612 = vmatpush1.msra.mxu0 0.0
        %1613 = vmatprep.subr.mxu0 0.0
        %1614 = vmatpush1.msra.mxu0 0.0
        %1615 = vmatprep.subr.mxu0 0.0
        %1616 = vmatpush1.msra.mxu0 0.0
        %1617 = vmatprep.subr.mxu0 0.0
        %1618 = vmatpush1.msra.mxu0 0.0
        %1619 = vmatprep.subr.mxu0 0.0
        %1620 = vmatpush1.msra.mxu0 0.0
        %1621 = vmatprep.subr.mxu0 0.0
        %1622 = vmatpush1.msra.mxu0 0.0
        %1623 = vmatprep.subr.mxu0 0.0
        %1624 = vmatpush1.msra.mxu0 0.0
        %1625 = vmatprep.subr.mxu0 0.0
        %1626 = vmatpush1.msra.mxu0 0.0
        %1627 = vmatprep.subr.mxu0 0.0
        %1628 = vmatpush1.msra.mxu0 0.0
        %1629 = vmatprep.subr.mxu0 0.0
        %1630 = vmatpush1.msra.mxu0 0.0
        %1631 = vmatprep.subr.mxu0 0.0
        %1632 = vmatpush1.msra.mxu0 0.0
        %1633 = vmatprep.subr.mxu0 0.0
        %1634 = vmatpush1.msra.mxu0 0.0
        %1635 = vmatprep.subr.mxu0 0.0
        %1636 = vmatpush1.msra.mxu0 0.0
        %1637 = vmatprep.subr.mxu0 0.0
        %1638 = vmatpush1.msra.mxu0 0.0
        %1639 = vmatprep.mubr.f32.mxu0 0.0
        %1640 = vmatmul.mubr.f32.gmra.mrb[0].mxu0 %v1573
        %v1641 = vpop.f32.mrb[0].mxu0
        %v1642 = vadd.f32 %v1569, %v1641
        %v1643 = vpop.f32.mrb[0].mxu0
        %1644 = vdwg.mxu0
        %v1645 = vadd.f32 %v1642, %v1462
        %v1646 = vld [vmem:[%s17] sm:$0x1]
        %v1647 = vld [vmem:[%s18] sm:$0x1]
        %v1648 = vsel %vm822, %v1645, 0.0
        %1649 = vadd.xlane.f32.xlu0 %v1648
        %v1650 = vpop.xlane.xlu0 %1649
        %v1651 = vmul.f32 %v1650, %v826
        %v1652 = vsub.f32 %v1645, %v1651
        %v1653 = vmul.f32 %v1652, %v1652
        %v1654 = vsel %vm822, %v1653, 0.0
        %1655 = vadd.xlane.f32.xlu0 %v1654
        %v1656 = vpop.xlane.xlu0 %1655
        %v1657 = vmul.f32 %v1656, %v826
        %v1658 = vadd.f32 %v1657, 1e-12
        %v1659 = vrsqrt.pop %v1658
        %v1660 = vmul.f32 %v1652, %v1659
        %v1662 = vlaneseq
        %v1663 = vshrl.u32 %v1662, 7
        %v1664 = vsub.s32 0, %v1663
        %v1665 = vrot.slane %v1646, %v1664
        %v1667 = vmul.f32 %v1660, %v1665
        %v1669 = vlaneseq
        %v1670 = vshrl.u32 %v1669, 7
        %v1671 = vsub.s32 0, %v1670
        %v1672 = vrot.slane %v1647, %v1671
        %v1674 = vadd.f32 %v1667, %v1672
        %s1675 = scalar_lea.vmem %s7, 32
        %v1676 = vld [vmem:[%s1675] sm:$0xff]
        %v1677 = vld [vmem:[%s1675 + $0x8] sm:$0xff]
        %v1678 = vld [vmem:[%s1675 + $0x10] sm:$0xff]
        %v1679 = vld [vmem:[%s1675 + $0x18] sm:$0xff]
        %s1680 = scalar_lea.vmem %s8, 1
        %v1681 = vld [vmem:[%s1680] sm:$0x1]
        %v1683 = vlaneseq
        %v1684 = vshrl.u32 %v1683, 7
        %v1685 = vsub.s32 0, %v1684
        %v1686 = vrot.slane %v1681, %v1685
        %v1689 = vsel %vm822, %v1674, 0
        %1691 = vmatprep.subr.mxu0 0.0
        %1692 = vmatpush1.msra.mxu0 %v1676
        %1693 = vmatprep.subr.mxu0 0.0
        %1694 = vmatpush1.msra.mxu0 %v1677
        %1695 = vmatprep.subr.mxu0 0.0
        %1696 = vmatpush1.msra.mxu0 %v1678
        %1697 = vmatprep.subr.mxu0 0.0
        %1698 = vmatpush1.msra.mxu0 %v1679
        %1699 = vmatprep.subr.mxu0 0.0
        %1700 = vmatpush1.msra.mxu0 0.0
        %1701 = vmatprep.subr.mxu0 0.0
        %1702 = vmatpush1.msra.mxu0 0.0
        %1703 = vmatprep.subr.mxu0 0.0
        %1704 = vmatpush1.msra.mxu0 0.0
        %1705 = vmatprep.subr.mxu0 0.0
        %1706 = vmatpush1.msra.mxu0 0.0
        %1707 = vmatprep.subr.mxu0 0.0
        %1708 = vmatpush1.msra.mxu0 0.0
        %1709 = vmatprep.subr.mxu0 0.0
        %1710 = vmatpush1.msra.mxu0 0.0
        %1711 = vmatprep.subr.mxu0 0.0
        %1712 = vmatpush1.msra.mxu0 0.0
        %1713 = vmatprep.subr.mxu0 0.0
        %1714 = vmatpush1.msra.mxu0 0.0
        %1715 = vmatprep.subr.mxu0 0.0
        %1716 = vmatpush1.msra.mxu0 0.0
        %1717 = vmatprep.subr.mxu0 0.0
        %1718 = vmatpush1.msra.mxu0 0.0
        %1719 = vmatprep.subr.mxu0 0.0
        %1720 = vmatpush1.msra.mxu0 0.0
        %1721 = vmatprep.subr.mxu0 0.0
        %1722 = vmatpush1.msra.mxu0 0.0
        %1723 = vmatprep.subr.mxu0 0.0
        %1724 = vmatpush1.msra.mxu0 0.0
        %1725 = vmatprep.subr.mxu0 0.0
        %1726 = vmatpush1.msra.mxu0 0.0
        %1727 = vmatprep.subr.mxu0 0.0
        %1728 = vmatpush1.msra.mxu0 0.0
        %1729 = vmatprep.subr.mxu0 0.0
        %1730 = vmatpush1.msra.mxu0 0.0
        %1731 = vmatprep.subr.mxu0 0.0
        %1732 = vmatpush1.msra.mxu0 0.0
        %1733 = vmatprep.subr.mxu0 0.0
        %1734 = vmatpush1.msra.mxu0 0.0
        %1735 = vmatprep.subr.mxu0 0.0
        %1736 = vmatpush1.msra.mxu0 0.0
        %1737 = vmatprep.subr.mxu0 0.0
        %1738 = vmatpush1.msra.mxu0 0.0
        %1739 = vmatprep.subr.mxu0 0.0
        %1740 = vmatpush1.msra.mxu0 0.0
        %1741 = vmatprep.subr.mxu0 0.0
        %1742 = vmatpush1.msra.mxu0 0.0
        %1743 = vmatprep.subr.mxu0 0.0
        %1744 = vmatpush1.msra.mxu0 0.0
        %1745 = vmatprep.subr.mxu0 0.0
        %1746 = vmatpush1.msra.mxu0 0.0
        %1747 = vmatprep.subr.mxu0 0.0
        %1748 = vmatpush1.msra.mxu0 0.0
        %1749 = vmatprep.subr.mxu0 0.0
        %1750 = vmatpush1.msra.mxu0 0.0
        %1751 = vmatprep.subr.mxu0 0.0
        %1752 = vmatpush1.msra.mxu0 0.0
        %1753 = vmatprep.subr.mxu0 0.0
        %1754 = vmatpush1.msra.mxu0 0.0
        %1755 = vmatprep.mubr.f32.mxu0 0.0
        %1756 = vmatmul.mubr.f32.gmra.mrb[0].mxu0 %v1689
        %v1757 = vpop.f32.mrb[0].mxu0
        %v1758 = vadd.f32 %v1686, %v1757
        %v1759 = vpop.f32.mrb[0].mxu0
        %1760 = vdwg.mxu0
        %s1761 = scalar_lea.vmem %s9, 32
        %v1762 = vld [vmem:[%s1761] sm:$0xff]
        %v1763 = vld [vmem:[%s1761 + $0x8] sm:$0xff]
        %v1764 = vld [vmem:[%s1761 + $0x10] sm:$0xff]
        %v1765 = vld [vmem:[%s1761 + $0x18] sm:$0xff]
        %1767 = vrot.lane.b32.xlu0 %v1758, 96
        %v1768 = vpop.permute.xlu0 %1767
        %v1769 = vsel %vm951, %v1758, 0
        %v1771 = vsel %vm951, %v1768, 0
        %1773 = vmatprep.subr.mxu0 0.0
        %1774 = vmatpush1.xpose.msra.mxu0 %v1771
        %1775 = vmatprep.subr.mxu0 0.0
        %1776 = vmatpush1.xpose.msra.mxu0 0.0
        %1777 = vmatprep.subr.mxu0 0.0
        %1778 = vmatpush1.xpose.msra.mxu0 0.0
        %1779 = vmatprep.subr.mxu0 0.0
        %1780 = vmatpush1.xpose.msra.mxu0 0.0
        %1781 = vmatprep.subr.mxu0 0.0
        %1782 = vmatpush1.xpose.msra.mxu0 0.0
        %1783 = vmatprep.subr.mxu0 0.0
        %1784 = vmatpush1.xpose.msra.mxu0 0.0
        %1785 = vmatprep.subr.mxu0 0.0
        %1786 = vmatpush1.xpose.msra.mxu0 0.0
        %1787 = vmatprep.subr.mxu0 0.0
        %1788 = vmatpush1.xpose.msra.mxu0 0.0
        %1789 = vmatprep.subr.mxu0 0.0
        %1790 = vmatpush1.xpose.msra.mxu0 0.0
        %1791 = vmatprep.subr.mxu0 0.0
        %1792 = vmatpush1.xpose.msra.mxu0 0.0
        %1793 = vmatprep.subr.mxu0 0.0
        %1794 = vmatpush1.xpose.msra.mxu0 0.0
        %1795 = vmatprep.subr.mxu0 0.0
        %1796 = vmatpush1.xpose.msra.mxu0 0.0
        %1797 = vmatprep.subr.mxu0 0.0
        %1798 = vmatpush1.xpose.msra.mxu0 0.0
        %1799 = vmatprep.subr.mxu0 0.0
        %1800 = vmatpush1.xpose.msra.mxu0 0.0
        %1801 = vmatprep.subr.mxu0 0.0
        %1802 = vmatpush1.xpose.msra.mxu0 0.0
        %1803 = vmatprep.subr.mxu0 0.0
        %1804 = vmatpush1.xpose.msra.mxu0 0.0
        %1805 = vmatprep.subr.mxu0 0.0
        %1806 = vmatpush1.xpose.msra.mxu0 0.0
        %1807 = vmatprep.subr.mxu0 0.0
        %1808 = vmatpush1.xpose.msra.mxu0 0.0
        %1809 = vmatprep.subr.mxu0 0.0
        %1810 = vmatpush1.xpose.msra.mxu0 0.0
        %1811 = vmatprep.subr.mxu0 0.0
        %1812 = vmatpush1.xpose.msra.mxu0 0.0
        %1813 = vmatprep.subr.mxu0 0.0
        %1814 = vmatpush1.xpose.msra.mxu0 0.0
        %1815 = vmatprep.subr.mxu0 0.0
        %1816 = vmatpush1.xpose.msra.mxu0 0.0
        %1817 = vmatprep.subr.mxu0 0.0
        %1818 = vmatpush1.xpose.msra.mxu0 0.0
        %1819 = vmatprep.subr.mxu0 0.0
        %1820 = vmatpush1.xpose.msra.mxu0 0.0
        %1821 = vmatprep.subr.mxu0 0.0
        %1822 = vmatpush1.xpose.msra.mxu0 0.0
        %1823 = vmatprep.subr.mxu0 0.0
        %1824 = vmatpush1.xpose.msra.mxu0 0.0
        %1825 = vmatprep.subr.mxu0 0.0
        %1826 = vmatpush1.xpose.msra.mxu0 0.0
        %1827 = vmatprep.subr.mxu0 0.0
        %1828 = vmatpush1.xpose.msra.mxu0 0.0
        %1829 = vmatprep.subr.mxu0 0.0
        %1830 = vmatpush1.xpose.msra.mxu0 0.0
        %1831 = vmatprep.subr.mxu0 0.0
        %1832 = vmatpush1.xpose.msra.mxu0 0.0
        %1833 = vmatprep.subr.mxu0 0.0
        %1834 = vmatpush1.xpose.msra.mxu0 0.0
        %1835 = vmatprep.subr.mxu0 0.0
        %1836 = vmatpush1.xpose.msra.mxu0 0.0
        %1837 = vmatprep.mubr.f32.mxu0 0.0
        %1838 = vmatmul.mubr.f32.gmra.mrb[0].mxu0 %v1769
        %v1839 = vpop.f32.mrb[0].mxu0
        %v1840 = vadd.f32 %v946, %v1839
        %v1841 = vpop.f32.mrb[0].mxu0
        %1842 = vdwg.mxu0
        %v1843 = vsel %vm1026, %v1840, -inf
        %1844 = vmax.xlane.f32.xlu0 %v1843
        %v1845 = vpop.xlane.xlu0 %1844
        %v1846 = vsub.f32 %v1840, %v1845
        %v1847 = vmul.f32 %v1846, 1.442695
        %v1848 = vpow.pop %v1847
        %v1849 = vsel %vm1026, %v1848, 0.0
        %1850 = vadd.xlane.f32.xlu0 %v1849
        %v1851 = vpop.xlane.xlu0 %1850
        %v1852 = vrcp.pop %v1851
        %v1853 = vmul.f32 %v1848, %v1852
        %1854 = vrot.lane.b32.xlu0 %v1758, 64
        %v1855 = vpop.permute.xlu0 %1854
        %v1858 = vsel %vm1026, %v1853, 0
        %1860 = vmatprep.subr.mxu0 0.0
        %1861 = vmatpush1.msra.mxu0 %v1855
        %1862 = vmatprep.subr.mxu0 0.0
        %1863 = vmatpush1.msra.mxu0 0.0
        %1864 = vmatprep.subr.mxu0 0.0
        %1865 = vmatpush1.msra.mxu0 0.0
        %1866 = vmatprep.subr.mxu0 0.0
        %1867 = vmatpush1.msra.mxu0 0.0
        %1868 = vmatprep.subr.mxu0 0.0
        %1869 = vmatpush1.msra.mxu0 0.0
        %1870 = vmatprep.subr.mxu0 0.0
        %1871 = vmatpush1.msra.mxu0 0.0
        %1872 = vmatprep.subr.mxu0 0.0
        %1873 = vmatpush1.msra.mxu0 0.0
        %1874 = vmatprep.subr.mxu0 0.0
        %1875 = vmatpush1.msra.mxu0 0.0
        %1876 = vmatprep.subr.mxu0 0.0
        %1877 = vmatpush1.msra.mxu0 0.0
        %1878 = vmatprep.subr.mxu0 0.0
        %1879 = vmatpush1.msra.mxu0 0.0
        %1880 = vmatprep.subr.mxu0 0.0
        %1881 = vmatpush1.msra.mxu0 0.0
        %1882 = vmatprep.subr.mxu0 0.0
        %1883 = vmatpush1.msra.mxu0 0.0
        %1884 = vmatprep.subr.mxu0 0.0
        %1885 = vmatpush1.msra.mxu0 0.0
        %1886 = vmatprep.subr.mxu0 0.0
        %1887 = vmatpush1.msra.mxu0 0.0
        %1888 = vmatprep.subr.mxu0 0.0
        %1889 = vmatpush1.msra.mxu0 0.0
        %1890 = vmatprep.subr.mxu0 0.0
        %1891 = vmatpush1.msra.mxu0 0.0
        %1892 = vmatprep.subr.mxu0 0.0
        %1893 = vmatpush1.msra.mxu0 0.0
        %1894 = vmatprep.subr.mxu0 0.0
        %1895 = vmatpush1.msra.mxu0 0.0
        %1896 = vmatprep.subr.mxu0 0.0
        %1897 = vmatpush1.msra.mxu0 0.0
        %1898 = vmatprep.subr.mxu0 0.0
        %1899 = vmatpush1.msra.mxu0 0.0
        %1900 = vmatprep.subr.mxu0 0.0
        %1901 = vmatpush1.msra.mxu0 0.0
        %1902 = vmatprep.subr.mxu0 0.0
        %1903 = vmatpush1.msra.mxu0 0.0
        %1904 = vmatprep.subr.mxu0 0.0
        %1905 = vmatpush1.msra.mxu0 0.0
        %1906 = vmatprep.subr.mxu0 0.0
        %1907 = vmatpush1.msra.mxu0 0.0
        %1908 = vmatprep.subr.mxu0 0.0
        %1909 = vmatpush1.msra.mxu0 0.0
        %1910 = vmatprep.subr.mxu0 0.0
        %1911 = vmatpush1.msra.mxu0 0.0
        %1912 = vmatprep.subr.mxu0 0.0
        %1913 = vmatpush1.msra.mxu0 0.0
        %1914 = vmatprep.subr.mxu0 0.0
        %1915 = vmatpush1.msra.mxu0 0.0
        %1916 = vmatprep.subr.mxu0 0.0
        %1917 = vmatpush1.msra.mxu0 0.0
        %1918 = vmatprep.subr.mxu0 0.0
        %1919 = vmatpush1.msra.mxu0 0.0
        %1920 = vmatprep.subr.mxu0 0.0
        %1921 = vmatpush1.msra.mxu0 0.0
        %1922 = vmatprep.subr.mxu0 0.0
        %1923 = vmatpush1.msra.mxu0 0.0
        %1924 = vmatprep.mubr.f32.mxu0 0.0
        %1925 = vmatmul.mubr.f32.gmra.mrb[0].mxu0 %v1858
        %v1926 = vpop.f32.mrb[0].mxu0
        %v1927 = vadd.f32 0.0, %v1926
        %v1928 = vpop.f32.mrb[0].mxu0
        %1929 = vdwg.mxu0
        %1930 = vrot.lane.b32.xlu0 %v1758, 112
        %v1931 = vpop.permute.xlu0 %1930
        %1932 = vrot.lane.b32.xlu0 %v1758, 80
        %v1933 = vpop.permute.xlu0 %1932
        %v1934 = vsel %vm951, %v1931, 0
        %v1936 = vsel %vm951, %v1933, 0
        %1938 = vmatprep.subr.mxu0 0.0
        %1939 = vmatpush1.xpose.msra.mxu0 %v1936
        %1940 = vmatprep.subr.mxu0 0.0
        %1941 = vmatpush1.xpose.msra.mxu0 0.0
        %1942 = vmatprep.subr.mxu0 0.0
        %1943 = vmatpush1.xpose.msra.mxu0 0.0
        %1944 = vmatprep.subr.mxu0 0.0
        %1945 = vmatpush1.xpose.msra.mxu0 0.0
        %1946 = vmatprep.subr.mxu0 0.0
        %1947 = vmatpush1.xpose.msra.mxu0 0.0
        %1948 = vmatprep.subr.mxu0 0.0
        %1949 = vmatpush1.xpose.msra.mxu0 0.0
        %1950 = vmatprep.subr.mxu0 0.0
        %1951 = vmatpush1.xpose.msra.mxu0 0.0
        %1952 = vmatprep.subr.mxu0 0.0
        %1953 = vmatpush1.xpose.msra.mxu0 0.0
        %1954 = vmatprep.subr.mxu0 0.0
        %1955 = vmatpush1.xpose.msra.mxu0 0.0
        %1956 = vmatprep.subr.mxu0 0.0
        %1957 = vmatpush1.xpose.msra.mxu0 0.0
        %1958 = vmatprep.subr.mxu0 0.0
        %1959 = vmatpush1.xpose.msra.mxu0 0.0
        %1960 = vmatprep.subr.mxu0 0.0
        %1961 = vmatpush1.xpose.msra.mxu0 0.0
        %1962 = vmatprep.subr.mxu0 0.0
        %1963 = vmatpush1.xpose.msra.mxu0 0.0
        %1964 = vmatprep.subr.mxu0 0.0
        %1965 = vmatpush1.xpose.msra.mxu0 0.0
        %1966 = vmatprep.subr.mxu0 0.0
        %1967 = vmatpush1.xpose.msra.mxu0 0.0
        %1968 = vmatprep.subr.mxu0 0.0
        %1969 = vmatpush1.xpose.msra.mxu0 0.0
        %1970 = vmatprep.subr.mxu0 0.0
        %1971 = vmatpush1.xpose.msra.mxu0 0.0
        %1972 = vmatprep.subr.mxu0 0.0
        %1973 = vmatpush1.xpose.msra.mxu0 0.0
        %1974 = vmatprep.subr.mxu0 0.0
        %1975 = vmatpush1.xpose.msra.mxu0 0.0
        %1976 = vmatprep.subr.mxu0 0.0
        %1977 = vmatpush1.xpose.msra.mxu0 0.0
        %1978 = vmatprep.subr.mxu0 0.0
        %1979 = vmatpush1.xpose.msra.mxu0 0.0
        %1980 = vmatprep.subr.mxu0 0.0
        %1981 = vmatpush1.xpose.msra.mxu0 0.0
        %1982 = vmatprep.subr.mxu0 0.0
        %1983 = vmatpush1.xpose.msra.mxu0 0.0
        %1984 = vmatprep.subr.mxu0 0.0
        %1985 = vmatpush1.xpose.msra.mxu0 0.0
        %1986 = vmatprep.subr.mxu0 0.0
        %1987 = vmatpush1.xpose.msra.mxu0 0.0
        %1988 = vmatprep.subr.mxu0 0.0
        %1989 = vmatpush1.xpose.msra.mxu0 0.0
        %1990 = vmatprep.subr.mxu0 0.0
        %1991 = vmatpush1.xpose.msra.mxu0 0.0
        %1992 = vmatprep.subr.mxu0 0.0
        %1993 = vmatpush1.xpose.msra.mxu0 0.0
        %1994 = vmatprep.subr.mxu0 0.0
        %1995 = vmatpush1.xpose.msra.mxu0 0.0
        %1996 = vmatprep.subr.mxu0 0.0
        %1997 = vmatpush1.xpose.msra.mxu0 0.0
        %1998 = vmatprep.subr.mxu0 0.0
        %1999 = vmatpush1.xpose.msra.mxu0 0.0
        %2000 = vmatprep.subr.mxu0 0.0
        %2001 = vmatpush1.xpose.msra.mxu0 0.0
        %2002 = vmatprep.mubr.f32.mxu0 0.0
        %2003 = vmatmul.mubr.f32.gmra.mrb[0].mxu0 %v1934
        %v2004 = vpop.f32.mrb[0].mxu0
        %v2005 = vadd.f32 %v946, %v2004
        %v2006 = vpop.f32.mrb[0].mxu0
        %2007 = vdwg.mxu0
        %v2008 = vsel %vm1026, %v2005, -inf
        %2009 = vmax.xlane.f32.xlu0 %v2008
        %v2010 = vpop.xlane.xlu0 %2009
        %v2011 = vsub.f32 %v2005, %v2010
        %v2012 = vmul.f32 %v2011, 1.442695
        %v2013 = vpow.pop %v2012
        %v2014 = vsel %vm1026, %v2013, 0.0
        %2015 = vadd.xlane.f32.xlu0 %v2014
        %v2016 = vpop.xlane.xlu0 %2015
        %v2017 = vrcp.pop %v2016
        %v2018 = vmul.f32 %v2013, %v2017
        %2019 = vrot.lane.b32.xlu0 %v1758, 48
        %v2020 = vpop.permute.xlu0 %2019
        %v2023 = vsel %vm1026, %v2018, 0
        %2025 = vmatprep.subr.mxu0 0.0
        %2026 = vmatpush1.msra.mxu0 %v2020
        %2027 = vmatprep.subr.mxu0 0.0
        %2028 = vmatpush1.msra.mxu0 0.0
        %2029 = vmatprep.subr.mxu0 0.0
        %2030 = vmatpush1.msra.mxu0 0.0
        %2031 = vmatprep.subr.mxu0 0.0
        %2032 = vmatpush1.msra.mxu0 0.0
        %2033 = vmatprep.subr.mxu0 0.0
        %2034 = vmatpush1.msra.mxu0 0.0
        %2035 = vmatprep.subr.mxu0 0.0
        %2036 = vmatpush1.msra.mxu0 0.0
        %2037 = vmatprep.subr.mxu0 0.0
        %2038 = vmatpush1.msra.mxu0 0.0
        %2039 = vmatprep.subr.mxu0 0.0
        %2040 = vmatpush1.msra.mxu0 0.0
        %2041 = vmatprep.subr.mxu0 0.0
        %2042 = vmatpush1.msra.mxu0 0.0
        %2043 = vmatprep.subr.mxu0 0.0
        %2044 = vmatpush1.msra.mxu0 0.0
        %2045 = vmatprep.subr.mxu0 0.0
        %2046 = vmatpush1.msra.mxu0 0.0
        %2047 = vmatprep.subr.mxu0 0.0
        %2048 = vmatpush1.msra.mxu0 0.0
        %2049 = vmatprep.subr.mxu0 0.0
        %2050 = vmatpush1.msra.mxu0 0.0
        %2051 = vmatprep.subr.mxu0 0.0
        %2052 = vmatpush1.msra.mxu0 0.0
        %2053 = vmatprep.subr.mxu0 0.0
        %2054 = vmatpush1.msra.mxu0 0.0
        %2055 = vmatprep.subr.mxu0 0.0
        %2056 = vmatpush1.msra.mxu0 0.0
        %2057 = vmatprep.subr.mxu0 0.0
        %2058 = vmatpush1.msra.mxu0 0.0
        %2059 = vmatprep.subr.mxu0 0.0
        %2060 = vmatpush1.msra.mxu0 0.0
        %2061 = vmatprep.subr.mxu0 0.0
        %2062 = vmatpush1.msra.mxu0 0.0
        %2063 = vmatprep.subr.mxu0 0.0
        %2064 = vmatpush1.msra.mxu0 0.0
        %2065 = vmatprep.subr.mxu0 0.0
        %2066 = vmatpush1.msra.mxu0 0.0
        %2067 = vmatprep.subr.mxu0 0.0
        %2068 = vmatpush1.msra.mxu0 0.0
        %2069 = vmatprep.subr.mxu0 0.0
        %2070 = vmatpush1.msra.mxu0 0.0
        %2071 = vmatprep.subr.mxu0 0.0
        %2072 = vmatpush1.msra.mxu0 0.0
        %2073 = vmatprep.subr.mxu0 0.0
        %2074 = vmatpush1.msra.mxu0 0.0
        %2075 = vmatprep.subr.mxu0 0.0
        %2076 = vmatpush1.msra.mxu0 0.0
        %2077 = vmatprep.subr.mxu0 0.0
        %2078 = vmatpush1.msra.mxu0 0.0
        %2079 = vmatprep.subr.mxu0 0.0
        %2080 = vmatpush1.msra.mxu0 0.0
        %2081 = vmatprep.subr.mxu0 0.0
        %2082 = vmatpush1.msra.mxu0 0.0
        %2083 = vmatprep.subr.mxu0 0.0
        %2084 = vmatpush1.msra.mxu0 0.0
        %2085 = vmatprep.subr.mxu0 0.0
        %2086 = vmatpush1.msra.mxu0 0.0
        %2087 = vmatprep.subr.mxu0 0.0
        %2088 = vmatpush1.msra.mxu0 0.0
        %2089 = vmatprep.mubr.f32.mxu0 0.0
        %2090 = vmatmul.mubr.f32.gmra.mrb[0].mxu0 %v2023
        %v2091 = vpop.f32.mrb[0].mxu0
        %v2092 = vadd.f32 0.0, %v2091
        %v2093 = vpop.f32.mrb[0].mxu0
        %2094 = vdwg.mxu0
        %v2096 = vsel %vm951, %v2092, 0
        %2098 = vmatprep.subr.mxu0 0.0
        %2099 = vmatpush1.msra.mxu0 %v1764
        %2100 = vmatprep.subr.mxu0 0.0
        %2101 = vmatpush1.msra.mxu0 %v1765
        %2102 = vmatprep.subr.mxu0 0.0
        %2103 = vmatpush1.msra.mxu0 0.0
        %2104 = vmatprep.subr.mxu0 0.0
        %2105 = vmatpush1.msra.mxu0 0.0
        %2106 = vmatprep.subr.mxu0 0.0
        %2107 = vmatpush1.msra.mxu0 0.0
        %2108 = vmatprep.subr.mxu0 0.0
        %2109 = vmatpush1.msra.mxu0 0.0
        %2110 = vmatprep.subr.mxu0 0.0
        %2111 = vmatpush1.msra.mxu0 0.0
        %2112 = vmatprep.subr.mxu0 0.0
        %2113 = vmatpush1.msra.mxu0 0.0
        %2114 = vmatprep.subr.mxu0 0.0
        %2115 = vmatpush1.msra.mxu0 0.0
        %2116 = vmatprep.subr.mxu0 0.0
        %2117 = vmatpush1.msra.mxu0 0.0
        %2118 = vmatprep.subr.mxu0 0.0
        %2119 = vmatpush1.msra.mxu0 0.0
        %2120 = vmatprep.subr.mxu0 0.0
        %2121 = vmatpush1.msra.mxu0 0.0
        %2122 = vmatprep.subr.mxu0 0.0
        %2123 = vmatpush1.msra.mxu0 0.0
        %2124 = vmatprep.subr.mxu0 0.0
        %2125 = vmatpush1.msra.mxu0 0.0
        %2126 = vmatprep.subr.mxu0 0.0
        %2127 = vmatpush1.msra.mxu0 0.0
        %2128 = vmatprep.subr.mxu0 0.0
        %2129 = vmatpush1.msra.mxu0 0.0
        %2130 = vmatprep.subr.mxu0 0.0
        %2131 = vmatpush1.msra.mxu0 0.0
        %2132 = vmatprep.subr.mxu0 0.0
        %2133 = vmatpush1.msra.mxu0 0.0
        %2134 = vmatprep.subr.mxu0 0.0
        %2135 = vmatpush1.msra.mxu0 0.0
        %2136 = vmatprep.subr.mxu0 0.0
        %2137 = vmatpush1.msra.mxu0 0.0
        %2138 = vmatprep.subr.mxu0 0.0
        %2139 = vmatpush1.msra.mxu0 0.0
        %2140 = vmatprep.subr.mxu0 0.0
        %2141 = vmatpush1.msra.mxu0 0.0
        %2142 = vmatprep.subr.mxu0 0.0
        %2143 = vmatpush1.msra.mxu0 0.0
        %2144 = vmatprep.subr.mxu0 0.0
        %2145 = vmatpush1.msra.mxu0 0.0
        %2146 = vmatprep.subr.mxu0 0.0
        %2147 = vmatpush1.msra.mxu0 0.0
        %2148 = vmatprep.subr.mxu0 0.0
        %2149 = vmatpush1.msra.mxu0 0.0
        %2150 = vmatprep.subr.mxu0 0.0
        %2151 = vmatpush1.msra.mxu0 0.0
        %2152 = vmatprep.subr.mxu0 0.0
        %2153 = vmatpush1.msra.mxu0 0.0
        %2154 = vmatprep.subr.mxu0 0.0
        %2155 = vmatpush1.msra.mxu0 0.0
        %2156 = vmatprep.subr.mxu0 0.0
        %2157 = vmatpush1.msra.mxu0 0.0
        %2158 = vmatprep.subr.mxu0 0.0
        %2159 = vmatpush1.msra.mxu0 0.0
        %2160 = vmatprep.subr.mxu0 0.0
        %2161 = vmatpush1.msra.mxu0 0.0
        %2162 = vmatprep.mubr.f32.mxu0 0.0
        %2163 = vmatmul.mubr.f32.gmra.mrb[0].mxu0 %v2096
        %v2164 = vpop.f32.mrb[0].mxu0
        %v2165 = vadd.f32 0.0, %v2164
        %v2166 = vpop.f32.mrb[0].mxu0
        %2167 = vdwg.mxu0
        %v2169 = vsel %vm951, %v1927, 0
        %2171 = vmatprep.subr.mxu0 0.0
        %2172 = vmatpush1.msra.mxu0 %v1762
        %2173 = vmatprep.subr.mxu0 0.0
        %2174 = vmatpush1.msra.mxu0 %v1763
        %2175 = vmatprep.subr.mxu0 0.0
        %2176 = vmatpush1.msra.mxu0 0.0
        %2177 = vmatprep.subr.mxu0 0.0
        %2178 = vmatpush1.msra.mxu0 0.0
        %2179 = vmatprep.subr.mxu0 0.0
        %2180 = vmatpush1.msra.mxu0 0.0
        %2181 = vmatprep.subr.mxu0 0.0
        %2182 = vmatpush1.msra.mxu0 0.0
        %2183 = vmatprep.subr.mxu0 0.0
        %2184 = vmatpush1.msra.mxu0 0.0
        %2185 = vmatprep.subr.mxu0 0.0
        %2186 = vmatpush1.msra.mxu0 0.0
        %2187 = vmatprep.subr.mxu0 0.0
        %2188 = vmatpush1.msra.mxu0 0.0
        %2189 = vmatprep.subr.mxu0 0.0
        %2190 = vmatpush1.msra.mxu0 0.0
        %2191 = vmatprep.subr.mxu0 0.0
        %2192 = vmatpush1.msra.mxu0 0.0
        %2193 = vmatprep.subr.mxu0 0.0
        %2194 = vmatpush1.msra.mxu0 0.0
        %2195 = vmatprep.subr.mxu0 0.0
        %2196 = vmatpush1.msra.mxu0 0.0
        %2197 = vmatprep.subr.mxu0 0.0
        %2198 = vmatpush1.msra.mxu0 0.0
        %2199 = vmatprep.subr.mxu0 0.0
        %2200 = vmatpush1.msra.mxu0 0.0
        %2201 = vmatprep.subr.mxu0 0.0
        %2202 = vmatpush1.msra.mxu0 0.0
        %2203 = vmatprep.subr.mxu0 0.0
        %2204 = vmatpush1.msra.mxu0 0.0
        %2205 = vmatprep.subr.mxu0 0.0
        %2206 = vmatpush1.msra.mxu0 0.0
        %2207 = vmatprep.subr.mxu0 0.0
        %2208 = vmatpush1.msra.mxu0 0.0
        %2209 = vmatprep.subr.mxu0 0.0
        %2210 = vmatpush1.msra.mxu0 0.0
        %2211 = vmatprep.subr.mxu0 0.0
        %2212 = vmatpush1.msra.mxu0 0.0
        %2213 = vmatprep.subr.mxu0 0.0
        %2214 = vmatpush1.msra.mxu0 0.0
        %2215 = vmatprep.subr.mxu0 0.0
        %2216 = vmatpush1.msra.mxu0 0.0
        %2217 = vmatprep.subr.mxu0 0.0
        %2218 = vmatpush1.msra.mxu0 0.0
        %2219 = vmatprep.subr.mxu0 0.0
        %2220 = vmatpush1.msra.mxu0 0.0
        %2221 = vmatprep.subr.mxu0 0.0
        %2222 = vmatpush1.msra.mxu0 0.0
        %2223 = vmatprep.subr.mxu0 0.0
        %2224 = vmatpush1.msra.mxu0 0.0
        %2225 = vmatprep.subr.mxu0 0.0
        %2226 = vmatpush1.msra.mxu0 0.0
        %2227 = vmatprep.subr.mxu0 0.0
        %2228 = vmatpush1.msra.mxu0 0.0
        %2229 = vmatprep.subr.mxu0 0.0
        %2230 = vmatpush1.msra.mxu0 0.0
        %2231 = vmatprep.subr.mxu0 0.0
        %2232 = vmatpush1.msra.mxu0 0.0
        %2233 = vmatprep.subr.mxu0 0.0
        %2234 = vmatpush1.msra.mxu0 0.0
        %2235 = vmatprep.mubr.f32.mxu0 0.0
        %2236 = vmatmul.mubr.f32.gmra.mrb[0].mxu0 %v2169
        %v2237 = vpop.f32.mrb[0].mxu0
        %v2238 = vadd.f32 %v2165, %v2237
        %v2239 = vpop.f32.mrb[0].mxu0
        %2240 = vdwg.mxu0
        %s2241 = scalar_lea.vmem %s10, 1
        %v2242 = vld [vmem:[%s2241] sm:$0x1]
        %v2244 = vlaneseq
        %v2245 = vshrl.u32 %v2244, 7
        %v2246 = vsub.s32 0, %v2245
        %v2247 = vrot.slane %v2242, %v2246
        %v2249 = vadd.f32 %v2238, %v2247
        %v2250 = vadd.f32 %v2249, %v1674
        %s2251 = scalar_lea.vmem %s11, 1
        %v2252 = vld [vmem:[%s2251] sm:$0x1]
        %s2253 = scalar_lea.vmem %s12, 1
        %v2254 = vld [vmem:[%s2253] sm:$0x1]
        %v2255 = vsel %vm822, %v2250, 0.0
        %2256 = vadd.xlane.f32.xlu0 %v2255
        %v2257 = vpop.xlane.xlu0 %2256
        %v2258 = vmul.f32 %v2257, %v826
        %v2259 = vsub.f32 %v2250, %v2258
        %v2260 = vmul.f32 %v2259, %v2259
        %v2261 = vsel %vm822, %v2260, 0.0
        %2262 = vadd.xlane.f32.xlu0 %v2261
        %v2263 = vpop.xlane.xlu0 %2262
        %v2264 = vmul.f32 %v2263, %v826
        %v2265 = vadd.f32 %v2264, 1e-12
        %v2266 = vrsqrt.pop %v2265
        %v2267 = vmul.f32 %v2259, %v2266
        %v2269 = vlaneseq
        %v2270 = vshrl.u32 %v2269, 7
        %v2271 = vsub.s32 0, %v2270
        %v2272 = vrot.slane %v2252, %v2271
        %v2274 = vmul.f32 %v2267, %v2272
        %v2276 = vlaneseq
        %v2277 = vshrl.u32 %v2276, 7
        %v2278 = vsub.s32 0, %v2277
        %v2279 = vrot.slane %v2254, %v2278
        %v2281 = vadd.f32 %v2274, %v2279
        %s2282 = scalar_lea.vmem %s13, 32
        %v2283 = vld [vmem:[%s2282] sm:$0xff]
        %v2284 = vld [vmem:[%s2282 + $0x8] sm:$0xff]
        %v2285 = vld [vmem:[%s2282 + $0x10] sm:$0xff]
        %v2286 = vld [vmem:[%s2282 + $0x18] sm:$0xff]
        %s2287 = scalar_lea.vmem %s14, 1
        %v2288 = vld [vmem:[%s2287] sm:$0x1]
        %v2290 = vlaneseq
        %v2291 = vshrl.u32 %v2290, 7
        %v2292 = vsub.s32 0, %v2291
        %v2293 = vrot.slane %v2288, %v2292
        %v2296 = vsel %vm822, %v2281, 0
        %2298 = vmatprep.subr.mxu0 0.0
        %2299 = vmatpush1.msra.mxu0 %v2283
        %2300 = vmatprep.subr.mxu0 0.0
        %2301 = vmatpush1.msra.mxu0 %v2284
        %2302 = vmatprep.subr.mxu0 0.0
        %2303 = vmatpush1.msra.mxu0 %v2285
        %2304 = vmatprep.subr.mxu0 0.0
        %2305 = vmatpush1.msra.mxu0 %v2286
        %2306 = vmatprep.subr.mxu0 0.0
        %2307 = vmatpush1.msra.mxu0 0.0
        %2308 = vmatprep.subr.mxu0 0.0
        %2309 = vmatpush1.msra.mxu0 0.0
        %2310 = vmatprep.subr.mxu0 0.0
        %2311 = vmatpush1.msra.mxu0 0.0
        %2312 = vmatprep.subr.mxu0 0.0
        %2313 = vmatpush1.msra.mxu0 0.0
        %2314 = vmatprep.subr.mxu0 0.0
        %2315 = vmatpush1.msra.mxu0 0.0
        %2316 = vmatprep.subr.mxu0 0.0
        %2317 = vmatpush1.msra.mxu0 0.0
        %2318 = vmatprep.subr.mxu0 0.0
        %2319 = vmatpush1.msra.mxu0 0.0
        %2320 = vmatprep.subr.mxu0 0.0
        %2321 = vmatpush1.msra.mxu0 0.0
        %2322 = vmatprep.subr.mxu0 0.0
        %2323 = vmatpush1.msra.mxu0 0.0
        %2324 = vmatprep.subr.mxu0 0.0
        %2325 = vmatpush1.msra.mxu0 0.0
        %2326 = vmatprep.subr.mxu0 0.0
        %2327 = vmatpush1.msra.mxu0 0.0
        %2328 = vmatprep.subr.mxu0 0.0
        %2329 = vmatpush1.msra.mxu0 0.0
        %2330 = vmatprep.subr.mxu0 0.0
        %2331 = vmatpush1.msra.mxu0 0.0
        %2332 = vmatprep.subr.mxu0 0.0
        %2333 = vmatpush1.msra.mxu0 0.0
        %2334 = vmatprep.subr.mxu0 0.0
        %2335 = vmatpush1.msra.mxu0 0.0
        %2336 = vmatprep.subr.mxu0 0.0
        %2337 = vmatpush1.msra.mxu0 0.0
        %2338 = vmatprep.subr.mxu0 0.0
        %2339 = vmatpush1.msra.mxu0 0.0
        %2340 = vmatprep.subr.mxu0 0.0
        %2341 = vmatpush1.msra.mxu0 0.0
        %2342 = vmatprep.subr.mxu0 0.0
        %2343 = vmatpush1.msra.mxu0 0.0
        %2344 = vmatprep.subr.mxu0 0.0
        %2345 = vmatpush1.msra.mxu0 0.0
        %2346 = vmatprep.subr.mxu0 0.0
        %2347 = vmatpush1.msra.mxu0 0.0
        %2348 = vmatprep.subr.mxu0 0.0
        %2349 = vmatpush1.msra.mxu0 0.0
        %2350 = vmatprep.subr.mxu0 0.0
        %2351 = vmatpush1.msra.mxu0 0.0
        %2352 = vmatprep.subr.mxu0 0.0
        %2353 = vmatpush1.msra.mxu0 0.0
        %2354 = vmatprep.subr.mxu0 0.0
        %2355 = vmatpush1.msra.mxu0 0.0
        %2356 = vmatprep.subr.mxu0 0.0
        %2357 = vmatpush1.msra.mxu0 0.0
        %2358 = vmatprep.subr.mxu0 0.0
        %2359 = vmatpush1.msra.mxu0 0.0
        %2360 = vmatprep.subr.mxu0 0.0
        %2361 = vmatpush1.msra.mxu0 0.0
        %2362 = vmatprep.mubr.f32.mxu0 0.0
        %2363 = vmatmul.mubr.f32.gmra.mrb[0].mxu0 %v2296
        %v2364 = vpop.f32.mrb[0].mxu0
        %v2365 = vadd.f32 %v2293, %v2364
        %v2366 = vpop.f32.mrb[0].mxu0
        %2367 = vdwg.mxu0
        %v2368 = vmul.f32 %v2365, 0.5
        %v2369 = vmul.f32 %v2365, 0.044715
        %v2370 = vmul.f32 %v2369, %v2365
        %v2371 = vmul.f32 %v2370, %v2365
        %v2372 = vadd.f32 %v2365, %v2371
        %v2373 = vmul.f32 %v2372, 0.7978846
        %v2374 = vtanh.pop %v2373
        %v2375 = vadd.f32 %v2374, 1.0
        %v2376 = vmul.f32 %v2368, %v2375
        %s2377 = scalar_lea.vmem %s15, 64
        %v2378 = vld [vmem:[%s2377] sm:$0xff]
        %v2379 = vld [vmem:[%s2377 + $0x8] sm:$0xff]
        %v2380 = vld [vmem:[%s2377 + $0x10] sm:$0xff]
        %v2381 = vld [vmem:[%s2377 + $0x18] sm:$0xff]
        %v2382 = vld [vmem:[%s2377 + $0x20] sm:$0xff]
        %v2383 = vld [vmem:[%s2377 + $0x28] sm:$0xff]
        %v2384 = vld [vmem:[%s2377 + $0x30] sm:$0xff]
        %v2385 = vld [vmem:[%s2377 + $0x38] sm:$0xff]
        %s2386 = scalar_lea.vmem %s16, 1
        %v2387 = vld [vmem:[%s2386] sm:$0x1]
        %v2389 = vlaneseq
        %v2390 = vshrl.u32 %v2389, 7
        %v2391 = vsub.s32 0, %v2390
        %v2392 = vrot.slane %v2387, %v2391
        %v2395 = vsel %vm1571, %v2376, 0
        %2397 = vmatprep.subr.mxu0 0.0
        %2398 = vmatpush1.msra.mxu0 %v2378
        %2399 = vmatprep.subr.mxu0 0.0
        %2400 = vmatpush1.msra.mxu0 %v2379
        %2401 = vmatprep.subr.mxu0 0.0
        %2402 = vmatpush1.msra.mxu0 %v2380
        %2403 = vmatprep.subr.mxu0 0.0
        %2404 = vmatpush1.msra.mxu0 %v2381
        %2405 = vmatprep.subr.mxu0 0.0
        %2406 = vmatpush1.msra.mxu0 %v2382
        %2407 = vmatprep.subr.mxu0 0.0
        %2408 = vmatpush1.msra.mxu0 %v2383
        %2409 = vmatprep.subr.mxu0 0.0
        %2410 = vmatpush1.msra.mxu0 %v2384
        %2411 = vmatprep.subr.mxu0 0.0
        %2412 = vmatpush1.msra.mxu0 %v2385
        %2413 = vmatprep.subr.mxu0 0.0
        %2414 = vmatpush1.msra.mxu0 0.0
        %2415 = vmatprep.subr.mxu0 0.0
        %2416 = vmatpush1.msra.mxu0 0.0
        %2417 = vmatprep.subr.mxu0 0.0
        %2418 = vmatpush1.msra.mxu0 0.0
        %2419 = vmatprep.subr.mxu0 0.0
        %2420 = vmatpush1.msra.mxu0 0.0
        %2421 = vmatprep.subr.mxu0 0.0
        %2422 = vmatpush1.msra.mxu0 0.0
        %2423 = vmatprep.subr.mxu0 0.0
        %2424 = vmatpush1.msra.mxu0 0.0
        %2425 = vmatprep.subr.mxu0 0.0
        %2426 = vmatpush1.msra.mxu0 0.0
        %2427 = vmatprep.subr.mxu0 0.0
        %2428 = vmatpush1.msra.mxu0 0.0
        %2429 = vmatprep.subr.mxu0 0.0
        %2430 = vmatpush1.msra.mxu0 0.0
        %2431 = vmatprep.subr.mxu0 0.0
        %2432 = vmatpush1.msra.mxu0 0.0
        %2433 = vmatprep.subr.mxu0 0.0
        %2434 = vmatpush1.msra.mxu0 0.0
        %2435 = vmatprep.subr.mxu0 0.0
        %2436 = vmatpush1.msra.mxu0 0.0
        %2437 = vmatprep.subr.mxu0 0.0
        %2438 = vmatpush1.msra.mxu0 0.0
        %2439 = vmatprep.subr.mxu0 0.0
        %2440 = vmatpush1.msra.mxu0 0.0
        %2441 = vmatprep.subr.mxu0 0.0
        %2442 = vmatpush1.msra.mxu0 0.0
        %2443 = vmatprep.subr.mxu0 0.0
        %2444 = vmatpush1.msra.mxu0 0.0
        %2445 = vmatprep.subr.mxu0 0.0
        %2446 = vmatpush1.msra.mxu0 0.0
        %2447 = vmatprep.subr.mxu0 0.0
        %2448 = vmatpush1.msra.mxu0 0.0
        %2449 = vmatprep.subr.mxu0 0.0
        %2450 = vmatpush1.msra.mxu0 0.0
        %2451 = vmatprep.subr.mxu0 0.0
        %2452 = vmatpush1.msra.mxu0 0.0
        %2453 = vmatprep.subr.mxu0 0.0
        %2454 = vmatpush1.msra.mxu0 0.0
        %2455 = vmatprep.subr.mxu0 0.0
        %2456 = vmatpush1.msra.mxu0 0.0
        %2457 = vmatprep.subr.mxu0 0.0
        %2458 = vmatpush1.msra.mxu0 0.0
        %2459 = vmatprep.subr.mxu0 0.0
        %2460 = vmatpush1.msra.mxu0 0.0
        %2461 = vmatprep.mubr.f32.mxu0 0.0
        %2462 = vmatmul.mubr.f32.gmra.mrb[0].mxu0 %v2395
        %v2463 = vpop.f32.mrb[0].mxu0
        %v2464 = vadd.f32 %v2392, %v2463
        %v2465 = vpop.f32.mrb[0].mxu0
        %2466 = vdwg.mxu0
        %v2467 = vadd.f32 %v2464, %v2281
        %s2468 = scalar_lea.vmem %s17, 1
        %v2469 = vld [vmem:[%s2468] sm:$0x1]
        %s2470 = scalar_lea.vmem %s18, 1
        %v2471 = vld [vmem:[%s2470] sm:$0x1]
        %v2472 = vsel %vm822, %v2467, 0.0
        %2473 = vadd.xlane.f32.xlu0 %v2472
        %v2474 = vpop.xlane.xlu0 %2473
        %v2475 = vmul.f32 %v2474, %v826
        %v2476 = vsub.f32 %v2467, %v2475
        %v2477 = vmul.f32 %v2476, %v2476
        %v2478 = vsel %vm822, %v2477, 0.0
        %2479 = vadd.xlane.f32.xlu0 %v2478
        %v2480 = vpop.xlane.xlu0 %2479
        %v2481 = vmul.f32 %v2480, %v826
        %v2482 = vadd.f32 %v2481, 1e-12
        %v2483 = vrsqrt.pop %v2482
        %v2484 = vmul.f32 %v2476, %v2483
        %v2486 = vlaneseq
        %v2487 = vshrl.u32 %v2486, 7
        %v2488 = vsub.s32 0, %v2487
        %v2489 = vrot.slane %v2469, %v2488
        %v2491 = vmul.f32 %v2484, %v2489
        %v2493 = vlaneseq
        %v2494 = vshrl.u32 %v2493, 7
        %v2495 = vsub.s32 0, %v2494
        %v2496 = vrot.slane %v2471, %v2495
        %v2498 = vadd.f32 %v2491, %v2496
        %v2499 = vld [vmem:[%s19] sm:$0xff]
        %v2500 = vld [vmem:[%s19 + $0x8] sm:$0xff]
        %v2501 = vld [vmem:[%s19 + $0x10] sm:$0xff]
        %v2502 = vld [vmem:[%s19 + $0x18] sm:$0xff]
        %v2503 = vld [vmem:[%s20] sm:$0x1]
        %v2505 = vsel %vm822, %v2498, 0
        %2507 = vmatprep.subr.mxu0 0.0
        %2508 = vmatpush1.msra.mxu0 %v2499
        %2509 = vmatprep.subr.mxu0 0.0
        %2510 = vmatpush1.msra.mxu0 %v2500
        %2511 = vmatprep.subr.mxu0 0.0
        %2512 = vmatpush1.msra.mxu0 %v2501
        %2513 = vmatprep.subr.mxu0 0.0
        %2514 = vmatpush1.msra.mxu0 %v2502
        %2515 = vmatprep.subr.mxu0 0.0
        %2516 = vmatpush1.msra.mxu0 0.0
        %2517 = vmatprep.subr.mxu0 0.0
        %2518 = vmatpush1.msra.mxu0 0.0
        %2519 = vmatprep.subr.mxu0 0.0
        %2520 = vmatpush1.msra.mxu0 0.0
        %2521 = vmatprep.subr.mxu0 0.0
        %2522 = vmatpush1.msra.mxu0 0.0
        %2523 = vmatprep.subr.mxu0 0.0
        %2524 = vmatpush1.msra.mxu0 0.0
        %2525 = vmatprep.subr.mxu0 0.0
        %2526 = vmatpush1.msra.mxu0 0.0
        %2527 = vmatprep.subr.mxu0 0.0
        %2528 = vmatpush1.msra.mxu0 0.0
        %2529 = vmatprep.subr.mxu0 0.0
        %2530 = vmatpush1.msra.mxu0 0.0
        %2531 = vmatprep.subr.mxu0 0.0
        %2532 = vmatpush1.msra.mxu0 0.0
        %2533 = vmatprep.subr.mxu0 0.0
        %2534 = vmatpush1.msra.mxu0 0.0
        %2535 = vmatprep.subr.mxu0 0.0
        %2536 = vmatpush1.msra.mxu0 0.0
        %2537 = vmatprep.subr.mxu0 0.0
        %2538 = vmatpush1.msra.mxu0 0.0
        %2539 = vmatprep.subr.mxu0 0.0
        %2540 = vmatpush1.msra.mxu0 0.0
        %2541 = vmatprep.subr.mxu0 0.0
        %2542 = vmatpush1.msra.mxu0 0.0
        %2543 = vmatprep.subr.mxu0 0.0
        %2544 = vmatpush1.msra.mxu0 0.0
        %2545 = vmatprep.subr.mxu0 0.0
        %2546 = vmatpush1.msra.mxu0 0.0
        %2547 = vmatprep.subr.mxu0 0.0
        %2548 = vmatpush1.msra.mxu0 0.0
        %2549 = vmatprep.subr.mxu0 0.0
        %2550 = vmatpush1.msra.mxu0 0.0
        %2551 = vmatprep.subr.mxu0 0.0
        %2552 = vmatpush1.msra.mxu0 0.0
        %2553 = vmatprep.subr.mxu0 0.0
        %2554 = vmatpush1.msra.mxu0 0.0
        %2555 = vmatprep.subr.mxu0 0.0
        %2556 = vmatpush1.msra.mxu0 0.0
        %2557 = vmatprep.subr.mxu0 0.0
        %2558 = vmatpush1.msra.mxu0 0.0
        %2559 = vmatprep.subr.mxu0 0.0
        %2560 = vmatpush1.msra.mxu0 0.0
        %2561 = vmatprep.subr.mxu0 0.0
        %2562 = vmatpush1.msra.mxu0 0.0
        %2563 = vmatprep.subr.mxu0 0.0
        %2564 = vmatpush1.msra.mxu0 0.0
        %2565 = vmatprep.subr.mxu0 0.0
        %2566 = vmatpush1.msra.mxu0 0.0
        %2567 = vmatprep.subr.mxu0 0.0
        %2568 = vmatpush1.msra.mxu0 0.0
        %2569 = vmatprep.subr.mxu0 0.0
        %2570 = vmatpush1.msra.mxu0 0.0
        %2571 = vmatprep.mubr.f32.mxu0 0.0
        %2572 = vmatmul.mubr.f32.gmra.mrb[0].mxu0 %v2505
        %v2573 = vpop.f32.mrb[0].mxu0
        %v2574 = vadd.f32 %v2503, %v2573
        %v2575 = vpop.f32.mrb[0].mxu0
        %2576 = vdwg.mxu0
        %v2577 = vtanh.pop %v2574
        %v2578 = vld [vmem:[%s21] sm:$0xff]
        %v2579 = vld [vmem:[%s21 + $0x8] sm:$0xff]
        %v2580 = vld [vmem:[%s21 + $0x10] sm:$0xff]
        %v2581 = vld [vmem:[%s21 + $0x18] sm:$0xff]
        %v2582 = vld [vmem:[%s22] sm:$0x1]
        %v2584 = vsel %vm822, %v2577, 0
        %2586 = vmatprep.subr.mxu0 0.0
        %2587 = vmatpush1.msra.mxu0 %v2578
        %2588 = vmatprep.subr.mxu0 0.0
        %2589 = vmatpush1.msra.mxu0 %v2579
        %2590 = vmatprep.subr.mxu0 0.0
        %2591 = vmatpush1.msra.mxu0 %v2580
        %2592 = vmatprep.subr.mxu0 0.0
        %2593 = vmatpush1.msra.mxu0 %v2581
        %2594 = vmatprep.subr.mxu0 0.0
        %2595 = vmatpush1.msra.mxu0 0.0
        %2596 = vmatprep.subr.mxu0 0.0
        %2597 = vmatpush1.msra.mxu0 0.0
        %2598 = vmatprep.subr.mxu0 0.0
        %2599 = vmatpush1.msra.mxu0 0.0
        %2600 = vmatprep.subr.mxu0 0.0
        %2601 = vmatpush1.msra.mxu0 0.0
        %2602 = vmatprep.subr.mxu0 0.0
        %2603 = vmatpush1.msra.mxu0 0.0
        %2604 = vmatprep.subr.mxu0 0.0
        %2605 = vmatpush1.msra.mxu0 0.0
        %2606 = vmatprep.subr.mxu0 0.0
        %2607 = vmatpush1.msra.mxu0 0.0
        %2608 = vmatprep.subr.mxu0 0.0
        %2609 = vmatpush1.msra.mxu0 0.0
        %2610 = vmatprep.subr.mxu0 0.0
        %2611 = vmatpush1.msra.mxu0 0.0
        %2612 = vmatprep.subr.mxu0 0.0
        %2613 = vmatpush1.msra.mxu0 0.0
        %2614 = vmatprep.subr.mxu0 0.0
        %2615 = vmatpush1.msra.mxu0 0.0
        %2616 = vmatprep.subr.mxu0 0.0
        %2617 = vmatpush1.msra.mxu0 0.0
        %2618 = vmatprep.subr.mxu0 0.0
        %2619 = vmatpush1.msra.mxu0 0.0
        %2620 = vmatprep.subr.mxu0 0.0
        %2621 = vmatpush1.msra.mxu0 0.0
        %2622 = vmatprep.subr.mxu0 0.0
        %2623 = vmatpush1.msra.mxu0 0.0
        %2624 = vmatprep.subr.mxu0 0.0
        %2625 = vmatpush1.msra.mxu0 0.0
        %2626 = vmatprep.subr.mxu0 0.0
        %2627 = vmatpush1.msra.mxu0 0.0
        %2628 = vmatprep.subr.mxu0 0.0
        %2629 = vmatpush1.msra.mxu0 0.0
        %2630 = vmatprep.subr.mxu0 0.0
        %2631 = vmatpush1.msra.mxu0 0.0
        %2632 = vmatprep.subr.mxu0 0.0
        %2633 = vmatpush1.msra.mxu0 0.0
        %2634 = vmatprep.subr.mxu0 0.0
        %2635 = vmatpush1.msra.mxu0 0.0
        %2636 = vmatprep.subr.mxu0 0.0
        %2637 = vmatpush1.msra.mxu0 0.0
        %2638 = vmatprep.subr.mxu0 0.0
        %2639 = vmatpush1.msra.mxu0 0.0
        %2640 = vmatprep.subr.mxu0 0.0
        %2641 = vmatpush1.msra.mxu0 0.0
        %2642 = vmatprep.subr.mxu0 0.0
        %2643 = vmatpush1.msra.mxu0 0.0
        %2644 = vmatprep.subr.mxu0 0.0
        %2645 = vmatpush1.msra.mxu0 0.0
        %2646 = vmatprep.subr.mxu0 0.0
        %2647 = vmatpush1.msra.mxu0 0.0
        %2648 = vmatprep.subr.mxu0 0.0
        %2649 = vmatpush1.msra.mxu0 0.0
        %2650 = vmatprep.mubr.f32.mxu0 0.0
        %2651 = vmatmul.mubr.f32.gmra.mrb[0].mxu0 %v2584
        %v2652 = vpop.f32.mrb[0].mxu0
        %v2653 = vadd.f32 %v2582, %v2652
        %v2654 = vpop.f32.mrb[0].mxu0
        %2655 = vdwg.mxu0
        %2656 = vst [vmem:[%s711] sm:$0x1] %v2653
        %s2657 = sand.u32 %s538, 1
        %s2658 = scalar_lea.sflag [#allocation3], %s2657
        %s2659 = sand.u32 %s538, 1
        %s2660 = scalar_lea.vmem [#allocation2], %s2659
        // Predicated region
        $region113: #{sentiment_classifier_forward.1} parent=111 // pred_check
          %p2661 = pneg %p548
        $region114: #{sentiment_classifier_forward.1} parent=111 // pred_check_branch
          %2663 = sbr.rel (%p2661) target = $region116
        $region115: #{sentiment_classifier_forward.1} parent=111 // pred_region
          %s2665 = ssub.s32 16, 16
          %2666 = vsyncadd %s2658, %s2665
          %s2667 = smul.addr %s37, 16
          %s2668 = scalar_lea.hbm %s23, %s2667
          %s2670 = sshll.u32 %s2660, 4
          %s2671 = int_to_ptr.vmem [resolvable:$true] %s2670
          %2673 = dma.vmem_to_hbm [thread:$0]  %s2671, 16, %s2668, %s2658
        $region116: #{sentiment_classifier_forward.1} parent=111 // pred_fallthru
          _
      $region112: #{sentiment_classifier_forward.1} parent=5 // pred_fallthru
        _
      %p2674 = scmp.le.s32.totalorder 2, %s32
      // Predicated region
      $region117: #{sentiment_classifier_forward.1} parent=5 // pred_check
        %p2675 = pneg %p2674
      $region118: #{sentiment_classifier_forward.1} parent=5 // pred_check_branch
        %2677 = sbr.rel (%p2675) target = $region120
      $region119: #{sentiment_classifier_forward.1} parent=5 // pred_region
        %s2678 = ssub.s32 %s32, 2
        // Predicated region
        $region121: #{sentiment_classifier_forward.1} parent=119 // pred_check
          %p2679 = pneg %p554
        $region122: #{sentiment_classifier_forward.1} parent=119 // pred_check_branch
          %2681 = sbr.rel (%p2679) target = $region124
        $region123: #{sentiment_classifier_forward.1} parent=119 // pred_region
          %s2682 = sand.u32 %s539, 1
          %s2683 = scalar_lea.sflag [#allocation3], %s2682
          %s2684 = sand.u32 %s539, 1
          %s2685 = scalar_lea.vmem [#allocation2], %s2684
          %2686 = dma.done %s2683, 16
        $region124: #{sentiment_classifier_forward.1} parent=119 // pred_fallthru
          _
      $region120: #{sentiment_classifier_forward.1} parent=5 // pred_fallthru
        _
    $region6: #{sentiment_classifier_forward.1} parent=1 // loop_footer
      %s36 = sadd.s32 1, %s32
    $region7: #{sentiment_classifier_forward.1} parent=1 // loop_footer_branch
      %31 = sbr.rel target = $region3
    $region8: #{sentiment_classifier_forward.1} parent=1 // loop_exit
      _
    %2687 = vsyncpa [#allocation3], 1
    %s2688 = scalar_lea.sflag [#allocation3], 1
    %2689 = vsyncpa %s2688, 1

</llo_original>
